<compile_context>
chip_gen: v6e
topology: v6e:2x2x1
jax: 0.10.0
libtpu: 0.0.40
codegen_flags: <defaults>
</compile_context>

<pallas_src>
import functools

import jax
import jax.numpy as jnp
from jax import lax
from jax.experimental import pallas as pl
from jax.experimental.pallas import tpu as pltpu

EPS = 1e-20
TEMP = 0.07          # args.temp default
ENC_DIM = 32         # stand-in encoder hidden dim (enc_hid_dim)
HEAD_DIM = 128       # selfsim_fc output dim (fixed to 128 in make_head)


# ----------------------------------------------------------------------------
# Sizing helpers
# ----------------------------------------------------------------------------
def _vmem_limit():
    """~3/4 of this chip's VMEM: 48 MiB on v7x (64 MiB), 96 MiB on v5e/v6e (128 MiB)."""
    try:
        cap = int(pltpu.get_tpu_info().vmem_capacity_bytes)
    except Exception:
        cap = 64 * 1024 * 1024          # conservative fallback (v7x-sized)
    return min((cap * 3) // 4, 96 * 1024 * 1024)


def _pick_row_tile(n_rows, bytes_per_row):
    """Row tile: multiple of 8, divides n_rows, grid >= ~4, bounded by a VMEM budget."""
    if n_rows <= 8:
        return n_rows
    budget = _vmem_limit() // 4                       # headroom for double-buffering
    rt = max(8, min(n_rows, 512, budget // max(bytes_per_row, 1)))
    if n_rows >= 32:
        rt = min(rt, max(8, n_rows // 4))             # grid >= 4: hide DMA + megacore
    rt -= rt % 8
    rt = max(rt, 8)
    while rt > 8 and n_rows % rt:
        rt -= 8
    if n_rows % rt:
        rt = n_rows                                   # fallback: single block
    return rt


def _pick_chunk(hw):
    """HW chunk for the in-kernel spatial-mean accumulation (divides hw)."""
    c = min(hw, 512)
    while c > 1 and hw % c:
        c -= 1
    return c


# ----------------------------------------------------------------------------
# Kernel A: fused pixels_to_nodes
#   encoder (pointwise conv + ReLU) -> spatial mean -> selfsim_fc -> L2 normalize
# ----------------------------------------------------------------------------
def _feat_kernel(x_ref, we_ref, be_ref, wh_ref, bh_ref, o_ref, *, hw, chunk, n_chunks):
    # x_ref : (rows, 3*HW)   channel planes concatenated along lanes (lane-dense)
    # we_ref: (3, ENC, 1), be_ref: (1, ENC, 1)   tiny encoder params, broadcast here
    # wh_ref: (ENC, HEAD_DIM), bh_ref: (1, HEAD_DIM)
    rows = x_ref.shape[0]
    enc = we_ref.shape[1]
    we = we_ref[...]                           # hoisted once
    w0, w1, w2 = we[0:1], we[1:2], we[2:3]     # (1, ENC, 1) each
    bb = be_ref[...]                           # (1, ENC, 1)

    # TODO(synk): real utils.make_encoder is an external ResNet; stand-in is a
    #             deterministic pointwise conv + ReLU with the same I/O role.
    # Spatial mean accumulated over HW chunks: the (rows, ENC, HW) intermediate is
    # never materialized (the VMEM limiter, esp. on v7x).  K=3 contraction stays on
    # the VPU (broadcast FMAs); the MXU is reserved for the head matmul.
    feats = jnp.zeros((rows, enc), jnp.float32)
    for ci in range(n_chunks):                 # static unroll -> static, aligned slices
        off = ci * chunk
        x0 = x_ref[:, off:off + chunk]
        x1 = x_ref[:, hw + off:hw + off + chunk]
        x2 = x_ref[:, 2 * hw + off:2 * hw + off + chunk]
        y = (x0[:, None, :] * w0 + x1[:, None, :] * w1 + x2[:, None, :] * w2 + bb)
        y = jnp.maximum(y, 0.0)                # (rows, ENC, chunk)
        feats = feats + jnp.sum(y, axis=-1)
    feats = feats * (1.0 / hw)                 # spatial mean -> (rows, ENC)

    h = jnp.dot(feats, wh_ref[...], preferred_element_type=jnp.float32) + bh_ref[...]
    # TODO(synk): F.normalize(p=2, eps=1e-12) clamps ||h||; here ||h||^2 is clamped.
    inv_norm = lax.rsqrt(jnp.maximum(jnp.sum(h * h, axis=-1, keepdims=True), 1e-24))
    o_ref[...] = h * inv_norm


def fused_pixels_to_nodes(x_nodes, hw, w_enc, b_enc, w_head, b_head):
    R, three_hw = x_nodes.shape
    enc_dim = w_enc.shape[-1]
    head_dim = w_head.shape[-1]
    row_tile = _pick_row_tile(R, bytes_per_row=three_hw * 4)
    chunk = _pick_chunk(hw)
    we3 = w_enc.reshape(3, enc_dim, 1)         # tiny param reshapes (free)
    be3 = b_enc.reshape(1, enc_dim, 1)
    kernel = functools.partial(_feat_kernel, hw=hw, chunk=chunk, n_chunks=hw // chunk)
    return pl.pallas_call(
        kernel,
        out_shape=jax.ShapeDtypeStruct((R, head_dim), jnp.float32),
        grid=(R // row_tile,),
        in_specs=[
            pl.BlockSpec((row_tile, three_hw), lambda i: (i, 0)),
            pl.BlockSpec((3, enc_dim, 1), lambda i: (0, 0, 0)),
            pl.BlockSpec((1, enc_dim, 1), lambda i: (0, 0, 0)),
            pl.BlockSpec((enc_dim, head_dim), lambda i: (0, 0)),
            pl.BlockSpec((1, head_dim), lambda i: (0, 0)),
        ],
        out_specs=pl.BlockSpec((row_tile, head_dim), lambda i: (i, 0)),
        compiler_params=pltpu.CompilerParams(
            dimension_semantics=("parallel",),
            vmem_limit_bytes=_vmem_limit()),
    )(x_nodes, we3, be3, w_head, b_head)


# ----------------------------------------------------------------------------
# Kernel B: fused affinity + stochastic matrices + palindrome walks + xent/acc
#           (one grid step per batch element)
# ----------------------------------------------------------------------------
def _walk_kernel(q_ref, o_ref):
    # q_ref: (1, T, N, C) node embeddings of one batch element
    # o_ref: (1, num_walks, 2) -> per-b [xent mean over N, acc mean over N] per walk
    _, T, N, C = q_ref.shape
    inv_temp = 1.0 / TEMP
    dn_bt = (((1,), (1,)), ((), ()))           # contract last dims:  A @ B^T

    # One Gram matmul feeds every (t, t+1) affinity (vs T-1 16-wide MXU launches).
    Q = q_ref[0].reshape(T * N, C)
    G = lax.dot_general(Q, Q, dn_bt, preferred_element_type=jnp.float32)   # (TN, TN)

    # Stack the (t, t+1) off-diagonal blocks; softmaxes run batched over all t.
    Zs = jnp.stack([G[t * N:(t + 1) * N, (t + 1) * N:(t + 2) * N]
                    for t in range(T - 1)], axis=0) * inv_temp             # (T-1, N, N)

    # A12_t = row softmax;  column softmax C_t (A21_t = C_t^T, folded in later as D^T).
    # Exact division (no approx reciprocal): error would compound through the prefix
    # products and the log in the cross-entropy.
    er = jnp.exp(Zs - jnp.max(Zs, axis=-1, keepdims=True))
    A12 = er / jnp.sum(er, axis=-1, keepdims=True)
    ec = jnp.exp(Zs - jnp.max(Zs, axis=1, keepdims=True))
    Cst = ec / jnp.sum(ec, axis=1, keepdims=True)

    # Palindrome walks with shared-prefix reuse:
    #   AA_t = (A12_0..A12_t) @ (A21_t..A21_0) = P_t @ D_t^T   (no explicit transpose)
    P, D = A12[0], Cst[0]
    aa_list = []
    for t in range(1, T - 1):
        P = jnp.dot(P, A12[t], preferred_element_type=jnp.float32)
        D = jnp.dot(D, Cst[t], preferred_element_type=jnp.float32)
        aa_list.append(lax.dot_general(P, D, dn_bt, preferred_element_type=jnp.float32))

    # Cross-entropy vs targets = arange(N) (the diagonal) + accuracy, batched over walks.
    AAs = jnp.stack(aa_list, axis=0)                               # (W, N, N)
    logits = jnp.log(AAs + EPS)
    row_max = jnp.max(logits, axis=-1, keepdims=True)              # (W, N, 1)
    lse = jnp.log(jnp.sum(jnp.exp(logits - row_max), axis=-1, keepdims=True)) + row_max
    row_ids = lax.broadcasted_iota(jnp.int32, (1, N, N), 1)
    col_ids = lax.broadcasted_iota(jnp.int32, (1, N, N), 2)
    diag = jnp.sum(jnp.where(row_ids == col_ids, logits, 0.0),
                   axis=-1, keepdims=True)                         # logits[.., n, n]
    # TODO(synk): ties pick the lowest index; torch.argmax tie order is unspecified.
    col_f = col_ids.astype(jnp.float32)
    amax = jnp.min(jnp.where(logits >= row_max, col_f, float(N)),
                   axis=-1, keepdims=True)                         # (W, N, 1)
    row_f = lax.broadcasted_iota(jnp.int32, (1, N, 1), 1).astype(jnp.float32)
    hit = (amax == row_f).astype(jnp.float32)

    inv_n = 1.0 / N
    losses = jnp.sum(lse - diag, axis=1) * inv_n                   # (W, 1)
    accs = jnp.sum(hit, axis=1) * inv_n                            # (W, 1)
    o_ref[0] = jnp.concatenate([losses, accs], axis=-1)            # single store


def walk_stats(q_btnc):
    B, T, N, C = q_btnc.shape
    num_walks = T - 2
    return pl.pallas_call(
        _walk_kernel,
        out_shape=jax.ShapeDtypeStruct((B, num_walks, 2), jnp.float32),
        grid=(B,),
        in_specs=[pl.BlockSpec((1, T, N, C), lambda b: (b, 0, 0, 0))],
        out_specs=pl.BlockSpec((1, num_walks, 2), lambda b: (b, 0, 0)),
        compiler_params=pltpu.CompilerParams(dimension_semantics=("parallel",)),
    )(q_btnc)


# ----------------------------------------------------------------------------
# CRW.forward (d=None, just_feats=False, sk_targets=False, flip=False, vis=None)
# ----------------------------------------------------------------------------
def crw_forward(x, params):
    # x: (B, T, N*3, H, W) float32 -- PyTorch layout; the N*3 axis splits as (N, 3)
    B, T, NC, H, W = x.shape
    N = NC // 3
    HW = H * W
    R = B * T * N

    # Natural (b, t, n) row order: pure reshape, no HBM transpose of the big input.
    x_nodes = x.reshape(R, 3 * HW)

    # ---- pixels_to_nodes (fused encoder + spatial mean + head + L2 normalize) ----
    q_rows = fused_pixels_to_nodes(x_nodes, HW, params['enc_w'], params['enc_b'],
                                   params['head_w'], params['head_b'])      # (R, 128)
    q_btnc = q_rows.reshape(B, T, N, HEAD_DIM)       # already the walk-kernel layout
    q = jnp.transpose(q_btnc, (0, 3, 1, 2))          # (B, C, T, N): only transpose emitted

    # ---- affinities + palindrome walks + xent/acc (fused, per-batch grid) ----
    diags = {}
    num_walks = T - 2
    if num_walks > 0:
        stats = jnp.mean(walk_stats(q_btnc), axis=0)  # (num_walks, 2): mean over batch
        xents = []
        for i in range(1, T - 1):
            loss_i = stats[i - 1, 0]
            acc_i = stats[i - 1, 1]
            diags[f'{H} xent cyc r{i}'] = loss_i
            diags[f'{H} acc cyc r{i}'] = acc_i
            xents.append(loss_i)
        # PyTorch: xents has a leading 0.0 and divides by max(1, len(xents)-1)
        loss = sum(xents) / max(1, len(xents))
    else:
        loss = jnp.float32(0.0)
    # TODO(synk): d!=None multi-view branch (view_loss), sk_targets sinkhorn branch,
    #             dropout/featdrop (rates are 0 here) and vis hooks are not implemented.
    return q, loss, diags


if __name__ == "__main__":
    B, T, N, H, W = 2, 4, 16, 16, 16          # x: (B, T, N*3, H, W)
    key = jax.random.PRNGKey(0)
    kx, k1, k2, k3, k4 = jax.random.split(key, 5)

    x = jax.random.normal(kx, (B, T, N * 3, H, W), dtype=jnp.float32)
    params = {
        'enc_w': jax.random.normal(k1, (3, ENC_DIM), jnp.float32) * 0.5,
        'enc_b': jax.random.normal(k2, (1, ENC_DIM), jnp.float32) * 0.1,
        'head_w': jax.random.normal(k3, (ENC_DIM, HEAD_DIM), jnp.float32)
                  * (1.0 / (ENC_DIM ** 0.5)),
        'head_b': jax.random.normal(k4, (1, HEAD_DIM), jnp.float32) * 0.1,
    }

    fwd = jax.jit(crw_forward)
    q, loss, diags = fwd(x, params)
    jax.block_until_ready((q, loss, tuple(diags.values())))
    assert q.shape == (B, HEAD_DIM, T, N)
    assert bool(jnp.isfinite(loss))
    print("KERNEL_OK")
</pallas_src>

<mosaic_0001>
module attributes {stable_mosaic.version = 11 : i64} {
  func.func @_walk_kernel(%arg0: i32, %arg1: memref<1x4x16x128xf32, #tpu.memory_space<vmem>>, %arg2: memref<1x2x2xf32, #tpu.memory_space<vmem>>) attributes {dimension_semantics = [#tpu.dimension_semantics<parallel>], iteration_bounds = array<i64: 2>, scalar_prefetch = 0 : i64, scratch_operands = 0 : i64, tpu.core_type = #tpu.core_type<tc>, window_params = [{transform_indices = @transform_0, window_bounds = array<i64: 1, 4, 16, 128>}, {transform_indices = @transform_1, window_bounds = array<i64: 1, 2, 2>}]} {
    %c0 = arith.constant 0 : index
    %c0_0 = arith.constant 0 : index
    %c0_1 = arith.constant 0 : index
    %c0_2 = arith.constant 0 : index
    %0 = vector.load %arg1[%c0, %c0_0, %c0_1, %c0_2] : memref<1x4x16x128xf32, #tpu.memory_space<vmem>>, vector<1x4x16x128xf32>
    %1 = vector.shape_cast %0 : vector<1x4x16x128xf32> to vector<4x16x128xf32>
    %2 = vector.shape_cast %1 : vector<4x16x128xf32> to vector<64x128xf32>
    %cst = arith.constant dense<0.000000e+00> : vector<64x64xf32>
    %3 = tpu.matmul %2, %2, %cst {dimension_numbers = #tpu.dot_dimension_numbers<[1], [1], [0], [0], [0, 0, 1, 0], [], []>} : vector<64x128xf32>, vector<64x128xf32>, vector<64x64xf32> -> vector<64x64xf32>
    %4 = vector.extract_strided_slice %3 {offsets = [0, 16], sizes = [16, 16], strides = [1, 1]} : vector<64x64xf32> to vector<16x16xf32>
    %5 = vector.extract_strided_slice %3 {offsets = [16, 32], sizes = [16, 16], strides = [1, 1]} : vector<64x64xf32> to vector<16x16xf32>
    %6 = vector.extract_strided_slice %3 {offsets = [32, 48], sizes = [16, 16], strides = [1, 1]} : vector<64x64xf32> to vector<16x16xf32>
    %7 = vector.shape_cast %4 : vector<16x16xf32> to vector<1x16x16xf32>
    %8 = vector.shape_cast %5 : vector<16x16xf32> to vector<1x16x16xf32>
    %9 = vector.shape_cast %6 : vector<16x16xf32> to vector<1x16x16xf32>
    %10 = tpu.concatenate %7, %8, %9 in 0 : vector<1x16x16xf32>, vector<1x16x16xf32>, vector<1x16x16xf32> -> vector<3x16x16xf32>
    %cst_3 = arith.constant 14.2857141 : f32
    %11 = vector.broadcast %cst_3 : f32 to vector<3x16x16xf32>
    %12 = arith.mulf %10, %11 : vector<3x16x16xf32>
    %cst_4 = arith.constant dense<0xFF800000> : vector<3x16xf32>
    %13 = vector.multi_reduction <maximumf>, %12, %cst_4 [2] : vector<3x16x16xf32> to vector<3x16xf32>
    %14 = vector.shape_cast %13 : vector<3x16xf32> to vector<3x16x1xf32>
    %15 = vector.broadcast %14 : vector<3x16x1xf32> to vector<3x16x16xf32>
    %16 = arith.subf %12, %15 : vector<3x16x16xf32>
    %17 = math.exp %16 : vector<3x16x16xf32>
    %cst_5 = arith.constant dense<0.000000e+00> : vector<3x16xf32>
    %18 = vector.multi_reduction <add>, %17, %cst_5 [2] : vector<3x16x16xf32> to vector<3x16xf32>
    %19 = vector.shape_cast %18 : vector<3x16xf32> to vector<3x16x1xf32>
    %20 = vector.broadcast %19 : vector<3x16x1xf32> to vector<3x16x16xf32>
    %21 = arith.divf %17, %20 : vector<3x16x16xf32>
    %cst_6 = arith.constant dense<0xFF800000> : vector<3x16xf32>
    %22 = vector.multi_reduction <maximumf>, %12, %cst_6 [1] : vector<3x16x16xf32> to vector<3x16xf32>
    %23 = vector.shape_cast %22 : vector<3x16xf32> to vector<3x1x16xf32>
    %24 = vector.broadcast %23 : vector<3x1x16xf32> to vector<3x16x16xf32>
    %25 = arith.subf %12, %24 : vector<3x16x16xf32>
    %26 = math.exp %25 : vector<3x16x16xf32>
    %cst_7 = arith.constant dense<0.000000e+00> : vector<3x16xf32>
    %27 = vector.multi_reduction <add>, %26, %cst_7 [1] : vector<3x16x16xf32> to vector<3x16xf32>
    %28 = vector.shape_cast %27 : vector<3x16xf32> to vector<3x1x16xf32>
    %29 = vector.broadcast %28 : vector<3x1x16xf32> to vector<3x16x16xf32>
    %30 = arith.divf %26, %29 : vector<3x16x16xf32>
    %31 = vector.extract_strided_slice %21 {offsets = [0, 0, 0], sizes = [1, 16, 16], strides = [1, 1, 1]} : vector<3x16x16xf32> to vector<1x16x16xf32>
    %32 = vector.shape_cast %31 : vector<1x16x16xf32> to vector<16x16xf32>
    %33 = vector.extract_strided_slice %30 {offsets = [0, 0, 0], sizes = [1, 16, 16], strides = [1, 1, 1]} : vector<3x16x16xf32> to vector<1x16x16xf32>
    %34 = vector.shape_cast %33 : vector<1x16x16xf32> to vector<16x16xf32>
    %35 = vector.extract_strided_slice %21 {offsets = [1, 0, 0], sizes = [1, 16, 16], strides = [1, 1, 1]} : vector<3x16x16xf32> to vector<1x16x16xf32>
    %36 = vector.shape_cast %35 : vector<1x16x16xf32> to vector<16x16xf32>
    %cst_8 = arith.constant dense<0.000000e+00> : vector<16x16xf32>
    %37 = tpu.matmul %32, %36, %cst_8 {dimension_numbers = #tpu.dot_dimension_numbers<[1], [0], [0], [1], [0, 0, 1, 1], [], []>} : vector<16x16xf32>, vector<16x16xf32>, vector<16x16xf32> -> vector<16x16xf32>
    %38 = vector.extract_strided_slice %30 {offsets = [1, 0, 0], sizes = [1, 16, 16], strides = [1, 1, 1]} : vector<3x16x16xf32> to vector<1x16x16xf32>
    %39 = vector.shape_cast %38 : vector<1x16x16xf32> to vector<16x16xf32>
    %cst_9 = arith.constant dense<0.000000e+00> : vector<16x16xf32>
    %40 = tpu.matmul %34, %39, %cst_9 {dimension_numbers = #tpu.dot_dimension_numbers<[1], [0], [0], [1], [0, 0, 1, 1], [], []>} : vector<16x16xf32>, vector<16x16xf32>, vector<16x16xf32> -> vector<16x16xf32>
    %cst_10 = arith.constant dense<0.000000e+00> : vector<16x16xf32>
    %41 = tpu.matmul %37, %40, %cst_10 {dimension_numbers = #tpu.dot_dimension_numbers<[1], [1], [0], [0], [0, 0, 1, 0], [], []>} : vector<16x16xf32>, vector<16x16xf32>, vector<16x16xf32> -> vector<16x16xf32>
    %42 = vector.extract_strided_slice %21 {offsets = [2, 0, 0], sizes = [1, 16, 16], strides = [1, 1, 1]} : vector<3x16x16xf32> to vector<1x16x16xf32>
    %43 = vector.shape_cast %42 : vector<1x16x16xf32> to vector<16x16xf32>
    %cst_11 = arith.constant dense<0.000000e+00> : vector<16x16xf32>
    %44 = tpu.matmul %37, %43, %cst_11 {dimension_numbers = #tpu.dot_dimension_numbers<[1], [0], [0], [1], [0, 0, 1, 1], [], []>} : vector<16x16xf32>, vector<16x16xf32>, vector<16x16xf32> -> vector<16x16xf32>
    %45 = vector.extract_strided_slice %30 {offsets = [2, 0, 0], sizes = [1, 16, 16], strides = [1, 1, 1]} : vector<3x16x16xf32> to vector<1x16x16xf32>
    %46 = vector.shape_cast %45 : vector<1x16x16xf32> to vector<16x16xf32>
    %cst_12 = arith.constant dense<0.000000e+00> : vector<16x16xf32>
    %47 = tpu.matmul %40, %46, %cst_12 {dimension_numbers = #tpu.dot_dimension_numbers<[1], [0], [0], [1], [0, 0, 1, 1], [], []>} : vector<16x16xf32>, vector<16x16xf32>, vector<16x16xf32> -> vector<16x16xf32>
    %cst_13 = arith.constant dense<0.000000e+00> : vector<16x16xf32>
    %48 = tpu.matmul %44, %47, %cst_13 {dimension_numbers = #tpu.dot_dimension_numbers<[1], [1], [0], [0], [0, 0, 1, 0], [], []>} : vector<16x16xf32>, vector<16x16xf32>, vector<16x16xf32> -> vector<16x16xf32>
    %49 = vector.shape_cast %41 : vector<16x16xf32> to vector<1x16x16xf32>
    %50 = vector.shape_cast %48 : vector<16x16xf32> to vector<1x16x16xf32>
    %51 = tpu.concatenate %49, %50 in 0 : vector<1x16x16xf32>, vector<1x16x16xf32> -> vector<2x16x16xf32>
    %cst_14 = arith.constant 9.99999968E-21 : f32
    %52 = vector.broadcast %cst_14 : f32 to vector<2x16x16xf32>
    %53 = arith.addf %51, %52 : vector<2x16x16xf32>
    %54 = math.log %53 : vector<2x16x16xf32>
    %cst_15 = arith.constant dense<0xFF800000> : vector<2x16xf32>
    %55 = vector.multi_reduction <maximumf>, %54, %cst_15 [2] : vector<2x16x16xf32> to vector<2x16xf32>
    %56 = vector.shape_cast %55 : vector<2x16xf32> to vector<2x16x1xf32>
    %57 = vector.broadcast %56 : vector<2x16x1xf32> to vector<2x16x16xf32>
    %58 = arith.subf %54, %57 : vector<2x16x16xf32>
    %59 = math.exp %58 : vector<2x16x16xf32>
    %cst_16 = arith.constant dense<0.000000e+00> : vector<2x16xf32>
    %60 = vector.multi_reduction <add>, %59, %cst_16 [2] : vector<2x16x16xf32> to vector<2x16xf32>
    %61 = vector.shape_cast %60 : vector<2x16xf32> to vector<2x16x1xf32>
    %62 = math.log %61 : vector<2x16x1xf32>
    %63 = arith.addf %62, %56 : vector<2x16x1xf32>
    %64 = tpu.iota {dimensions = array<i32: 1>} : vector<1x16x16xi32>
    %65 = tpu.iota {dimensions = array<i32: 2>} : vector<1x16x16xi32>
    %66 = arith.cmpi eq, %64, %65 : vector<1x16x16xi32>
    %cst_17 = arith.constant 0.000000e+00 : f32
    %67 = vector.shape_cast %66 : vector<1x16x16xi1> to vector<1x16x16xi1>
    %68 = vector.broadcast %67 : vector<1x16x16xi1> to vector<2x16x16xi1>
    %69 = vector.broadcast %cst_17 : f32 to vector<2x16x16xf32>
    %70 = arith.select %68, %54, %69 : vector<2x16x16xi1>, vector<2x16x16xf32>
    %cst_18 = arith.constant dense<0.000000e+00> : vector<2x16xf32>
    %71 = vector.multi_reduction <add>, %70, %cst_18 [2] : vector<2x16x16xf32> to vector<2x16xf32>
    %72 = vector.shape_cast %71 : vector<2x16xf32> to vector<2x16x1xf32>
    %73 = arith.sitofp %65 : vector<1x16x16xi32> to vector<1x16x16xf32>
    %74 = vector.broadcast %56 : vector<2x16x1xf32> to vector<2x16x16xf32>
    %75 = arith.cmpf oge, %54, %74 : vector<2x16x16xf32>
    %cst_19 = arith.constant 1.600000e+01 : f32
    %76 = vector.shape_cast %73 : vector<1x16x16xf32> to vector<1x16x16xf32>
    %77 = vector.broadcast %76 : vector<1x16x16xf32> to vector<2x16x16xf32>
    %78 = vector.broadcast %cst_19 : f32 to vector<2x16x16xf32>
    %79 = arith.select %75, %77, %78 : vector<2x16x16xi1>, vector<2x16x16xf32>
    %cst_20 = arith.constant dense<0x7F800000> : vector<2x16xf32>
    %80 = vector.multi_reduction <minimumf>, %79, %cst_20 [2] : vector<2x16x16xf32> to vector<2x16xf32>
    %81 = vector.shape_cast %80 : vector<2x16xf32> to vector<2x16x1xf32>
    %82 = tpu.iota {dimensions = array<i32: 1>} : vector<1x16x1xi32>
    %83 = arith.sitofp %82 : vector<1x16x1xi32> to vector<1x16x1xf32>
    %84 = vector.broadcast %83 : vector<1x16x1xf32> to vector<2x16x1xf32>
    %85 = arith.cmpf oeq, %81, %84 : vector<2x16x1xf32>
    %86 = arith.extui %85 : vector<2x16x1xi1> to vector<2x16x1xi32>
    %87 = arith.sitofp %86 : vector<2x16x1xi32> to vector<2x16x1xf32>
    %88 = arith.subf %63, %72 : vector<2x16x1xf32>
    %cst_21 = arith.constant dense<0.000000e+00> : vector<2x1xf32>
    %89 = vector.multi_reduction <add>, %88, %cst_21 [1] : vector<2x16x1xf32> to vector<2x1xf32>
    %cst_22 = arith.constant 6.250000e-02 : f32
    %90 = vector.broadcast %cst_22 : f32 to vector<2x1xf32>
    %91 = arith.mulf %89, %90 : vector<2x1xf32>
    %cst_23 = arith.constant dense<0.000000e+00> : vector<2x1xf32>
    %92 = vector.multi_reduction <add>, %87, %cst_23 [1] : vector<2x16x1xf32> to vector<2x1xf32>
    %cst_24 = arith.constant 6.250000e-02 : f32
    %93 = vector.broadcast %cst_24 : f32 to vector<2x1xf32>
    %94 = arith.mulf %92, %93 : vector<2x1xf32>
    %95 = tpu.concatenate %91, %94 in 1 : vector<2x1xf32>, vector<2x1xf32> -> vector<2x2xf32>
    %c0_25 = arith.constant 0 : index
    %c0_26 = arith.constant 0 : index
    %c0_27 = arith.constant 0 : index
    %96 = vector.load %arg2[%c0_25, %c0_26, %c0_27] : memref<1x2x2xf32, #tpu.memory_space<vmem>>, vector<1x2x2xf32>
    %97 = vector.shape_cast %96 : vector<1x2x2xf32> to vector<2x2xf32>
    %98 = vector.shape_cast %95 : vector<2x2xf32> to vector<1x2x2xf32>
    tpu.vector_store %arg2[%c0_25, %c0_26, %c0_27], %98 {strides = array<i32>} : memref<1x2x2xf32, #tpu.memory_space<vmem>>, vector<1x2x2xf32>,
    return
  }
  func.func @transform_0(%arg0: i32) -> (i32, i32, i32, i32) {
    %c0_i32 = arith.constant 0 : i32
    %c0_i32_0 = arith.constant 0 : i32
    %c0_i32_1 = arith.constant 0 : i32
    %c0_i32_2 = arith.constant 0 : i32
    return %arg0, %c0_i32, %c0_i32_0, %c0_i32_1 : i32, i32, i32, i32
  }
  func.func @transform_1(%arg0: i32) -> (i32, i32, i32) {
    %c0_i32 = arith.constant 0 : i32
    %c0_i32_0 = arith.constant 0 : i32
    %c0_i32_1 = arith.constant 0 : i32
    return %arg0, %c0_i32, %c0_i32_0 : i32, i32, i32
  }
}

module attributes {stable_mosaic.version = 11 : i64} {
  func.func @_feat_kernel(%arg0: i32, %arg1: memref<32x768xf32, #tpu.memory_space<vmem>>, %arg2: memref<3x32x1xf32, #tpu.memory_space<vmem>>, %arg3: memref<1x32x1xf32, #tpu.memory_space<vmem>>, %arg4: memref<32x128xf32, #tpu.memory_space<vmem>>, %arg5: memref<1x128xf32, #tpu.memory_space<vmem>>, %arg6: memref<32x128xf32, #tpu.memory_space<vmem>>) attributes {dimension_semantics = [#tpu.dimension_semantics<parallel>], iteration_bounds = array<i64: 4>, scalar_prefetch = 0 : i64, scratch_operands = 0 : i64, tpu.core_type = #tpu.core_type<tc>, window_params = [{transform_indices = @transform_0, window_bounds = array<i64: 32, 768>}, {pipeline_mode = #tpu.pipeline_mode<synchronous>, transform_indices = @transform_1, window_bounds = array<i64: 3, 32, 1>}, {pipeline_mode = #tpu.pipeline_mode<synchronous>, transform_indices = @transform_2, window_bounds = array<i64: 1, 32, 1>}, {pipeline_mode = #tpu.pipeline_mode<synchronous>, transform_indices = @transform_3, window_bounds = array<i64: 32, 128>}, {pipeline_mode = #tpu.pipeline_mode<synchronous>, transform_indices = @transform_4, window_bounds = array<i64: 1, 128>}, {transform_indices = @transform_5, window_bounds = array<i64: 32, 128>}]} {
    %c0 = arith.constant 0 : index
    %c0_0 = arith.constant 0 : index
    %c0_1 = arith.constant 0 : index
    %0 = vector.load %arg2[%c0, %c0_0, %c0_1] : memref<3x32x1xf32, #tpu.memory_space<vmem>>, vector<3x32x1xf32>
    %1 = vector.extract_strided_slice %0 {offsets = [0, 0, 0], sizes = [1, 32, 1], strides = [1, 1, 1]} : vector<3x32x1xf32> to vector<1x32x1xf32>
    %2 = vector.extract_strided_slice %0 {offsets = [1, 0, 0], sizes = [1, 32, 1], strides = [1, 1, 1]} : vector<3x32x1xf32> to vector<1x32x1xf32>
    %3 = vector.extract_strided_slice %0 {offsets = [2, 0, 0], sizes = [1, 32, 1], strides = [1, 1, 1]} : vector<3x32x1xf32> to vector<1x32x1xf32>
    %c0_2 = arith.constant 0 : index
    %c0_3 = arith.constant 0 : index
    %c0_4 = arith.constant 0 : index
    %4 = vector.load %arg3[%c0_2, %c0_3, %c0_4] : memref<1x32x1xf32, #tpu.memory_space<vmem>>, vector<1x32x1xf32>
    %cst = arith.constant 0.000000e+00 : f32
    %5 = vector.broadcast %cst : f32 to vector<32x32xf32>
    %c0_5 = arith.constant 0 : index
    %c0_6 = arith.constant 0 : index
    %6 = vector.load %arg1[%c0_5, %c0_6] : memref<32x768xf32, #tpu.memory_space<vmem>>, vector<32x256xf32>
    %c0_7 = arith.constant 0 : index
    %c256 = arith.constant 256 : index
    %7 = vector.load %arg1[%c0_7, %c256] : memref<32x768xf32, #tpu.memory_space<vmem>>, vector<32x256xf32>
    %c0_8 = arith.constant 0 : index
    %c512 = arith.constant 512 : index
    %8 = vector.load %arg1[%c0_8, %c512] : memref<32x768xf32, #tpu.memory_space<vmem>>, vector<32x256xf32>
    %9 = vector.shape_cast %6 : vector<32x256xf32> to vector<32x1x256xf32>
    %10 = vector.broadcast %9 : vector<32x1x256xf32> to vector<32x32x256xf32>
    %11 = vector.broadcast %1 : vector<1x32x1xf32> to vector<32x32x256xf32>
    %12 = arith.mulf %10, %11 : vector<32x32x256xf32>
    %13 = vector.shape_cast %7 : vector<32x256xf32> to vector<32x1x256xf32>
    %14 = vector.broadcast %13 : vector<32x1x256xf32> to vector<32x32x256xf32>
    %15 = vector.broadcast %2 : vector<1x32x1xf32> to vector<32x32x256xf32>
    %16 = arith.mulf %14, %15 : vector<32x32x256xf32>
    %17 = arith.addf %12, %16 : vector<32x32x256xf32>
    %18 = vector.shape_cast %8 : vector<32x256xf32> to vector<32x1x256xf32>
    %19 = vector.broadcast %18 : vector<32x1x256xf32> to vector<32x32x256xf32>
    %20 = vector.broadcast %3 : vector<1x32x1xf32> to vector<32x32x256xf32>
    %21 = arith.mulf %19, %20 : vector<32x32x256xf32>
    %22 = arith.addf %17, %21 : vector<32x32x256xf32>
    %23 = vector.broadcast %4 : vector<1x32x1xf32> to vector<32x32x256xf32>
    %24 = arith.addf %22, %23 : vector<32x32x256xf32>
    %cst_9 = arith.constant 0.000000e+00 : f32
    %25 = vector.broadcast %cst_9 : f32 to vector<32x32x256xf32>
    %26 = arith.maximumf %24, %25 : vector<32x32x256xf32>
    %cst_10 = arith.constant dense<0.000000e+00> : vector<32x32xf32>
    %27 = vector.multi_reduction <add>, %26, %cst_10 [2] : vector<32x32x256xf32> to vector<32x32xf32>
    %28 = arith.addf %5, %27 : vector<32x32xf32>
    %cst_11 = arith.constant 3.906250e-03 : f32
    %29 = vector.broadcast %cst_11 : f32 to vector<32x32xf32>
    %30 = arith.mulf %28, %29 : vector<32x32xf32>
    %c0_12 = arith.constant 0 : index
    %c0_13 = arith.constant 0 : index
    %31 = vector.load %arg4[%c0_12, %c0_13] : memref<32x128xf32, #tpu.memory_space<vmem>>, vector<32x128xf32>
    %cst_14 = arith.constant dense<0.000000e+00> : vector<32x128xf32>
    %32 = tpu.matmul %30, %31, %cst_14 {dimension_numbers = #tpu.dot_dimension_numbers<[1], [0], [0], [1], [0, 0, 1, 1], [], []>} : vector<32x32xf32>, vector<32x128xf32>, vector<32x128xf32> -> vector<32x128xf32>
    %c0_15 = arith.constant 0 : index
    %c0_16 = arith.constant 0 : index
    %33 = vector.load %arg5[%c0_15, %c0_16] : memref<1x128xf32, #tpu.memory_space<vmem>>, vector<1x128xf32>
    %34 = vector.broadcast %33 : vector<1x128xf32> to vector<32x128xf32>
    %35 = arith.addf %32, %34 : vector<32x128xf32>
    %36 = arith.mulf %35, %35 : vector<32x128xf32>
    %cst_17 = arith.constant dense<0.000000e+00> : vector<32xf32>
    %37 = vector.multi_reduction <add>, %36, %cst_17 [1] : vector<32x128xf32> to vector<32xf32>
    %38 = vector.shape_cast %37 : vector<32xf32> to vector<32x1xf32>
    %cst_18 = arith.constant 1.000000e-24 : f32
    %39 = vector.broadcast %cst_18 : f32 to vector<32x1xf32>
    %40 = arith.maximumf %38, %39 : vector<32x1xf32>
    %41 = math.rsqrt %40 : vector<32x1xf32>
    %42 = vector.broadcast %41 : vector<32x1xf32> to vector<32x128xf32>
    %43 = arith.mulf %35, %42 : vector<32x128xf32>
    %c0_19 = arith.constant 0 : index
    %c0_20 = arith.constant 0 : index
    %44 = vector.load %arg6[%c0_19, %c0_20] : memref<32x128xf32, #tpu.memory_space<vmem>>, vector<32x128xf32>
    tpu.vector_store %arg6[%c0_19, %c0_20], %43 {strides = array<i32>} : memref<32x128xf32, #tpu.memory_space<vmem>>, vector<32x128xf32>,
    return
  }
  func.func @transform_0(%arg0: i32) -> (i32, i32) {
    %c0_i32 = arith.constant 0 : i32
    %c0_i32_0 = arith.constant 0 : i32
    return %arg0, %c0_i32 : i32, i32
  }
  func.func @transform_1(%arg0: i32) -> (i32, i32, i32) {
    %c0_i32 = arith.constant 0 : i32
    %c0_i32_0 = arith.constant 0 : i32
    %c0_i32_1 = arith.constant 0 : i32
    %c0_i32_2 = arith.constant 0 : i32
    return %c0_i32, %c0_i32_0, %c0_i32_1 : i32, i32, i32
  }
  func.func @transform_2(%arg0: i32) -> (i32, i32, i32) {
    %c0_i32 = arith.constant 0 : i32
    %c0_i32_0 = arith.constant 0 : i32
    %c0_i32_1 = arith.constant 0 : i32
    %c0_i32_2 = arith.constant 0 : i32
    return %c0_i32, %c0_i32_0, %c0_i32_1 : i32, i32, i32
  }
  func.func @transform_3(%arg0: i32) -> (i32, i32) {
    %c0_i32 = arith.constant 0 : i32
    %c0_i32_0 = arith.constant 0 : i32
    %c0_i32_1 = arith.constant 0 : i32
    return %c0_i32, %c0_i32_0 : i32, i32
  }
  func.func @transform_4(%arg0: i32) -> (i32, i32) {
    %c0_i32 = arith.constant 0 : i32
    %c0_i32_0 = arith.constant 0 : i32
    %c0_i32_1 = arith.constant 0 : i32
    return %c0_i32, %c0_i32_0 : i32, i32
  }
  func.func @transform_5(%arg0: i32) -> (i32, i32) {
    %c0_i32 = arith.constant 0 : i32
    %c0_i32_0 = arith.constant 0 : i32
    return %arg0, %c0_i32 : i32, i32
  }
}

</mosaic_0001>

<llo_original>
// kernel: crw_forward.3
$region0: #{crw_forward.3}
  #allocation0 [shape = 'u32[]', space=smem, size = 0x4, offset = 0x4, fixed_abs, tag = 'smem constant byte address 0x4 - core index']
  #allocation1 [shape = 'u32[144,128]{1,0:T(1,128)}', space=vmem, size = 0x12000, scoped, tag = 'internal scratch']
  %s0 = inlined_call_operand.vmem [shape: f32[2,4,16,128], index: 0, kind: input, shape index: {}]
  %s1 = inlined_call_operand.vmem [shape: f32[2,2,2], index: 1, kind: output, shape index: {}]
  %s2 = sld [smem:[#allocation0]]
  $region37: #{crw_forward.3} parent=0
    _
  %s4 = ssub.s32 1, %s2
  %s5 = scalar_select 0, %s4, %s2
  loop: start=0, step=1, limit=4
  $region2: #{crw_forward.3} parent=0 // loop_pre_header
    _
  $region3: #{crw_forward.3} parent=0 // loop_header
    %s7 = sphi 0, %s11
    %p8 = scmp.ge.s32.totalorder %s7, 4
    %s17 = sphi 0, %s19
    %s20 = sphi 0, %s17
    %s21 = sphi 0, %s20
    %s37 = sphi 0, %s21
    %s43 = sphi 0, %s45
    %s46 = sphi 0, %s43
    %s47 = sphi 0, %s46
    %s63 = sphi 0, %s47
  $region4: #{crw_forward.3} parent=0 // loop_header_branch
    %10 = sbr.rel (%p8) target = $region8
  $region5: #{crw_forward.3} parent=0 // loop_body
    %s12 = ssub.s32 %s7, 1
    %s13 = ssub.s32 %s7, 2
    %s14 = sadd.s32 %s7, 1
    %s15 = ssub.s32 %s7, %s14
    %p16 = scmp.eq.s32.totalorder %s15, 0
    %s18 = sadd.s32 %s17, 1
    %s19 = scalar_select %p16, %s17, %s18
    %p22 = pneg %p16
    %p23 = scmp.eq.s32.totalorder %s7, 1
    %p24 = por %p22, %p23
    %p25 = scmp.ne.s32.totalorder %s17, %s20
    %p26 = scmp.eq.s32.totalorder %s7, 0
    %p27 = por %p25, %p26
    %p28 = scmp.ne.s32.totalorder %s17, %s20
    %p29 = scmp.eq.s32.totalorder %s12, 1
    %p30 = por %p28, %p29
    %p31 = scmp.ne.s32.totalorder %s20, %s21
    %p32 = scmp.eq.s32.totalorder %s12, 0
    %p33 = por %p31, %p32
    %p34 = scmp.ne.s32.totalorder %s20, %s21
    %p35 = scmp.eq.s32.totalorder %s13, 1
    %p36 = por %p34, %p35
    %p38 = scmp.ne.s32.totalorder %s21, %s37
    %p39 = scmp.eq.s32.totalorder %s13, 0
    %p40 = por %p38, %p39
    %s41 = ssub.s32 %s7, %s14
    %p42 = scmp.eq.s32.totalorder %s41, 0
    %s44 = sadd.s32 %s43, 1
    %s45 = scalar_select %p42, %s43, %s44
    %p48 = pneg %p42
    %p49 = scmp.eq.s32.totalorder %s7, 1
    %p50 = por %p48, %p49
    %p51 = scmp.ne.s32.totalorder %s43, %s46
    %p52 = scmp.eq.s32.totalorder %s7, 0
    %p53 = por %p51, %p52
    %p54 = scmp.ne.s32.totalorder %s43, %s46
    %p55 = scmp.eq.s32.totalorder %s12, 1
    %p56 = por %p54, %p55
    %p57 = scmp.ne.s32.totalorder %s46, %s47
    %p58 = scmp.eq.s32.totalorder %s12, 0
    %p59 = por %p57, %p58
    %p60 = scmp.ne.s32.totalorder %s46, %s47
    %p61 = scmp.eq.s32.totalorder %s13, 1
    %p62 = por %p60, %p61
    %p64 = scmp.ne.s32.totalorder %s47, %s63
    %p65 = scmp.eq.s32.totalorder %s13, 0
    %p66 = por %p64, %p65
    %p67 = scmp.le.s32.totalorder 1, %s7
    %p68 = scmp.lt.s32.totalorder %s7, 3
    %p69 = pnand %p67, %p68
    %p70 = pneg %p69
    // Predicated region
    $region9: #{crw_forward.3} parent=5 // pred_check
      _
    $region10: #{crw_forward.3} parent=5 // pred_check_branch
      %72 = sbr.rel (%p69) target = $region12
    $region11: #{crw_forward.3} parent=5 // pred_region
      %s73 = ssub.s32 %s7, 1
    $region12: #{crw_forward.3} parent=5 // pred_fallthru
      _
    %p74 = scmp.lt.s32.totalorder %s7, 2
    // Predicated region
    $region13: #{crw_forward.3} parent=5 // pred_check
      %p75 = pneg %p74
    $region14: #{crw_forward.3} parent=5 // pred_check_branch
      %77 = sbr.rel (%p75) target = $region16
    $region15: #{crw_forward.3} parent=5 // pred_region
      // Predicated region
      $region17: #{crw_forward.3} parent=15 // pred_check
        %p78 = pneg %p27
      $region18: #{crw_forward.3} parent=15 // pred_check_branch
        %80 = sbr.rel (%p78) target = $region20
      $region19: #{crw_forward.3} parent=15 // pred_region
        %p81 = scmp.lt.s32.totalorder %s7, 1
        %s82 = scalar_select %p81, %s7, 1
        %s83 = smul.addr %s82, 8
        %s84 = smul.addr %s83, 8
        %s85 = scalar_lea.vmem %s0, %s84
      $region20: #{crw_forward.3} parent=15 // pred_fallthru
        _
    $region16: #{crw_forward.3} parent=5 // pred_fallthru
      _
    %p86 = scmp.le.s32.totalorder 1, %s7
    %p87 = scmp.lt.s32.totalorder %s7, 3
    %p88 = pnand %p86, %p87
    %p89 = pneg %p88
    // Predicated region
    $region21: #{crw_forward.3} parent=5 // pred_check
      _
    $region22: #{crw_forward.3} parent=5 // pred_check_branch
      %91 = sbr.rel (%p88) target = $region24
    $region23: #{crw_forward.3} parent=5 // pred_region
      %s92 = ssub.s32 %s7, 1
      %p93 = scmp.lt.s32.totalorder %s12, 1
      %s94 = scalar_select %p93, %s12, 1
      %s95 = smul.addr %s94, 8
      %s96 = smul.addr %s95, 8
      %s97 = scalar_lea.vmem %s0, %s96
      %p98 = pneg %p33
      %p99 = pneg %p30
      %p100 = pneg %p59
      %p101 = pneg %p56
      %p102 = scmp.lt.s32.totalorder %s12, 1
      %s103 = scalar_select %p102, %s12, 1
      %s104 = smul.addr %s103, 2
      %s105 = scalar_lea.vmem %s1, %s104
      %p106 = scmp.lt.s32.totalorder %s12, 1
      %s107 = scalar_select %p106, %s12, 1
      %s108 = smul.addr %s107, 8
      %s109 = smul.addr %s108, 8
      %s110 = scalar_lea.vmem %s0, %s109
      %p111 = scmp.lt.s32.totalorder %s12, 1
      %s112 = scalar_select %p111, %s12, 1
      %s113 = smul.addr %s112, 2
      %s114 = scalar_lea.vmem %s1, %s113
      %v115 = vld [vmem:[%s110] sm:$0xff]
      %v116 = vld [vmem:[%s110 + $0x8] sm:$0xff]
      %v117 = vld [vmem:[%s110 + $0x10] sm:$0xff]
      %v118 = vld [vmem:[%s110 + $0x18] sm:$0xff]
      %v119 = vld [vmem:[%s110 + $0x20] sm:$0xff]
      %v120 = vld [vmem:[%s110 + $0x28] sm:$0xff]
      %v121 = vld [vmem:[%s110 + $0x30] sm:$0xff]
      %v122 = vld [vmem:[%s110 + $0x38] sm:$0xff]
      %123 = vmatprep.subr.mxu0 0.0
      %124 = vmatpush1.xpose.msra.mxu0 0.0
      %125 = vmatprep.subr.mxu0 0.0
      %126 = vmatpush1.xpose.msra.mxu0 0.0
      %127 = vmatprep.subr.mxu0 0.0
      %128 = vmatpush1.xpose.msra.mxu0 0.0
      %129 = vmatprep.subr.mxu0 0.0
      %130 = vmatpush1.xpose.msra.mxu0 0.0
      %131 = vmatprep.subr.mxu0 0.0
      %132 = vmatpush1.xpose.msra.mxu0 0.0
      %133 = vmatprep.subr.mxu0 0.0
      %134 = vmatpush1.xpose.msra.mxu0 0.0
      %135 = vmatprep.subr.mxu0 0.0
      %136 = vmatpush1.xpose.msra.mxu0 0.0
      %137 = vmatprep.subr.mxu0 0.0
      %138 = vmatpush1.xpose.msra.mxu0 0.0
      %139 = vmatprep.subr.mxu0 0.0
      %140 = vmatpush1.xpose.msra.mxu0 %v122
      %141 = vmatprep.subr.mxu0 0.0
      %142 = vmatpush1.xpose.msra.mxu0 %v121
      %143 = vmatprep.subr.mxu0 0.0
      %144 = vmatpush1.xpose.msra.mxu0 %v120
      %145 = vmatprep.subr.mxu0 0.0
      %146 = vmatpush1.xpose.msra.mxu0 %v119
      %147 = vmatprep.subr.mxu0 0.0
      %148 = vmatpush1.xpose.msra.mxu0 %v118
      %149 = vmatprep.subr.mxu0 0.0
      %150 = vmatpush1.xpose.msra.mxu0 %v117
      %151 = vmatprep.subr.mxu0 0.0
      %152 = vmatpush1.xpose.msra.mxu0 %v116
      %153 = vmatprep.subr.mxu0 0.0
      %154 = vmatpush1.xpose.msra.mxu0 %v115
      %155 = vmatprep.subr.mxu0 0.0
      %156 = vmatpush2.xpose.msra.mxu0 0.0
      %157 = vmatprep.subr.mxu0 0.0
      %158 = vmatpush2.xpose.msra.mxu0 0.0
      %159 = vmatprep.subr.mxu0 0.0
      %160 = vmatpush2.xpose.msra.mxu0 0.0
      %161 = vmatprep.subr.mxu0 0.0
      %162 = vmatpush2.xpose.msra.mxu0 0.0
      %163 = vmatprep.subr.mxu0 0.0
      %164 = vmatpush2.xpose.msra.mxu0 0.0
      %165 = vmatprep.subr.mxu0 0.0
      %166 = vmatpush2.xpose.msra.mxu0 0.0
      %167 = vmatprep.subr.mxu0 0.0
      %168 = vmatpush2.xpose.msra.mxu0 0.0
      %169 = vmatprep.subr.mxu0 0.0
      %170 = vmatpush2.xpose.msra.mxu0 0.0
      %171 = vmatprep.subr.mxu0 0.0
      %172 = vmatpush2.xpose.msra.mxu0 0.0
      %173 = vmatprep.subr.mxu0 0.0
      %174 = vmatpush2.xpose.msra.mxu0 0.0
      %175 = vmatprep.subr.mxu0 0.0
      %176 = vmatpush2.xpose.msra.mxu0 0.0
      %177 = vmatprep.subr.mxu0 0.0
      %178 = vmatpush2.xpose.msra.mxu0 0.0
      %179 = vmatprep.subr.mxu0 0.0
      %180 = vmatpush2.xpose.msra.mxu0 0.0
      %181 = vmatprep.subr.mxu0 0.0
      %182 = vmatpush2.xpose.msra.mxu0 0.0
      %183 = vmatprep.subr.mxu0 0.0
      %184 = vmatpush2.xpose.msra.mxu0 0.0
      %185 = vmatprep.subr.mxu0 0.0
      %186 = vmatpush2.xpose.msra.mxu0 0.0
      %187 = vmatprep.mubr.f32.mxu0 0.0
      %188 = vmatmul.mubr.f32.gmra.mxu0 %v115
      %v189 = vpop.f32.mrf.mxu0
      %v190 = vadd.f32 0.0, %v189
      %v191 = vpop.f32.mrf.mxu0
      %192 = vmatprep.mubr.f32.mxu0 0.0
      %193 = vmatmul.mubr.f32.gmra.mxu0 %v116
      %v194 = vpop.f32.mrf.mxu0
      %v195 = vadd.f32 0.0, %v194
      %v196 = vpop.f32.mrf.mxu0
      %197 = vmatprep.mubr.f32.mxu0 0.0
      %198 = vmatmul.mubr.f32.gmra.mxu0 %v117
      %v199 = vpop.f32.mrf.mxu0
      %v200 = vadd.f32 0.0, %v199
      %v201 = vpop.f32.mrf.mxu0
      %202 = vmatprep.mubr.f32.mxu0 0.0
      %203 = vmatmul.mubr.f32.gmra.mxu0 %v118
      %v204 = vpop.f32.mrf.mxu0
      %v205 = vadd.f32 0.0, %v204
      %v206 = vpop.f32.mrf.mxu0
      %207 = vmatprep.mubr.f32.mxu0 0.0
      %208 = vmatmul.mubr.f32.gmra.mxu0 %v119
      %v209 = vpop.f32.mrf.mxu0
      %v210 = vadd.f32 0.0, %v209
      %v211 = vpop.f32.mrf.mxu0
      %212 = vmatprep.mubr.f32.mxu0 0.0
      %213 = vmatmul.mubr.f32.gmra.mxu0 %v120
      %v214 = vpop.f32.mrf.mxu0
      %v215 = vadd.f32 0.0, %v214
      %v216 = vpop.f32.mrf.mxu0
      %217 = vmatprep.mubr.f32.mxu0 0.0
      %218 = vmatmul.mubr.f32.gmra.mxu0 %v121
      %v219 = vpop.f32.mrf.mxu0
      %v220 = vpop.f32.mrf.mxu0
      %221 = vmatprep.mubr.f32.mxu0 0.0
      %222 = vmatmul.mubr.f32.gmra.mxu0 %v122
      %v223 = vpop.f32.mrf.mxu0
      %v224 = vpop.f32.mrf.mxu0
      %225 = vdwg.mxu0
      %228 = vrot.lane.b32.xlu0 %v200, 112
      %v229 = vpop.permute.xlu0 %228
      %230 = vrot.lane.b32.xlu0 %v205, 112
      %v231 = vpop.permute.xlu0 %230
      %236 = vrot.lane.b32.xlu0 %v210, 96
      %v237 = vpop.permute.xlu0 %236
      %238 = vrot.lane.b32.xlu0 %v215, 96
      %v239 = vpop.permute.xlu0 %238
      %v242 = vmul.f32 %v190, 14.285714
      %v243 = vmul.f32 %v195, 14.285714
      %v244 = vmul.f32 %v229, 14.285714
      %v245 = vmul.f32 %v231, 14.285714
      %v246 = vmul.f32 %v237, 14.285714
      %v247 = vmul.f32 %v239, 14.285714
      %vm248 = vcmask 261248
      %v249 = vsel %vm248, %v242, -inf
      %250 = vmax.xlane.f32.xlu0 %v249
      %v251 = vpop.xlane.xlu0 %250
      %v252 = vsel %vm248, %v243, -inf
      %253 = vmax.xlane.f32.xlu0 %v252
      %v254 = vpop.xlane.xlu0 %253
      %v255 = vsel %vm248, %v244, -inf
      %256 = vmax.xlane.f32.xlu0 %v255
      %v257 = vpop.xlane.xlu0 %256
      %v258 = vsel %vm248, %v245, -inf
      %259 = vmax.xlane.f32.xlu0 %v258
      %v260 = vpop.xlane.xlu0 %259
      %v261 = vsel %vm248, %v246, -inf
      %262 = vmax.xlane.f32.xlu0 %v261
      %v263 = vpop.xlane.xlu0 %262
      %v264 = vsel %vm248, %v247, -inf
      %265 = vmax.xlane.f32.xlu0 %v264
      %v266 = vpop.xlane.xlu0 %265
      %v267 = vsub.f32 %v242, %v251
      %v268 = vsub.f32 %v243, %v254
      %v269 = vsub.f32 %v244, %v257
      %v270 = vsub.f32 %v245, %v260
      %v271 = vsub.f32 %v246, %v263
      %v272 = vsub.f32 %v247, %v266
      %v273 = vmul.f32 %v267, 1.442695
      %v274 = vpow.pop %v273
      %v275 = vmul.f32 %v268, 1.442695
      %v276 = vpow.pop %v275
      %v277 = vmul.f32 %v269, 1.442695
      %v278 = vpow.pop %v277
      %v279 = vmul.f32 %v270, 1.442695
      %v280 = vpow.pop %v279
      %v281 = vmul.f32 %v271, 1.442695
      %v282 = vpow.pop %v281
      %v283 = vmul.f32 %v272, 1.442695
      %v284 = vpow.pop %v283
      %291 = vrot.lane.b32.xlu0 %v274, 112
      %v292 = vpop.permute.xlu0 %291
      %293 = vrot.lane.b32.xlu0 %v276, 112
      %v294 = vpop.permute.xlu0 %293
      %295 = vrot.lane.b32.xlu0 %v278, 112
      %v296 = vpop.permute.xlu0 %295
      %297 = vrot.lane.b32.xlu0 %v280, 112
      %v298 = vpop.permute.xlu0 %297
      %299 = vrot.lane.b32.xlu0 %v282, 112
      %v300 = vpop.permute.xlu0 %299
      %301 = vrot.lane.b32.xlu0 %v284, 112
      %v302 = vpop.permute.xlu0 %301
      %vm309 = vcmask 130048
      %v310 = vsel %vm309, %v292, 0.0
      %311 = vadd.xlane.f32.xlu0 %v310
      %v312 = vpop.xlane.xlu0 %311
      %v313 = vsel %vm309, %v294, 0.0
      %314 = vadd.xlane.f32.xlu0 %v313
      %v315 = vpop.xlane.xlu0 %314
      %v316 = vsel %vm309, %v296, 0.0
      %317 = vadd.xlane.f32.xlu0 %v316
      %v318 = vpop.xlane.xlu0 %317
      %v319 = vsel %vm309, %v298, 0.0
      %320 = vadd.xlane.f32.xlu0 %v319
      %v321 = vpop.xlane.xlu0 %320
      %v322 = vsel %vm309, %v300, 0.0
      %323 = vadd.xlane.f32.xlu0 %v322
      %v324 = vpop.xlane.xlu0 %323
      %v325 = vsel %vm309, %v302, 0.0
      %326 = vadd.xlane.f32.xlu0 %v325
      %v327 = vpop.xlane.xlu0 %326
      %v328 = vrcp.pop %v312
      %v329 = vmul.f32 %v274, %v328
      %v330 = vrcp.pop %v315
      %v331 = vmul.f32 %v276, %v330
      %v332 = vrcp.pop %v318
      %v333 = vmul.f32 %v278, %v332
      %v334 = vrcp.pop %v321
      %v335 = vmul.f32 %v280, %v334
      %v336 = vrcp.pop %v324
      %v337 = vmul.f32 %v282, %v336
      %v338 = vrcp.pop %v327
      %v339 = vmul.f32 %v284, %v338
      %v340 = vmax.f32 %v249, %v252
      %v341 = vrot.slane %v340, 4
      %v342 = vmax.f32 %v340, %v341
      %v343 = vrot.slane %v342, 2
      %v344 = vmax.f32 %v342, %v343
      %v345 = vrot.slane %v344, 1
      %v346 = vmax.f32 %v344, %v345
      %v347 = vmax.f32 %v255, %v258
      %v348 = vrot.slane %v347, 4
      %v349 = vmax.f32 %v347, %v348
      %v350 = vrot.slane %v349, 2
      %v351 = vmax.f32 %v349, %v350
      %v352 = vrot.slane %v351, 1
      %v353 = vmax.f32 %v351, %v352
      %v354 = vmax.f32 %v261, %v264
      %v355 = vrot.slane %v354, 4
      %v356 = vmax.f32 %v354, %v355
      %v357 = vrot.slane %v356, 2
      %v358 = vmax.f32 %v356, %v357
      %v359 = vrot.slane %v358, 1
      %v360 = vmax.f32 %v358, %v359
      %v361 = vsub.f32 %v242, %v346
      %v362 = vsub.f32 %v243, %v346
      %v363 = vsub.f32 %v244, %v353
      %v364 = vsub.f32 %v245, %v353
      %v365 = vsub.f32 %v246, %v360
      %v366 = vsub.f32 %v247, %v360
      %v367 = vmul.f32 %v361, 1.442695
      %v368 = vpow.pop %v367
      %v369 = vmul.f32 %v362, 1.442695
      %v370 = vpow.pop %v369
      %v371 = vmul.f32 %v363, 1.442695
      %v372 = vpow.pop %v371
      %v373 = vmul.f32 %v364, 1.442695
      %v374 = vpow.pop %v373
      %v375 = vmul.f32 %v365, 1.442695
      %v376 = vpow.pop %v375
      %v377 = vmul.f32 %v366, 1.442695
      %v378 = vpow.pop %v377
      %v379 = vsel %vm248, %v368, 0.0
      %v380 = vsel %vm248, %v370, 0.0
      %v381 = vadd.f32 %v379, %v380
      %v382 = vrot.slane %v381, 4
      %v383 = vadd.f32 %v381, %v382
      %v384 = vrot.slane %v383, 2
      %v385 = vadd.f32 %v383, %v384
      %v386 = vrot.slane %v385, 1
      %v387 = vadd.f32 %v385, %v386
      %v388 = vsel %vm248, %v372, 0.0
      %v389 = vsel %vm248, %v374, 0.0
      %v390 = vadd.f32 %v388, %v389
      %v391 = vrot.slane %v390, 4
      %v392 = vadd.f32 %v390, %v391
      %v393 = vrot.slane %v392, 2
      %v394 = vadd.f32 %v392, %v393
      %v395 = vrot.slane %v394, 1
      %v396 = vadd.f32 %v394, %v395
      %v397 = vsel %vm248, %v376, 0.0
      %v398 = vsel %vm248, %v378, 0.0
      %v399 = vadd.f32 %v397, %v398
      %v400 = vrot.slane %v399, 4
      %v401 = vadd.f32 %v399, %v400
      %v402 = vrot.slane %v401, 2
      %v403 = vadd.f32 %v401, %v402
      %v404 = vrot.slane %v403, 1
      %v405 = vadd.f32 %v403, %v404
      %v406 = vrcp.pop %v387
      %v407 = vmul.f32 %v368, %v406
      %v408 = vmul.f32 %v370, %v406
      %v409 = vrcp.pop %v396
      %v410 = vmul.f32 %v372, %v409
      %v411 = vmul.f32 %v374, %v409
      %v412 = vrcp.pop %v405
      %v413 = vmul.f32 %v376, %v412
      %v414 = vmul.f32 %v378, %v412
      %417 = vrot.lane.b32.xlu0 %v329, 112
      %v418 = vpop.permute.xlu0 %417
      %419 = vrot.lane.b32.xlu0 %v331, 112
      %v420 = vpop.permute.xlu0 %419
      %423 = vrot.lane.b32.xlu0 %v333, 112
      %v424 = vpop.permute.xlu0 %423
      %425 = vrot.lane.b32.xlu0 %v335, 112
      %v426 = vpop.permute.xlu0 %425
      %v429 = vsel %vm309, %v418, 0
      %v431 = vsel %vm309, %v420, 0
      %433 = vmatprep.subr.mxu0 0.0
      %434 = vmatpush1.msra.mxu0 0.0
      %435 = vmatprep.subr.mxu0 0.0
      %436 = vmatpush1.msra.mxu0 0.0
      %437 = vmatprep.subr.mxu0 0.0
      %438 = vmatpush1.msra.mxu0 0.0
      %439 = vmatprep.subr.mxu0 0.0
      %440 = vmatpush1.msra.mxu0 0.0
      %441 = vmatprep.subr.mxu0 0.0
      %442 = vmatpush1.msra.mxu0 0.0
      %443 = vmatprep.subr.mxu0 0.0
      %444 = vmatpush1.msra.mxu0 0.0
      %445 = vmatprep.subr.mxu0 0.0
      %446 = vmatpush1.msra.mxu0 0.0
      %447 = vmatprep.subr.mxu0 0.0
      %448 = vmatpush1.msra.mxu0 0.0
      %449 = vmatprep.subr.mxu0 0.0
      %450 = vmatpush1.msra.mxu0 0.0
      %451 = vmatprep.subr.mxu0 0.0
      %452 = vmatpush1.msra.mxu0 0.0
      %453 = vmatprep.subr.mxu0 0.0
      %454 = vmatpush1.msra.mxu0 0.0
      %455 = vmatprep.subr.mxu0 0.0
      %456 = vmatpush1.msra.mxu0 0.0
      %457 = vmatprep.subr.mxu0 0.0
      %458 = vmatpush1.msra.mxu0 0.0
      %459 = vmatprep.subr.mxu0 0.0
      %460 = vmatpush1.msra.mxu0 0.0
      %461 = vmatprep.subr.mxu0 0.0
      %462 = vmatpush1.msra.mxu0 %v426
      %463 = vmatprep.subr.mxu0 0.0
      %464 = vmatpush1.msra.mxu0 %v424
      %465 = vmatprep.subr.mxu0 0.0
      %466 = vmatpush2.msra.mxu0 0.0
      %467 = vmatprep.subr.mxu0 0.0
      %468 = vmatpush2.msra.mxu0 0.0
      %469 = vmatprep.subr.mxu0 0.0
      %470 = vmatpush2.msra.mxu0 0.0
      %471 = vmatprep.subr.mxu0 0.0
      %472 = vmatpush2.msra.mxu0 0.0
      %473 = vmatprep.subr.mxu0 0.0
      %474 = vmatpush2.msra.mxu0 0.0
      %475 = vmatprep.subr.mxu0 0.0
      %476 = vmatpush2.msra.mxu0 0.0
      %477 = vmatprep.subr.mxu0 0.0
      %478 = vmatpush2.msra.mxu0 0.0
      %479 = vmatprep.subr.mxu0 0.0
      %480 = vmatpush2.msra.mxu0 0.0
      %481 = vmatprep.subr.mxu0 0.0
      %482 = vmatpush2.msra.mxu0 0.0
      %483 = vmatprep.subr.mxu0 0.0
      %484 = vmatpush2.msra.mxu0 0.0
      %485 = vmatprep.subr.mxu0 0.0
      %486 = vmatpush2.msra.mxu0 0.0
      %487 = vmatprep.subr.mxu0 0.0
      %488 = vmatpush2.msra.mxu0 0.0
      %489 = vmatprep.subr.mxu0 0.0
      %490 = vmatpush2.msra.mxu0 0.0
      %491 = vmatprep.subr.mxu0 0.0
      %492 = vmatpush2.msra.mxu0 0.0
      %493 = vmatprep.subr.mxu0 0.0
      %494 = vmatpush2.msra.mxu0 0.0
      %495 = vmatprep.subr.mxu0 0.0
      %496 = vmatpush2.msra.mxu0 0.0
      %497 = vmatprep.mubr.f32.mxu0 0.0
      %498 = vmatmul.mubr.f32.gmra.mxu0 %v429
      %v499 = vpop.f32.mrf.mxu0
      %v500 = vadd.f32 0.0, %v499
      %v501 = vpop.f32.mrf.mxu0
      %502 = vmatprep.mubr.f32.mxu0 0.0
      %503 = vmatmul.mubr.f32.gmra.mxu0 %v431
      %v504 = vpop.f32.mrf.mxu0
      %v505 = vadd.f32 0.0, %v504
      %v506 = vpop.f32.mrf.mxu0
      %507 = vdwg.mxu0
      %510 = vrot.lane.b32.xlu0 %v407, 112
      %v511 = vpop.permute.xlu0 %510
      %512 = vrot.lane.b32.xlu0 %v408, 112
      %v513 = vpop.permute.xlu0 %512
      %516 = vrot.lane.b32.xlu0 %v410, 112
      %v517 = vpop.permute.xlu0 %516
      %518 = vrot.lane.b32.xlu0 %v411, 112
      %v519 = vpop.permute.xlu0 %518
      %v522 = vsel %vm309, %v511, 0
      %v524 = vsel %vm309, %v513, 0
      %526 = vmatprep.subr.mxu0 0.0
      %527 = vmatpush1.msra.mxu0 0.0
      %528 = vmatprep.subr.mxu0 0.0
      %529 = vmatpush1.msra.mxu0 0.0
      %530 = vmatprep.subr.mxu0 0.0
      %531 = vmatpush1.msra.mxu0 0.0
      %532 = vmatprep.subr.mxu0 0.0
      %533 = vmatpush1.msra.mxu0 0.0
      %534 = vmatprep.subr.mxu0 0.0
      %535 = vmatpush1.msra.mxu0 0.0
      %536 = vmatprep.subr.mxu0 0.0
      %537 = vmatpush1.msra.mxu0 0.0
      %538 = vmatprep.subr.mxu0 0.0
      %539 = vmatpush1.msra.mxu0 0.0
      %540 = vmatprep.subr.mxu0 0.0
      %541 = vmatpush1.msra.mxu0 0.0
      %542 = vmatprep.subr.mxu0 0.0
      %543 = vmatpush1.msra.mxu0 0.0
      %544 = vmatprep.subr.mxu0 0.0
      %545 = vmatpush1.msra.mxu0 0.0
      %546 = vmatprep.subr.mxu0 0.0
      %547 = vmatpush1.msra.mxu0 0.0
      %548 = vmatprep.subr.mxu0 0.0
      %549 = vmatpush1.msra.mxu0 0.0
      %550 = vmatprep.subr.mxu0 0.0
      %551 = vmatpush1.msra.mxu0 0.0
      %552 = vmatprep.subr.mxu0 0.0
      %553 = vmatpush1.msra.mxu0 0.0
      %554 = vmatprep.subr.mxu0 0.0
      %555 = vmatpush1.msra.mxu0 %v519
      %556 = vmatprep.subr.mxu0 0.0
      %557 = vmatpush1.msra.mxu0 %v517
      %558 = vmatprep.subr.mxu0 0.0
      %559 = vmatpush2.msra.mxu0 0.0
      %560 = vmatprep.subr.mxu0 0.0
      %561 = vmatpush2.msra.mxu0 0.0
      %562 = vmatprep.subr.mxu0 0.0
      %563 = vmatpush2.msra.mxu0 0.0
      %564 = vmatprep.subr.mxu0 0.0
      %565 = vmatpush2.msra.mxu0 0.0
      %566 = vmatprep.subr.mxu0 0.0
      %567 = vmatpush2.msra.mxu0 0.0
      %568 = vmatprep.subr.mxu0 0.0
      %569 = vmatpush2.msra.mxu0 0.0
      %570 = vmatprep.subr.mxu0 0.0
      %571 = vmatpush2.msra.mxu0 0.0
      %572 = vmatprep.subr.mxu0 0.0
      %573 = vmatpush2.msra.mxu0 0.0
      %574 = vmatprep.subr.mxu0 0.0
      %575 = vmatpush2.msra.mxu0 0.0
      %576 = vmatprep.subr.mxu0 0.0
      %577 = vmatpush2.msra.mxu0 0.0
      %578 = vmatprep.subr.mxu0 0.0
      %579 = vmatpush2.msra.mxu0 0.0
      %580 = vmatprep.subr.mxu0 0.0
      %581 = vmatpush2.msra.mxu0 0.0
      %582 = vmatprep.subr.mxu0 0.0
      %583 = vmatpush2.msra.mxu0 0.0
      %584 = vmatprep.subr.mxu0 0.0
      %585 = vmatpush2.msra.mxu0 0.0
      %586 = vmatprep.subr.mxu0 0.0
      %587 = vmatpush2.msra.mxu0 0.0
      %588 = vmatprep.subr.mxu0 0.0
      %589 = vmatpush2.msra.mxu0 0.0
      %590 = vmatprep.mubr.f32.mxu0 0.0
      %591 = vmatmul.mubr.f32.gmra.mxu0 %v522
      %v592 = vpop.f32.mrf.mxu0
      %v593 = vadd.f32 0.0, %v592
      %v594 = vpop.f32.mrf.mxu0
      %595 = vmatprep.mubr.f32.mxu0 0.0
      %596 = vmatmul.mubr.f32.gmra.mxu0 %v524
      %v597 = vpop.f32.mrf.mxu0
      %v598 = vadd.f32 0.0, %v597
      %v599 = vpop.f32.mrf.mxu0
      %600 = vdwg.mxu0
      %v602 = vsel %vm309, %v500, 0
      %v605 = vsel %vm309, %v505, 0
      %v608 = vsel %vm309, %v593, 0
      %v611 = vsel %vm309, %v598, 0
      %613 = vmatprep.subr.mxu0 0.0
      %614 = vmatpush1.xpose.msra.mxu0 0.0
      %615 = vmatprep.subr.mxu0 0.0
      %616 = vmatpush1.xpose.msra.mxu0 0.0
      %617 = vmatprep.subr.mxu0 0.0
      %618 = vmatpush1.xpose.msra.mxu0 0.0
      %619 = vmatprep.subr.mxu0 0.0
      %620 = vmatpush1.xpose.msra.mxu0 0.0
      %621 = vmatprep.subr.mxu0 0.0
      %622 = vmatpush1.xpose.msra.mxu0 0.0
      %623 = vmatprep.subr.mxu0 0.0
      %624 = vmatpush1.xpose.msra.mxu0 0.0
      %625 = vmatprep.subr.mxu0 0.0
      %626 = vmatpush1.xpose.msra.mxu0 0.0
      %627 = vmatprep.subr.mxu0 0.0
      %628 = vmatpush1.xpose.msra.mxu0 0.0
      %629 = vmatprep.subr.mxu0 0.0
      %630 = vmatpush1.xpose.msra.mxu0 0.0
      %631 = vmatprep.subr.mxu0 0.0
      %632 = vmatpush1.xpose.msra.mxu0 0.0
      %633 = vmatprep.subr.mxu0 0.0
      %634 = vmatpush1.xpose.msra.mxu0 0.0
      %635 = vmatprep.subr.mxu0 0.0
      %636 = vmatpush1.xpose.msra.mxu0 0.0
      %637 = vmatprep.subr.mxu0 0.0
      %638 = vmatpush1.xpose.msra.mxu0 0.0
      %639 = vmatprep.subr.mxu0 0.0
      %640 = vmatpush1.xpose.msra.mxu0 0.0
      %641 = vmatprep.subr.mxu0 0.0
      %642 = vmatpush1.xpose.msra.mxu0 %v611
      %643 = vmatprep.subr.mxu0 0.0
      %644 = vmatpush1.xpose.msra.mxu0 %v608
      %645 = vmatprep.subr.mxu0 0.0
      %646 = vmatpush2.xpose.msra.mxu0 0.0
      %647 = vmatprep.subr.mxu0 0.0
      %648 = vmatpush2.xpose.msra.mxu0 0.0
      %649 = vmatprep.subr.mxu0 0.0
      %650 = vmatpush2.xpose.msra.mxu0 0.0
      %651 = vmatprep.subr.mxu0 0.0
      %652 = vmatpush2.xpose.msra.mxu0 0.0
      %653 = vmatprep.subr.mxu0 0.0
      %654 = vmatpush2.xpose.msra.mxu0 0.0
      %655 = vmatprep.subr.mxu0 0.0
      %656 = vmatpush2.xpose.msra.mxu0 0.0
      %657 = vmatprep.subr.mxu0 0.0
      %658 = vmatpush2.xpose.msra.mxu0 0.0
      %659 = vmatprep.subr.mxu0 0.0
      %660 = vmatpush2.xpose.msra.mxu0 0.0
      %661 = vmatprep.subr.mxu0 0.0
      %662 = vmatpush2.xpose.msra.mxu0 0.0
      %663 = vmatprep.subr.mxu0 0.0
      %664 = vmatpush2.xpose.msra.mxu0 0.0
      %665 = vmatprep.subr.mxu0 0.0
      %666 = vmatpush2.xpose.msra.mxu0 0.0
      %667 = vmatprep.subr.mxu0 0.0
      %668 = vmatpush2.xpose.msra.mxu0 0.0
      %669 = vmatprep.subr.mxu0 0.0
      %670 = vmatpush2.xpose.msra.mxu0 0.0
      %671 = vmatprep.subr.mxu0 0.0
      %672 = vmatpush2.xpose.msra.mxu0 0.0
      %673 = vmatprep.subr.mxu0 0.0
      %674 = vmatpush2.xpose.msra.mxu0 0.0
      %675 = vmatprep.subr.mxu0 0.0
      %676 = vmatpush2.xpose.msra.mxu0 0.0
      %677 = vmatprep.mubr.f32.mxu0 0.0
      %678 = vmatmul.mubr.f32.gmra.mxu0 %v602
      %v679 = vpop.f32.mrf.mxu0
      %v680 = vadd.f32 0.0, %v679
      %v681 = vpop.f32.mrf.mxu0
      %682 = vmatprep.mubr.f32.mxu0 0.0
      %683 = vmatmul.mubr.f32.gmra.mxu0 %v605
      %v684 = vpop.f32.mrf.mxu0
      %v685 = vadd.f32 0.0, %v684
      %v686 = vpop.f32.mrf.mxu0
      %687 = vdwg.mxu0
      %690 = vrot.lane.b32.xlu0 %v337, 112
      %v691 = vpop.permute.xlu0 %690
      %692 = vrot.lane.b32.xlu0 %v339, 112
      %v693 = vpop.permute.xlu0 %692
      %696 = vmatprep.subr.mxu0 0.0
      %697 = vmatpush1.msra.mxu0 0.0
      %698 = vmatprep.subr.mxu0 0.0
      %699 = vmatpush1.msra.mxu0 0.0
      %700 = vmatprep.subr.mxu0 0.0
      %701 = vmatpush1.msra.mxu0 0.0
      %702 = vmatprep.subr.mxu0 0.0
      %703 = vmatpush1.msra.mxu0 0.0
      %704 = vmatprep.subr.mxu0 0.0
      %705 = vmatpush1.msra.mxu0 0.0
      %706 = vmatprep.subr.mxu0 0.0
      %707 = vmatpush1.msra.mxu0 0.0
      %708 = vmatprep.subr.mxu0 0.0
      %709 = vmatpush1.msra.mxu0 0.0
      %710 = vmatprep.subr.mxu0 0.0
      %711 = vmatpush1.msra.mxu0 0.0
      %712 = vmatprep.subr.mxu0 0.0
      %713 = vmatpush1.msra.mxu0 0.0
      %714 = vmatprep.subr.mxu0 0.0
      %715 = vmatpush1.msra.mxu0 0.0
      %716 = vmatprep.subr.mxu0 0.0
      %717 = vmatpush1.msra.mxu0 0.0
      %718 = vmatprep.subr.mxu0 0.0
      %719 = vmatpush1.msra.mxu0 0.0
      %720 = vmatprep.subr.mxu0 0.0
      %721 = vmatpush1.msra.mxu0 0.0
      %722 = vmatprep.subr.mxu0 0.0
      %723 = vmatpush1.msra.mxu0 0.0
      %724 = vmatprep.subr.mxu0 0.0
      %725 = vmatpush1.msra.mxu0 %v693
      %726 = vmatprep.subr.mxu0 0.0
      %727 = vmatpush1.msra.mxu0 %v691
      %728 = vmatprep.subr.mxu0 0.0
      %729 = vmatpush2.msra.mxu0 0.0
      %730 = vmatprep.subr.mxu0 0.0
      %731 = vmatpush2.msra.mxu0 0.0
      %732 = vmatprep.subr.mxu0 0.0
      %733 = vmatpush2.msra.mxu0 0.0
      %734 = vmatprep.subr.mxu0 0.0
      %735 = vmatpush2.msra.mxu0 0.0
      %736 = vmatprep.subr.mxu0 0.0
      %737 = vmatpush2.msra.mxu0 0.0
      %738 = vmatprep.subr.mxu0 0.0
      %739 = vmatpush2.msra.mxu0 0.0
      %740 = vmatprep.subr.mxu0 0.0
      %741 = vmatpush2.msra.mxu0 0.0
      %742 = vmatprep.subr.mxu0 0.0
      %743 = vmatpush2.msra.mxu0 0.0
      %744 = vmatprep.subr.mxu0 0.0
      %745 = vmatpush2.msra.mxu0 0.0
      %746 = vmatprep.subr.mxu0 0.0
      %747 = vmatpush2.msra.mxu0 0.0
      %748 = vmatprep.subr.mxu0 0.0
      %749 = vmatpush2.msra.mxu0 0.0
      %750 = vmatprep.subr.mxu0 0.0
      %751 = vmatpush2.msra.mxu0 0.0
      %752 = vmatprep.subr.mxu0 0.0
      %753 = vmatpush2.msra.mxu0 0.0
      %754 = vmatprep.subr.mxu0 0.0
      %755 = vmatpush2.msra.mxu0 0.0
      %756 = vmatprep.subr.mxu0 0.0
      %757 = vmatpush2.msra.mxu0 0.0
      %758 = vmatprep.subr.mxu0 0.0
      %759 = vmatpush2.msra.mxu0 0.0
      %760 = vmatprep.mubr.f32.mxu0 0.0
      %761 = vmatmul.mubr.f32.gmra.mxu0 %v602
      %v762 = vpop.f32.mrf.mxu0
      %v763 = vadd.f32 0.0, %v762
      %v764 = vpop.f32.mrf.mxu0
      %765 = vmatprep.mubr.f32.mxu0 0.0
      %766 = vmatmul.mubr.f32.gmra.mxu0 %v605
      %v767 = vpop.f32.mrf.mxu0
      %v768 = vadd.f32 0.0, %v767
      %v769 = vpop.f32.mrf.mxu0
      %770 = vdwg.mxu0
      %773 = vrot.lane.b32.xlu0 %v413, 112
      %v774 = vpop.permute.xlu0 %773
      %775 = vrot.lane.b32.xlu0 %v414, 112
      %v776 = vpop.permute.xlu0 %775
      %779 = vmatprep.subr.mxu0 0.0
      %780 = vmatpush1.msra.mxu0 0.0
      %781 = vmatprep.subr.mxu0 0.0
      %782 = vmatpush1.msra.mxu0 0.0
      %783 = vmatprep.subr.mxu0 0.0
      %784 = vmatpush1.msra.mxu0 0.0
      %785 = vmatprep.subr.mxu0 0.0
      %786 = vmatpush1.msra.mxu0 0.0
      %787 = vmatprep.subr.mxu0 0.0
      %788 = vmatpush1.msra.mxu0 0.0
      %789 = vmatprep.subr.mxu0 0.0
      %790 = vmatpush1.msra.mxu0 0.0
      %791 = vmatprep.subr.mxu0 0.0
      %792 = vmatpush1.msra.mxu0 0.0
      %793 = vmatprep.subr.mxu0 0.0
      %794 = vmatpush1.msra.mxu0 0.0
      %795 = vmatprep.subr.mxu0 0.0
      %796 = vmatpush1.msra.mxu0 0.0
      %797 = vmatprep.subr.mxu0 0.0
      %798 = vmatpush1.msra.mxu0 0.0
      %799 = vmatprep.subr.mxu0 0.0
      %800 = vmatpush1.msra.mxu0 0.0
      %801 = vmatprep.subr.mxu0 0.0
      %802 = vmatpush1.msra.mxu0 0.0
      %803 = vmatprep.subr.mxu0 0.0
      %804 = vmatpush1.msra.mxu0 0.0
      %805 = vmatprep.subr.mxu0 0.0
      %806 = vmatpush1.msra.mxu0 0.0
      %807 = vmatprep.subr.mxu0 0.0
      %808 = vmatpush1.msra.mxu0 %v776
      %809 = vmatprep.subr.mxu0 0.0
      %810 = vmatpush1.msra.mxu0 %v774
      %811 = vmatprep.subr.mxu0 0.0
      %812 = vmatpush2.msra.mxu0 0.0
      %813 = vmatprep.subr.mxu0 0.0
      %814 = vmatpush2.msra.mxu0 0.0
      %815 = vmatprep.subr.mxu0 0.0
      %816 = vmatpush2.msra.mxu0 0.0
      %817 = vmatprep.subr.mxu0 0.0
      %818 = vmatpush2.msra.mxu0 0.0
      %819 = vmatprep.subr.mxu0 0.0
      %820 = vmatpush2.msra.mxu0 0.0
      %821 = vmatprep.subr.mxu0 0.0
      %822 = vmatpush2.msra.mxu0 0.0
      %823 = vmatprep.subr.mxu0 0.0
      %824 = vmatpush2.msra.mxu0 0.0
      %825 = vmatprep.subr.mxu0 0.0
      %826 = vmatpush2.msra.mxu0 0.0
      %827 = vmatprep.subr.mxu0 0.0
      %828 = vmatpush2.msra.mxu0 0.0
      %829 = vmatprep.subr.mxu0 0.0
      %830 = vmatpush2.msra.mxu0 0.0
      %831 = vmatprep.subr.mxu0 0.0
      %832 = vmatpush2.msra.mxu0 0.0
      %833 = vmatprep.subr.mxu0 0.0
      %834 = vmatpush2.msra.mxu0 0.0
      %835 = vmatprep.subr.mxu0 0.0
      %836 = vmatpush2.msra.mxu0 0.0
      %837 = vmatprep.subr.mxu0 0.0
      %838 = vmatpush2.msra.mxu0 0.0
      %839 = vmatprep.subr.mxu0 0.0
      %840 = vmatpush2.msra.mxu0 0.0
      %841 = vmatprep.subr.mxu0 0.0
      %842 = vmatpush2.msra.mxu0 0.0
      %843 = vmatprep.mubr.f32.mxu0 0.0
      %844 = vmatmul.mubr.f32.gmra.mxu0 %v608
      %v845 = vpop.f32.mrf.mxu0
      %v846 = vadd.f32 0.0, %v845
      %v847 = vpop.f32.mrf.mxu0
      %848 = vmatprep.mubr.f32.mxu0 0.0
      %849 = vmatmul.mubr.f32.gmra.mxu0 %v611
      %v850 = vpop.f32.mrf.mxu0
      %v851 = vadd.f32 0.0, %v850
      %v852 = vpop.f32.mrf.mxu0
      %853 = vdwg.mxu0
      %v855 = vsel %vm309, %v763, 0
      %v858 = vsel %vm309, %v768, 0
      %v861 = vsel %vm309, %v846, 0
      %v864 = vsel %vm309, %v851, 0
      %866 = vmatprep.subr.mxu0 0.0
      %867 = vmatpush1.xpose.msra.mxu0 0.0
      %868 = vmatprep.subr.mxu0 0.0
      %869 = vmatpush1.xpose.msra.mxu0 0.0
      %870 = vmatprep.subr.mxu0 0.0
      %871 = vmatpush1.xpose.msra.mxu0 0.0
      %872 = vmatprep.subr.mxu0 0.0
      %873 = vmatpush1.xpose.msra.mxu0 0.0
      %874 = vmatprep.subr.mxu0 0.0
      %875 = vmatpush1.xpose.msra.mxu0 0.0
      %876 = vmatprep.subr.mxu0 0.0
      %877 = vmatpush1.xpose.msra.mxu0 0.0
      %878 = vmatprep.subr.mxu0 0.0
      %879 = vmatpush1.xpose.msra.mxu0 0.0
      %880 = vmatprep.subr.mxu0 0.0
      %881 = vmatpush1.xpose.msra.mxu0 0.0
      %882 = vmatprep.subr.mxu0 0.0
      %883 = vmatpush1.xpose.msra.mxu0 0.0
      %884 = vmatprep.subr.mxu0 0.0
      %885 = vmatpush1.xpose.msra.mxu0 0.0
      %886 = vmatprep.subr.mxu0 0.0
      %887 = vmatpush1.xpose.msra.mxu0 0.0
      %888 = vmatprep.subr.mxu0 0.0
      %889 = vmatpush1.xpose.msra.mxu0 0.0
      %890 = vmatprep.subr.mxu0 0.0
      %891 = vmatpush1.xpose.msra.mxu0 0.0
      %892 = vmatprep.subr.mxu0 0.0
      %893 = vmatpush1.xpose.msra.mxu0 0.0
      %894 = vmatprep.subr.mxu0 0.0
      %895 = vmatpush1.xpose.msra.mxu0 %v864
      %896 = vmatprep.subr.mxu0 0.0
      %897 = vmatpush1.xpose.msra.mxu0 %v861
      %898 = vmatprep.subr.mxu0 0.0
      %899 = vmatpush2.xpose.msra.mxu0 0.0
      %900 = vmatprep.subr.mxu0 0.0
      %901 = vmatpush2.xpose.msra.mxu0 0.0
      %902 = vmatprep.subr.mxu0 0.0
      %903 = vmatpush2.xpose.msra.mxu0 0.0
      %904 = vmatprep.subr.mxu0 0.0
      %905 = vmatpush2.xpose.msra.mxu0 0.0
      %906 = vmatprep.subr.mxu0 0.0
      %907 = vmatpush2.xpose.msra.mxu0 0.0
      %908 = vmatprep.subr.mxu0 0.0
      %909 = vmatpush2.xpose.msra.mxu0 0.0
      %910 = vmatprep.subr.mxu0 0.0
      %911 = vmatpush2.xpose.msra.mxu0 0.0
      %912 = vmatprep.subr.mxu0 0.0
      %913 = vmatpush2.xpose.msra.mxu0 0.0
      %914 = vmatprep.subr.mxu0 0.0
      %915 = vmatpush2.xpose.msra.mxu0 0.0
      %916 = vmatprep.subr.mxu0 0.0
      %917 = vmatpush2.xpose.msra.mxu0 0.0
      %918 = vmatprep.subr.mxu0 0.0
      %919 = vmatpush2.xpose.msra.mxu0 0.0
      %920 = vmatprep.subr.mxu0 0.0
      %921 = vmatpush2.xpose.msra.mxu0 0.0
      %922 = vmatprep.subr.mxu0 0.0
      %923 = vmatpush2.xpose.msra.mxu0 0.0
      %924 = vmatprep.subr.mxu0 0.0
      %925 = vmatpush2.xpose.msra.mxu0 0.0
      %926 = vmatprep.subr.mxu0 0.0
      %927 = vmatpush2.xpose.msra.mxu0 0.0
      %928 = vmatprep.subr.mxu0 0.0
      %929 = vmatpush2.xpose.msra.mxu0 0.0
      %930 = vmatprep.mubr.f32.mxu0 0.0
      %931 = vmatmul.mubr.f32.gmra.mxu0 %v855
      %v932 = vpop.f32.mrf.mxu0
      %v933 = vadd.f32 0.0, %v932
      %v934 = vpop.f32.mrf.mxu0
      %935 = vmatprep.mubr.f32.mxu0 0.0
      %936 = vmatmul.mubr.f32.gmra.mxu0 %v858
      %v937 = vpop.f32.mrf.mxu0
      %v938 = vadd.f32 0.0, %v937
      %v939 = vpop.f32.mrf.mxu0
      %940 = vdwg.mxu0
      %v941 = vadd.f32 %v680, 1e-20
      %v942 = vadd.f32 %v685, 1e-20
      %v943 = vadd.f32 %v933, 1e-20
      %v944 = vadd.f32 %v938, 1e-20
      %v945 = vlog2.pop %v941
      %v946 = vmul.f32 %v945, 0.6931472
      %v947 = vlog2.pop %v942
      %v948 = vmul.f32 %v947, 0.6931472
      %v949 = vlog2.pop %v943
      %v950 = vmul.f32 %v949, 0.6931472
      %v951 = vlog2.pop %v944
      %v952 = vmul.f32 %v951, 0.6931472
      %v953 = vsel %vm309, %v946, -inf
      %954 = vmax.xlane.f32.xlu0 %v953
      %v955 = vpop.xlane.xlu0 %954
      %v956 = vsel %vm309, %v948, -inf
      %957 = vmax.xlane.f32.xlu0 %v956
      %v958 = vpop.xlane.xlu0 %957
      %v959 = vsel %vm309, %v950, -inf
      %960 = vmax.xlane.f32.xlu0 %v959
      %v961 = vpop.xlane.xlu0 %960
      %v962 = vsel %vm309, %v952, -inf
      %963 = vmax.xlane.f32.xlu0 %v962
      %v964 = vpop.xlane.xlu0 %963
      %v965 = vsub.f32 %v946, %v955
      %v966 = vsub.f32 %v948, %v958
      %v967 = vsub.f32 %v950, %v961
      %v968 = vsub.f32 %v952, %v964
      %v969 = vmul.f32 %v965, 1.442695
      %v970 = vpow.pop %v969
      %v971 = vmul.f32 %v966, 1.442695
      %v972 = vpow.pop %v971
      %v973 = vmul.f32 %v967, 1.442695
      %v974 = vpow.pop %v973
      %v975 = vmul.f32 %v968, 1.442695
      %v976 = vpow.pop %v975
      %v977 = vsel %vm309, %v970, 0.0
      %978 = vadd.xlane.f32.xlu0 %v977
      %v979 = vpop.xlane.xlu0 %978
      %v980 = vsel %vm309, %v972, 0.0
      %981 = vadd.xlane.f32.xlu0 %v980
      %v982 = vpop.xlane.xlu0 %981
      %v983 = vsel %vm309, %v974, 0.0
      %984 = vadd.xlane.f32.xlu0 %v983
      %v985 = vpop.xlane.xlu0 %984
      %v986 = vsel %vm309, %v976, 0.0
      %987 = vadd.xlane.f32.xlu0 %v986
      %v988 = vpop.xlane.xlu0 %987
      %v989 = vlog2.pop %v979
      %v990 = vmul.f32 %v989, 0.6931472
      %v991 = vlog2.pop %v982
      %v992 = vmul.f32 %v991, 0.6931472
      %v993 = vlog2.pop %v985
      %v994 = vmul.f32 %v993, 0.6931472
      %v995 = vlog2.pop %v988
      %v996 = vmul.f32 %v995, 0.6931472
      %v997 = vadd.f32 %v990, %v955
      %v998 = vadd.f32 %v992, %v958
      %v999 = vadd.f32 %v994, %v961
      %v1000 = vadd.f32 %v996, %v964
      %v1001 = vlaneseq
      %v1002 = vshrl.u32 %v1001, 7
      %v1003 = vadd.s32 %v1002, 8
      %v1004 = vlaneseq
      %v1005 = vand.u32 %v1004, 127
      %vm1006 = vcmp.eq.s32.totalorder %v1002, %v1005
      %vm1007 = vcmp.eq.s32.totalorder %v1003, %v1005
      %v1008 = vsel %vm1006, 1, 0
      %v1009 = vsel %vm1007, 1, 0
      %vm1010 = vcmp.eq.s32.totalorder %v1008, 1
      %vm1011 = vcmp.eq.s32.totalorder %v1009, 1
      %v1012 = vsel %vm1010, %v946, 0.0
      %v1013 = vsel %vm1011, %v948, 0.0
      %v1014 = vsel %vm1010, %v950, 0.0
      %v1015 = vsel %vm1011, %v952, 0.0
      %v1016 = vsel %vm309, %v1012, 0.0
      %1017 = vadd.xlane.f32.xlu0 %v1016
      %v1018 = vpop.xlane.xlu0 %1017
      %v1019 = vsel %vm309, %v1013, 0.0
      %1020 = vadd.xlane.f32.xlu0 %v1019
      %v1021 = vpop.xlane.xlu0 %1020
      %v1022 = vsel %vm309, %v1014, 0.0
      %1023 = vadd.xlane.f32.xlu0 %v1022
      %v1024 = vpop.xlane.xlu0 %1023
      %v1025 = vsel %vm309, %v1015, 0.0
      %1026 = vadd.xlane.f32.xlu0 %v1025
      %v1027 = vpop.xlane.xlu0 %1026
      %v1028 = vcvt.s32.f32 %v1005
      %vm1029 = vcmp.ge.f32.partialorder %v946, %v955
      %vm1030 = vcmp.ge.f32.partialorder %v948, %v958
      %vm1031 = vcmp.ge.f32.partialorder %v950, %v961
      %vm1032 = vcmp.ge.f32.partialorder %v952, %v964
      %v1033 = vsel %vm1029, %v1028, 16.0
      %v1034 = vsel %vm1030, %v1028, 16.0
      %v1035 = vsel %vm1031, %v1028, 16.0
      %v1036 = vsel %vm1032, %v1028, 16.0
      %v1037 = vsel %vm309, %v1033, inf
      %1038 = vmin.xlane.f32.xlu0 %v1037
      %v1039 = vpop.xlane.xlu0 %1038
      %v1040 = vsel %vm309, %v1034, inf
      %1041 = vmin.xlane.f32.xlu0 %v1040
      %v1042 = vpop.xlane.xlu0 %1041
      %v1043 = vsel %vm309, %v1035, inf
      %1044 = vmin.xlane.f32.xlu0 %v1043
      %v1045 = vpop.xlane.xlu0 %1044
      %v1046 = vsel %vm309, %v1036, inf
      %1047 = vmin.xlane.f32.xlu0 %v1046
      %v1048 = vpop.xlane.xlu0 %1047
      %v1049 = vcvt.s32.f32 %v1002
      %v1050 = vcvt.s32.f32 %v1003
      %vm1051 = vcmp.eq.f32.partialorder %v1039, %v1049
      %vm1052 = vcmp.eq.f32.partialorder %v1042, %v1050
      %vm1053 = vcmp.eq.f32.partialorder %v1045, %v1049
      %vm1054 = vcmp.eq.f32.partialorder %v1048, %v1050
      %v1055 = vsel %vm1051, 1, 0
      %v1056 = vsel %vm1052, 1, 0
      %v1057 = vsel %vm1053, 1, 0
      %v1058 = vsel %vm1054, 1, 0
      %v1059 = vcvt.s32.f32 %v1055
      %v1060 = vcvt.s32.f32 %v1056
      %v1061 = vcvt.s32.f32 %v1057
      %v1062 = vcvt.s32.f32 %v1058
      %v1063 = vsub.f32 %v997, %v1018
      %v1064 = vsub.f32 %v998, %v1021
      %v1065 = vsub.f32 %v999, %v1024
      %v1066 = vsub.f32 %v1000, %v1027
      %v1067 = vadd.f32 %v1063, %v1064
      %v1068 = vrot.slane %v1067, 4
      %v1069 = vadd.f32 %v1067, %v1068
      %v1070 = vrot.slane %v1069, 2
      %v1071 = vadd.f32 %v1069, %v1070
      %v1072 = vrot.slane %v1071, 1
      %v1073 = vadd.f32 %v1071, %v1072
      %v1074 = vadd.f32 %v1065, %v1066
      %v1075 = vrot.slane %v1074, 4
      %v1076 = vadd.f32 %v1074, %v1075
      %v1077 = vrot.slane %v1076, 2
      %v1078 = vadd.f32 %v1076, %v1077
      %v1079 = vrot.slane %v1078, 1
      %v1080 = vadd.f32 %v1078, %v1079
      %v1081 = vmul.f32 %v1073, 0.0625
      %v1082 = vmul.f32 %v1080, 0.0625
      %v1083 = vadd.f32 %v1059, %v1060
      %v1084 = vrot.slane %v1083, 4
      %v1085 = vadd.f32 %v1083, %v1084
      %v1086 = vrot.slane %v1085, 2
      %v1087 = vadd.f32 %v1085, %v1086
      %v1088 = vrot.slane %v1087, 1
      %v1089 = vadd.f32 %v1087, %v1088
      %v1090 = vadd.f32 %v1061, %v1062
      %v1091 = vrot.slane %v1090, 4
      %v1092 = vadd.f32 %v1090, %v1091
      %v1093 = vrot.slane %v1092, 2
      %v1094 = vadd.f32 %v1092, %v1093
      %v1095 = vrot.slane %v1094, 1
      %v1096 = vadd.f32 %v1094, %v1095
      %v1097 = vmul.f32 %v1089, 0.0625
      %v1098 = vmul.f32 %v1096, 0.0625
      %vm1101 = vcmask 1041409
      %v1102 = vsel %vm1101, %v1082, %v1081
      %v1106 = vsel %vm1101, %v1098, %v1097
      %vm1108 = vcmask 7168
      %v1109 = vsel %vm1108, %v1102, %v1106
      %vm1110 = vcmask 9216
      %1111 = vst.msk [vmem:[%s114] sm:$0x3] %vm1110, %v1109
      %p1112 = scmp.lt.s32.totalorder %s12, 1
      %s1113 = scalar_select %p1112, %s12, 1
      %s1114 = smul.addr %s1113, 2
      %s1115 = scalar_lea.vmem %s1, %s1114
      // Predicated region
      $region25: #{crw_forward.3} parent=23 // pred_check
        %p1116 = pneg %p56
      $region26: #{crw_forward.3} parent=23 // pred_check_branch
        %1118 = sbr.rel (%p1116) target = $region28
      $region27: #{crw_forward.3} parent=23 // pred_region
        _
      $region28: #{crw_forward.3} parent=23 // pred_fallthru
        _
    $region24: #{crw_forward.3} parent=5 // pred_fallthru
      _
    %p1119 = scmp.le.s32.totalorder 2, %s7
    // Predicated region
    $region29: #{crw_forward.3} parent=5 // pred_check
      %p1120 = pneg %p1119
    $region30: #{crw_forward.3} parent=5 // pred_check_branch
      %1122 = sbr.rel (%p1120) target = $region32
    $region31: #{crw_forward.3} parent=5 // pred_region
      %s1123 = ssub.s32 %s7, 2
      // Predicated region
      $region33: #{crw_forward.3} parent=31 // pred_check
        %p1124 = pneg %p62
      $region34: #{crw_forward.3} parent=31 // pred_check_branch
        %1126 = sbr.rel (%p1124) target = $region36
      $region35: #{crw_forward.3} parent=31 // pred_region
        %p1127 = scmp.lt.s32.totalorder %s13, 1
        %s1128 = scalar_select %p1127, %s13, 1
        %s1129 = smul.addr %s1128, 2
        %s1130 = scalar_lea.vmem %s1, %s1129
      $region36: #{crw_forward.3} parent=31 // pred_fallthru
        _
    $region32: #{crw_forward.3} parent=5 // pred_fallthru
      _
  $region6: #{crw_forward.3} parent=0 // loop_footer
    %s11 = sadd.s32 1, %s7
  $region7: #{crw_forward.3} parent=0 // loop_footer_branch
    %6 = sbr.rel target = $region3
  $region8: #{crw_forward.3} parent=0 // loop_exit
    _

// kernel: crw_forward.2
$region0: #{crw_forward.2}
  #allocation0 [shape = 'u32[]', space=smem, size = 0x4, offset = 0x4, fixed_abs, tag = 'smem constant byte address 0x4 - core index']
  #allocation1 [shape = 'u32[144,128]{1,0:T(1,128)}', space=vmem, size = 0x12000, scoped, tag = 'internal scratch']
  %s0 = inlined_call_operand.vmem [shape: f32[128,768], index: 0, kind: input, shape index: {}]
  %s1 = inlined_call_operand.vmem [shape: f32[3,32,1], index: 1, kind: input, shape index: {}]
  %s2 = inlined_call_operand.vmem [shape: f32[1,32,1], index: 2, kind: input, shape index: {}]
  %s3 = inlined_call_operand.vmem [shape: f32[32,128], index: 3, kind: input, shape index: {}]
  %s4 = inlined_call_operand.vmem [shape: f32[1,128], index: 4, kind: input, shape index: {}]
  %s5 = inlined_call_operand.vmem [shape: f32[128,128], index: 5, kind: output, shape index: {}]
  %s6 = sld [smem:[#allocation0]]
  $region53: #{crw_forward.2} parent=0
    _
  %s8 = ssub.s32 1, %s6
  %s9 = scalar_select 0, %s8, %s6
  loop: start=0, step=1, limit=6
  $region2: #{crw_forward.2} parent=0 // loop_pre_header
    _
  $region3: #{crw_forward.2} parent=0 // loop_header
    %s11 = sphi 0, %s15
    %p12 = scmp.ge.s32.totalorder %s11, 6
    %s21 = sphi 0, %s23
    %s24 = sphi 0, %s21
    %s25 = sphi 0, %s24
    %s41 = sphi 0, %s25
    %s45 = sphi 0, %s45
    %s47 = sphi 0, %s45
    %s48 = sphi 0, %s47
    %s62 = sphi 0, %s48
    %s66 = sphi 0, %s66
    %s68 = sphi 0, %s66
    %s69 = sphi 0, %s68
    %s83 = sphi 0, %s69
    %s87 = sphi 0, %s87
    %s89 = sphi 0, %s87
    %s90 = sphi 0, %s89
    %s104 = sphi 0, %s90
    %s108 = sphi 0, %s108
    %s110 = sphi 0, %s108
    %s111 = sphi 0, %s110
    %s125 = sphi 0, %s111
    %s131 = sphi 0, %s133
    %s134 = sphi 0, %s131
    %s135 = sphi 0, %s134
    %s151 = sphi 0, %s135
  $region4: #{crw_forward.2} parent=0 // loop_header_branch
    %14 = sbr.rel (%p12) target = $region8
  $region5: #{crw_forward.2} parent=0 // loop_body
    %s16 = ssub.s32 %s11, 1
    %s17 = ssub.s32 %s11, 2
    %s18 = sadd.s32 %s11, 1
    %s19 = ssub.s32 %s11, %s18
    %p20 = scmp.eq.s32.totalorder %s19, 0
    %s22 = sadd.s32 %s21, 1
    %s23 = scalar_select %p20, %s21, %s22
    %p26 = pneg %p20
    %p27 = scmp.eq.s32.totalorder %s11, 3
    %p28 = por %p26, %p27
    %p29 = scmp.ne.s32.totalorder %s21, %s24
    %p30 = scmp.eq.s32.totalorder %s11, 0
    %p31 = por %p29, %p30
    %p32 = scmp.ne.s32.totalorder %s21, %s24
    %p33 = scmp.eq.s32.totalorder %s16, 3
    %p34 = por %p32, %p33
    %p35 = scmp.ne.s32.totalorder %s24, %s25
    %p36 = scmp.eq.s32.totalorder %s16, 0
    %p37 = por %p35, %p36
    %p38 = scmp.ne.s32.totalorder %s24, %s25
    %p39 = scmp.eq.s32.totalorder %s17, 3
    %p40 = por %p38, %p39
    %p42 = scmp.ne.s32.totalorder %s25, %s41
    %p43 = scmp.eq.s32.totalorder %s17, 0
    %p44 = por %p42, %p43
    %s46 = sadd.s32 %s45, 1
    %p49 = scmp.eq.s32.totalorder %s11, 3
    %p50 = scmp.ne.s32.totalorder %s45, %s47
    %p51 = scmp.eq.s32.totalorder %s11, 0
    %p52 = por %p50, %p51
    %p53 = scmp.ne.s32.totalorder %s45, %s47
    %p54 = scmp.eq.s32.totalorder %s16, 3
    %p55 = por %p53, %p54
    %p56 = scmp.ne.s32.totalorder %s47, %s48
    %p57 = scmp.eq.s32.totalorder %s16, 0
    %p58 = por %p56, %p57
    %p59 = scmp.ne.s32.totalorder %s47, %s48
    %p60 = scmp.eq.s32.totalorder %s17, 3
    %p61 = por %p59, %p60
    %p63 = scmp.ne.s32.totalorder %s48, %s62
    %p64 = scmp.eq.s32.totalorder %s17, 0
    %p65 = por %p63, %p64
    %s67 = sadd.s32 %s66, 1
    %p70 = scmp.eq.s32.totalorder %s11, 3
    %p71 = scmp.ne.s32.totalorder %s66, %s68
    %p72 = scmp.eq.s32.totalorder %s11, 0
    %p73 = por %p71, %p72
    %p74 = scmp.ne.s32.totalorder %s66, %s68
    %p75 = scmp.eq.s32.totalorder %s16, 3
    %p76 = por %p74, %p75
    %p77 = scmp.ne.s32.totalorder %s68, %s69
    %p78 = scmp.eq.s32.totalorder %s16, 0
    %p79 = por %p77, %p78
    %p80 = scmp.ne.s32.totalorder %s68, %s69
    %p81 = scmp.eq.s32.totalorder %s17, 3
    %p82 = por %p80, %p81
    %p84 = scmp.ne.s32.totalorder %s69, %s83
    %p85 = scmp.eq.s32.totalorder %s17, 0
    %p86 = por %p84, %p85
    %s88 = sadd.s32 %s87, 1
    %p91 = scmp.eq.s32.totalorder %s11, 3
    %p92 = scmp.ne.s32.totalorder %s87, %s89
    %p93 = scmp.eq.s32.totalorder %s11, 0
    %p94 = por %p92, %p93
    %p95 = scmp.ne.s32.totalorder %s87, %s89
    %p96 = scmp.eq.s32.totalorder %s16, 3
    %p97 = por %p95, %p96
    %p98 = scmp.ne.s32.totalorder %s89, %s90
    %p99 = scmp.eq.s32.totalorder %s16, 0
    %p100 = por %p98, %p99
    %p101 = scmp.ne.s32.totalorder %s89, %s90
    %p102 = scmp.eq.s32.totalorder %s17, 3
    %p103 = por %p101, %p102
    %p105 = scmp.ne.s32.totalorder %s90, %s104
    %p106 = scmp.eq.s32.totalorder %s17, 0
    %p107 = por %p105, %p106
    %s109 = sadd.s32 %s108, 1
    %p112 = scmp.eq.s32.totalorder %s11, 3
    %p113 = scmp.ne.s32.totalorder %s108, %s110
    %p114 = scmp.eq.s32.totalorder %s11, 0
    %p115 = por %p113, %p114
    %p116 = scmp.ne.s32.totalorder %s108, %s110
    %p117 = scmp.eq.s32.totalorder %s16, 3
    %p118 = por %p116, %p117
    %p119 = scmp.ne.s32.totalorder %s110, %s111
    %p120 = scmp.eq.s32.totalorder %s16, 0
    %p121 = por %p119, %p120
    %p122 = scmp.ne.s32.totalorder %s110, %s111
    %p123 = scmp.eq.s32.totalorder %s17, 3
    %p124 = por %p122, %p123
    %p126 = scmp.ne.s32.totalorder %s111, %s125
    %p127 = scmp.eq.s32.totalorder %s17, 0
    %p128 = por %p126, %p127
    %s129 = ssub.s32 %s11, %s18
    %p130 = scmp.eq.s32.totalorder %s129, 0
    %s132 = sadd.s32 %s131, 1
    %s133 = scalar_select %p130, %s131, %s132
    %p136 = pneg %p130
    %p137 = scmp.eq.s32.totalorder %s11, 3
    %p138 = por %p136, %p137
    %p139 = scmp.ne.s32.totalorder %s131, %s134
    %p140 = scmp.eq.s32.totalorder %s11, 0
    %p141 = por %p139, %p140
    %p142 = scmp.ne.s32.totalorder %s131, %s134
    %p143 = scmp.eq.s32.totalorder %s16, 3
    %p144 = por %p142, %p143
    %p145 = scmp.ne.s32.totalorder %s134, %s135
    %p146 = scmp.eq.s32.totalorder %s16, 0
    %p147 = por %p145, %p146
    %p148 = scmp.ne.s32.totalorder %s134, %s135
    %p149 = scmp.eq.s32.totalorder %s17, 3
    %p150 = por %p148, %p149
    %p152 = scmp.ne.s32.totalorder %s135, %s151
    %p153 = scmp.eq.s32.totalorder %s17, 0
    %p154 = por %p152, %p153
    %p155 = scmp.le.s32.totalorder 1, %s11
    %p156 = scmp.lt.s32.totalorder %s11, 5
    %p157 = pnand %p155, %p156
    %p158 = pneg %p157
    // Predicated region
    $region9: #{crw_forward.2} parent=5 // pred_check
      _
    $region10: #{crw_forward.2} parent=5 // pred_check_branch
      %160 = sbr.rel (%p157) target = $region12
    $region11: #{crw_forward.2} parent=5 // pred_region
      %s161 = ssub.s32 %s11, 1
      // Predicated region
      $region13: #{crw_forward.2} parent=11 // pred_check
        %p162 = pneg %p58
      $region14: #{crw_forward.2} parent=11 // pred_check_branch
        %164 = sbr.rel (%p162) target = $region16
      $region15: #{crw_forward.2} parent=11 // pred_region
        _
      $region16: #{crw_forward.2} parent=11 // pred_fallthru
        _
      // Predicated region
      $region17: #{crw_forward.2} parent=11 // pred_check
        %p165 = pneg %p79
      $region18: #{crw_forward.2} parent=11 // pred_check_branch
        %167 = sbr.rel (%p165) target = $region20
      $region19: #{crw_forward.2} parent=11 // pred_region
        _
      $region20: #{crw_forward.2} parent=11 // pred_fallthru
        _
      // Predicated region
      $region21: #{crw_forward.2} parent=11 // pred_check
        %p168 = pneg %p100
      $region22: #{crw_forward.2} parent=11 // pred_check_branch
        %170 = sbr.rel (%p168) target = $region24
      $region23: #{crw_forward.2} parent=11 // pred_region
        _
      $region24: #{crw_forward.2} parent=11 // pred_fallthru
        _
      // Predicated region
      $region25: #{crw_forward.2} parent=11 // pred_check
        %p171 = pneg %p121
      $region26: #{crw_forward.2} parent=11 // pred_check_branch
        %173 = sbr.rel (%p171) target = $region28
      $region27: #{crw_forward.2} parent=11 // pred_region
        _
      $region28: #{crw_forward.2} parent=11 // pred_fallthru
        _
    $region12: #{crw_forward.2} parent=5 // pred_fallthru
      _
    %p174 = scmp.lt.s32.totalorder %s11, 4
    // Predicated region
    $region29: #{crw_forward.2} parent=5 // pred_check
      %p175 = pneg %p174
    $region30: #{crw_forward.2} parent=5 // pred_check_branch
      %177 = sbr.rel (%p175) target = $region32
    $region31: #{crw_forward.2} parent=5 // pred_region
      // Predicated region
      $region33: #{crw_forward.2} parent=31 // pred_check
        %p178 = pneg %p31
      $region34: #{crw_forward.2} parent=31 // pred_check_branch
        %180 = sbr.rel (%p178) target = $region36
      $region35: #{crw_forward.2} parent=31 // pred_region
        %s181 = smul.u32 4, %s11
        %p182 = scmp.lt.s32.totalorder %s181, 15
        %s183 = scalar_select %p182, %s181, 15
        %s184 = smul.addr %s183, 6
        %s185 = smul.addr %s184, 8
        %s186 = scalar_lea.vmem %s0, %s185
        %s187 = smul.u32 4, %s11
      $region36: #{crw_forward.2} parent=31 // pred_fallthru
        _
    $region32: #{crw_forward.2} parent=5 // pred_fallthru
      _
    %p188 = scmp.le.s32.totalorder 1, %s11
    %p189 = scmp.lt.s32.totalorder %s11, 5
    %p190 = pnand %p188, %p189
    %p191 = pneg %p190
    // Predicated region
    $region37: #{crw_forward.2} parent=5 // pred_check
      _
    $region38: #{crw_forward.2} parent=5 // pred_check_branch
      %193 = sbr.rel (%p190) target = $region40
    $region39: #{crw_forward.2} parent=5 // pred_region
      %s194 = ssub.s32 %s11, 1
      %s195 = smul.u32 4, %s16
      %p196 = scmp.lt.s32.totalorder %s195, 15
      %s197 = scalar_select %p196, %s195, 15
      %s198 = smul.addr %s197, 6
      %s199 = smul.addr %s198, 8
      %s200 = scalar_lea.vmem %s0, %s199
      %p201 = pneg %p37
      %p202 = pneg %p34
      %p203 = pneg %p58
      %p204 = pneg %p55
      %p205 = pneg %p79
      %p206 = pneg %p76
      %p207 = pneg %p100
      %p208 = pneg %p97
      %p209 = pneg %p121
      %p210 = pneg %p118
      %p211 = pneg %p147
      %p212 = pneg %p144
      %s213 = smul.u32 4, %s16
      %p214 = scmp.lt.s32.totalorder %s213, 15
      %s215 = scalar_select %p214, %s213, 15
      %s216 = smul.addr %s215, 8
      %s217 = scalar_lea.vmem %s5, %s216
      %s218 = smul.u32 4, %s16
      %p219 = scmp.lt.s32.totalorder %s218, 15
      %s220 = scalar_select %p219, %s218, 15
      %s221 = smul.addr %s220, 6
      %s222 = smul.addr %s221, 8
      %s223 = scalar_lea.vmem %s0, %s222
      %s224 = smul.u32 4, %s16
      %s225 = smul.u32 4, %s16
      %p226 = scmp.lt.s32.totalorder %s225, 15
      %s227 = scalar_select %p226, %s225, 15
      %s228 = smul.addr %s227, 8
      %s229 = scalar_lea.vmem %s5, %s228
      %s230 = smul.u32 4, %s16
      %v231 = vld [vmem:[%s1] sm:$0xff]
      %v232 = vld [vmem:[%s1 + $0x8] sm:$0xff]
      %v233 = vld [vmem:[%s1 + $0x10] sm:$0xff]
      %v234 = vld [vmem:[%s1 + $0x18] sm:$0xff]
      %v235 = vld [vmem:[%s1 + $0x20] sm:$0xff]
      %v236 = vld [vmem:[%s1 + $0x28] sm:$0xff]
      %v237 = vld [vmem:[%s1 + $0x30] sm:$0xff]
      %v238 = vld [vmem:[%s1 + $0x38] sm:$0xff]
      %v239 = vld [vmem:[%s1 + $0x40] sm:$0xff]
      %v240 = vld [vmem:[%s1 + $0x48] sm:$0xff]
      %v241 = vld [vmem:[%s1 + $0x50] sm:$0xff]
      %v242 = vld [vmem:[%s1 + $0x58] sm:$0xff]
      %v243 = vld [vmem:[%s2] sm:$0xff]
      %v244 = vld [vmem:[%s2 + $0x8] sm:$0xff]
      %v245 = vld [vmem:[%s2 + $0x10] sm:$0xff]
      %v246 = vld [vmem:[%s2 + $0x18] sm:$0xff]
      %v247 = vld [vmem:[%s223] sm:$0xff]
      %v248 = vld [vmem:[%s223 + $0x8] sm:$0xff]
      %v249 = vld [vmem:[%s223 + $0x30] sm:$0xff]
      %v250 = vld [vmem:[%s223 + $0x38] sm:$0xff]
      %v251 = vld [vmem:[%s223 + $0x60] sm:$0xff]
      %v252 = vld [vmem:[%s223 + $0x68] sm:$0xff]
      %v253 = vld [vmem:[%s223 + $0x90] sm:$0xff]
      %v254 = vld [vmem:[%s223 + $0x98] sm:$0xff]
      %v255 = vld [vmem:[%s223 + $0x10] sm:$0xff]
      %v256 = vld [vmem:[%s223 + $0x18] sm:$0xff]
      %v257 = vld [vmem:[%s223 + $0x40] sm:$0xff]
      %v258 = vld [vmem:[%s223 + $0x48] sm:$0xff]
      %v259 = vld [vmem:[%s223 + $0x70] sm:$0xff]
      %v260 = vld [vmem:[%s223 + $0x78] sm:$0xff]
      %v261 = vld [vmem:[%s223 + $0xa0] sm:$0xff]
      %v262 = vld [vmem:[%s223 + $0xa8] sm:$0xff]
      %v263 = vld [vmem:[%s223 + $0x20] sm:$0xff]
      %v264 = vld [vmem:[%s223 + $0x28] sm:$0xff]
      %v265 = vld [vmem:[%s223 + $0x50] sm:$0xff]
      %v266 = vld [vmem:[%s223 + $0x58] sm:$0xff]
      %v267 = vld [vmem:[%s223 + $0x80] sm:$0xff]
      %v268 = vld [vmem:[%s223 + $0x88] sm:$0xff]
      %v269 = vld [vmem:[%s223 + $0xb0] sm:$0xff]
      %v270 = vld [vmem:[%s223 + $0xb8] sm:$0xff]
      %v279 = vcombine.low %v247, %v248
      %v280 = vcombine.high %v247, %v248
      %v282 = vunpack.c.l.s4 1966171168
      %v283 = vunpack.c.0.s8 %v282
      %v284 = vlaneseq
      %v285 = vshrl.u32 %v284, 7
      %v286 = vsub.s32 %v283, %v285
      %v287 = vrot.slane %v279, %v286
      %v289 = vunpack.c.l.s4 1966171168
      %v290 = vunpack.c.0.s8 %v289
      %v291 = vlaneseq
      %v292 = vshrl.u32 %v291, 7
      %v293 = vsub.s32 %v290, %v292
      %v294 = vrot.slane %v280, %v293
      %v295 = vcombine.high %v287, %v287
      %v296 = vcombine.high %v294, %v294
      %v298 = vunpack.c.l.s4 1966171168
      %v299 = vunpack.c.0.s8 %v298
      %v300 = vlaneseq
      %v301 = vshrl.u32 %v300, 7
      %v302 = vsub.s32 %v299, %v301
      %v303 = vrot.slane %v287, %v302
      %v305 = vunpack.c.l.s4 1966171168
      %v306 = vunpack.c.0.s8 %v305
      %v307 = vlaneseq
      %v308 = vshrl.u32 %v307, 7
      %v309 = vsub.s32 %v306, %v308
      %v310 = vrot.slane %v294, %v309
      %v312 = vunpack.c.l.s4 1966171168
      %v313 = vunpack.c.0.s8 %v312
      %v314 = vlaneseq
      %v315 = vshrl.u32 %v314, 7
      %v316 = vsub.s32 %v313, %v315
      %v317 = vrot.slane %v295, %v316
      %v319 = vunpack.c.l.s4 1966171168
      %v320 = vunpack.c.0.s8 %v319
      %v321 = vlaneseq
      %v322 = vshrl.u32 %v321, 7
      %v323 = vsub.s32 %v320, %v322
      %v324 = vrot.slane %v296, %v323
      %v325 = vcombine.high %v303, %v303
      %v326 = vcombine.high %v310, %v310
      %v327 = vcombine.high %v317, %v317
      %v328 = vcombine.high %v324, %v324
      %v329 = vcombine.low %v249, %v250
      %v330 = vcombine.high %v249, %v250
      %v332 = vunpack.c.l.s4 1966171168
      %v333 = vunpack.c.0.s8 %v332
      %v334 = vlaneseq
      %v335 = vshrl.u32 %v334, 7
      %v336 = vsub.s32 %v333, %v335
      %v337 = vrot.slane %v329, %v336
      %v339 = vunpack.c.l.s4 1966171168
      %v340 = vunpack.c.0.s8 %v339
      %v341 = vlaneseq
      %v342 = vshrl.u32 %v341, 7
      %v343 = vsub.s32 %v340, %v342
      %v344 = vrot.slane %v330, %v343
      %v345 = vcombine.high %v337, %v337
      %v346 = vcombine.high %v344, %v344
      %v348 = vunpack.c.l.s4 1966171168
      %v349 = vunpack.c.0.s8 %v348
      %v350 = vlaneseq
      %v351 = vshrl.u32 %v350, 7
      %v352 = vsub.s32 %v349, %v351
      %v353 = vrot.slane %v337, %v352
      %v355 = vunpack.c.l.s4 1966171168
      %v356 = vunpack.c.0.s8 %v355
      %v357 = vlaneseq
      %v358 = vshrl.u32 %v357, 7
      %v359 = vsub.s32 %v356, %v358
      %v360 = vrot.slane %v344, %v359
      %v362 = vunpack.c.l.s4 1966171168
      %v363 = vunpack.c.0.s8 %v362
      %v364 = vlaneseq
      %v365 = vshrl.u32 %v364, 7
      %v366 = vsub.s32 %v363, %v365
      %v367 = vrot.slane %v345, %v366
      %v369 = vunpack.c.l.s4 1966171168
      %v370 = vunpack.c.0.s8 %v369
      %v371 = vlaneseq
      %v372 = vshrl.u32 %v371, 7
      %v373 = vsub.s32 %v370, %v372
      %v374 = vrot.slane %v346, %v373
      %v375 = vcombine.high %v353, %v353
      %v376 = vcombine.high %v360, %v360
      %v377 = vcombine.high %v367, %v367
      %v378 = vcombine.high %v374, %v374
      %v379 = vcombine.low %v251, %v252
      %v380 = vcombine.high %v251, %v252
      %v382 = vunpack.c.l.s4 1966171168
      %v383 = vunpack.c.0.s8 %v382
      %v384 = vlaneseq
      %v385 = vshrl.u32 %v384, 7
      %v386 = vsub.s32 %v383, %v385
      %v387 = vrot.slane %v379, %v386
      %v389 = vunpack.c.l.s4 1966171168
      %v390 = vunpack.c.0.s8 %v389
      %v391 = vlaneseq
      %v392 = vshrl.u32 %v391, 7
      %v393 = vsub.s32 %v390, %v392
      %v394 = vrot.slane %v380, %v393
      %v395 = vcombine.high %v387, %v387
      %v396 = vcombine.high %v394, %v394
      %v398 = vunpack.c.l.s4 1966171168
      %v399 = vunpack.c.0.s8 %v398
      %v400 = vlaneseq
      %v401 = vshrl.u32 %v400, 7
      %v402 = vsub.s32 %v399, %v401
      %v403 = vrot.slane %v387, %v402
      %v405 = vunpack.c.l.s4 1966171168
      %v406 = vunpack.c.0.s8 %v405
      %v407 = vlaneseq
      %v408 = vshrl.u32 %v407, 7
      %v409 = vsub.s32 %v406, %v408
      %v410 = vrot.slane %v394, %v409
      %v412 = vunpack.c.l.s4 1966171168
      %v413 = vunpack.c.0.s8 %v412
      %v414 = vlaneseq
      %v415 = vshrl.u32 %v414, 7
      %v416 = vsub.s32 %v413, %v415
      %v417 = vrot.slane %v395, %v416
      %v419 = vunpack.c.l.s4 1966171168
      %v420 = vunpack.c.0.s8 %v419
      %v421 = vlaneseq
      %v422 = vshrl.u32 %v421, 7
      %v423 = vsub.s32 %v420, %v422
      %v424 = vrot.slane %v396, %v423
      %v425 = vcombine.high %v403, %v403
      %v426 = vcombine.high %v410, %v410
      %v427 = vcombine.high %v417, %v417
      %v428 = vcombine.high %v424, %v424
      %v429 = vcombine.low %v253, %v254
      %v430 = vcombine.high %v253, %v254
      %v432 = vunpack.c.l.s4 1966171168
      %v433 = vunpack.c.0.s8 %v432
      %v434 = vlaneseq
      %v435 = vshrl.u32 %v434, 7
      %v436 = vsub.s32 %v433, %v435
      %v437 = vrot.slane %v429, %v436
      %v439 = vunpack.c.l.s4 1966171168
      %v440 = vunpack.c.0.s8 %v439
      %v441 = vlaneseq
      %v442 = vshrl.u32 %v441, 7
      %v443 = vsub.s32 %v440, %v442
      %v444 = vrot.slane %v430, %v443
      %v445 = vcombine.high %v437, %v437
      %v446 = vcombine.high %v444, %v444
      %v448 = vunpack.c.l.s4 1966171168
      %v449 = vunpack.c.0.s8 %v448
      %v450 = vlaneseq
      %v451 = vshrl.u32 %v450, 7
      %v452 = vsub.s32 %v449, %v451
      %v453 = vrot.slane %v437, %v452
      %v455 = vunpack.c.l.s4 1966171168
      %v456 = vunpack.c.0.s8 %v455
      %v457 = vlaneseq
      %v458 = vshrl.u32 %v457, 7
      %v459 = vsub.s32 %v456, %v458
      %v460 = vrot.slane %v444, %v459
      %v462 = vunpack.c.l.s4 1966171168
      %v463 = vunpack.c.0.s8 %v462
      %v464 = vlaneseq
      %v465 = vshrl.u32 %v464, 7
      %v466 = vsub.s32 %v463, %v465
      %v467 = vrot.slane %v445, %v466
      %v469 = vunpack.c.l.s4 1966171168
      %v470 = vunpack.c.0.s8 %v469
      %v471 = vlaneseq
      %v472 = vshrl.u32 %v471, 7
      %v473 = vsub.s32 %v470, %v472
      %v474 = vrot.slane %v446, %v473
      %v475 = vcombine.high %v453, %v453
      %v476 = vcombine.high %v460, %v460
      %v477 = vcombine.high %v467, %v467
      %v478 = vcombine.high %v474, %v474
      %v479 = vlaneseq
      %v480 = vshrl.u32 %v479, 7
      %v481 = vsub.s32 0, %v480
      %v482 = vrot.slane %v303, %v481
      %v483 = vlaneseq
      %v484 = vshrl.u32 %v483, 7
      %v485 = vsub.s32 1, %v484
      %v486 = vrot.slane %v303, %v485
      %v487 = vlaneseq
      %v488 = vshrl.u32 %v487, 7
      %v489 = vsub.s32 0, %v488
      %v490 = vrot.slane %v317, %v489
      %v491 = vlaneseq
      %v492 = vshrl.u32 %v491, 7
      %v493 = vsub.s32 1, %v492
      %v494 = vrot.slane %v317, %v493
      %v495 = vlaneseq
      %v496 = vshrl.u32 %v495, 7
      %v497 = vsub.s32 0, %v496
      %v498 = vrot.slane %v325, %v497
      %v499 = vlaneseq
      %v500 = vshrl.u32 %v499, 7
      %v501 = vsub.s32 1, %v500
      %v502 = vrot.slane %v325, %v501
      %v503 = vlaneseq
      %v504 = vshrl.u32 %v503, 7
      %v505 = vsub.s32 0, %v504
      %v506 = vrot.slane %v327, %v505
      %v507 = vlaneseq
      %v508 = vshrl.u32 %v507, 7
      %v509 = vsub.s32 1, %v508
      %v510 = vrot.slane %v327, %v509
      %v511 = vlaneseq
      %v512 = vshrl.u32 %v511, 7
      %v513 = vsub.s32 0, %v512
      %v514 = vrot.slane %v310, %v513
      %v515 = vlaneseq
      %v516 = vshrl.u32 %v515, 7
      %v517 = vsub.s32 1, %v516
      %v518 = vrot.slane %v310, %v517
      %v519 = vlaneseq
      %v520 = vshrl.u32 %v519, 7
      %v521 = vsub.s32 0, %v520
      %v522 = vrot.slane %v324, %v521
      %v523 = vlaneseq
      %v524 = vshrl.u32 %v523, 7
      %v525 = vsub.s32 1, %v524
      %v526 = vrot.slane %v324, %v525
      %v527 = vlaneseq
      %v528 = vshrl.u32 %v527, 7
      %v529 = vsub.s32 0, %v528
      %v530 = vrot.slane %v326, %v529
      %v531 = vlaneseq
      %v532 = vshrl.u32 %v531, 7
      %v533 = vsub.s32 1, %v532
      %v534 = vrot.slane %v326, %v533
      %v535 = vlaneseq
      %v536 = vshrl.u32 %v535, 7
      %v537 = vsub.s32 0, %v536
      %v538 = vrot.slane %v328, %v537
      %v539 = vlaneseq
      %v540 = vshrl.u32 %v539, 7
      %v541 = vsub.s32 1, %v540
      %v542 = vrot.slane %v328, %v541
      %v543 = vlaneseq
      %v544 = vshrl.u32 %v543, 7
      %v545 = vsub.s32 0, %v544
      %v546 = vrot.slane %v353, %v545
      %v547 = vlaneseq
      %v548 = vshrl.u32 %v547, 7
      %v549 = vsub.s32 1, %v548
      %v550 = vrot.slane %v353, %v549
      %v551 = vlaneseq
      %v552 = vshrl.u32 %v551, 7
      %v553 = vsub.s32 0, %v552
      %v554 = vrot.slane %v367, %v553
      %v555 = vlaneseq
      %v556 = vshrl.u32 %v555, 7
      %v557 = vsub.s32 1, %v556
      %v558 = vrot.slane %v367, %v557
      %v559 = vlaneseq
      %v560 = vshrl.u32 %v559, 7
      %v561 = vsub.s32 0, %v560
      %v562 = vrot.slane %v375, %v561
      %v563 = vlaneseq
      %v564 = vshrl.u32 %v563, 7
      %v565 = vsub.s32 1, %v564
      %v566 = vrot.slane %v375, %v565
      %v567 = vlaneseq
      %v568 = vshrl.u32 %v567, 7
      %v569 = vsub.s32 0, %v568
      %v570 = vrot.slane %v377, %v569
      %v571 = vlaneseq
      %v572 = vshrl.u32 %v571, 7
      %v573 = vsub.s32 1, %v572
      %v574 = vrot.slane %v377, %v573
      %v575 = vlaneseq
      %v576 = vshrl.u32 %v575, 7
      %v577 = vsub.s32 0, %v576
      %v578 = vrot.slane %v360, %v577
      %v579 = vlaneseq
      %v580 = vshrl.u32 %v579, 7
      %v581 = vsub.s32 1, %v580
      %v582 = vrot.slane %v360, %v581
      %v583 = vlaneseq
      %v584 = vshrl.u32 %v583, 7
      %v585 = vsub.s32 0, %v584
      %v586 = vrot.slane %v374, %v585
      %v587 = vlaneseq
      %v588 = vshrl.u32 %v587, 7
      %v589 = vsub.s32 1, %v588
      %v590 = vrot.slane %v374, %v589
      %v591 = vlaneseq
      %v592 = vshrl.u32 %v591, 7
      %v593 = vsub.s32 0, %v592
      %v594 = vrot.slane %v376, %v593
      %v595 = vlaneseq
      %v596 = vshrl.u32 %v595, 7
      %v597 = vsub.s32 1, %v596
      %v598 = vrot.slane %v376, %v597
      %v599 = vlaneseq
      %v600 = vshrl.u32 %v599, 7
      %v601 = vsub.s32 0, %v600
      %v602 = vrot.slane %v378, %v601
      %v603 = vlaneseq
      %v604 = vshrl.u32 %v603, 7
      %v605 = vsub.s32 1, %v604
      %v606 = vrot.slane %v378, %v605
      %v607 = vlaneseq
      %v608 = vshrl.u32 %v607, 7
      %v609 = vsub.s32 0, %v608
      %v610 = vrot.slane %v403, %v609
      %v611 = vlaneseq
      %v612 = vshrl.u32 %v611, 7
      %v613 = vsub.s32 1, %v612
      %v614 = vrot.slane %v403, %v613
      %v615 = vlaneseq
      %v616 = vshrl.u32 %v615, 7
      %v617 = vsub.s32 0, %v616
      %v618 = vrot.slane %v417, %v617
      %v619 = vlaneseq
      %v620 = vshrl.u32 %v619, 7
      %v621 = vsub.s32 1, %v620
      %v622 = vrot.slane %v417, %v621
      %v623 = vlaneseq
      %v624 = vshrl.u32 %v623, 7
      %v625 = vsub.s32 0, %v624
      %v626 = vrot.slane %v425, %v625
      %v627 = vlaneseq
      %v628 = vshrl.u32 %v627, 7
      %v629 = vsub.s32 1, %v628
      %v630 = vrot.slane %v425, %v629
      %v631 = vlaneseq
      %v632 = vshrl.u32 %v631, 7
      %v633 = vsub.s32 0, %v632
      %v634 = vrot.slane %v427, %v633
      %v635 = vlaneseq
      %v636 = vshrl.u32 %v635, 7
      %v637 = vsub.s32 1, %v636
      %v638 = vrot.slane %v427, %v637
      %v639 = vlaneseq
      %v640 = vshrl.u32 %v639, 7
      %v641 = vsub.s32 0, %v640
      %v642 = vrot.slane %v410, %v641
      %v643 = vlaneseq
      %v644 = vshrl.u32 %v643, 7
      %v645 = vsub.s32 1, %v644
      %v646 = vrot.slane %v410, %v645
      %v647 = vlaneseq
      %v648 = vshrl.u32 %v647, 7
      %v649 = vsub.s32 0, %v648
      %v650 = vrot.slane %v424, %v649
      %v651 = vlaneseq
      %v652 = vshrl.u32 %v651, 7
      %v653 = vsub.s32 1, %v652
      %v654 = vrot.slane %v424, %v653
      %v655 = vlaneseq
      %v656 = vshrl.u32 %v655, 7
      %v657 = vsub.s32 0, %v656
      %v658 = vrot.slane %v426, %v657
      %v659 = vlaneseq
      %v660 = vshrl.u32 %v659, 7
      %v661 = vsub.s32 1, %v660
      %v662 = vrot.slane %v426, %v661
      %v663 = vlaneseq
      %v664 = vshrl.u32 %v663, 7
      %v665 = vsub.s32 0, %v664
      %v666 = vrot.slane %v428, %v665
      %v667 = vlaneseq
      %v668 = vshrl.u32 %v667, 7
      %v669 = vsub.s32 1, %v668
      %v670 = vrot.slane %v428, %v669
      %v671 = vlaneseq
      %v672 = vshrl.u32 %v671, 7
      %v673 = vsub.s32 0, %v672
      %v674 = vrot.slane %v453, %v673
      %v675 = vlaneseq
      %v676 = vshrl.u32 %v675, 7
      %v677 = vsub.s32 1, %v676
      %v678 = vrot.slane %v453, %v677
      %v679 = vlaneseq
      %v680 = vshrl.u32 %v679, 7
      %v681 = vsub.s32 0, %v680
      %v682 = vrot.slane %v467, %v681
      %v683 = vlaneseq
      %v684 = vshrl.u32 %v683, 7
      %v685 = vsub.s32 1, %v684
      %v686 = vrot.slane %v467, %v685
      %v687 = vlaneseq
      %v688 = vshrl.u32 %v687, 7
      %v689 = vsub.s32 0, %v688
      %v690 = vrot.slane %v475, %v689
      %v691 = vlaneseq
      %v692 = vshrl.u32 %v691, 7
      %v693 = vsub.s32 1, %v692
      %v694 = vrot.slane %v475, %v693
      %v695 = vlaneseq
      %v696 = vshrl.u32 %v695, 7
      %v697 = vsub.s32 0, %v696
      %v698 = vrot.slane %v477, %v697
      %v699 = vlaneseq
      %v700 = vshrl.u32 %v699, 7
      %v701 = vsub.s32 1, %v700
      %v702 = vrot.slane %v477, %v701
      %v703 = vlaneseq
      %v704 = vshrl.u32 %v703, 7
      %v705 = vsub.s32 0, %v704
      %v706 = vrot.slane %v460, %v705
      %v707 = vlaneseq
      %v708 = vshrl.u32 %v707, 7
      %v709 = vsub.s32 1, %v708
      %v710 = vrot.slane %v460, %v709
      %v711 = vlaneseq
      %v712 = vshrl.u32 %v711, 7
      %v713 = vsub.s32 0, %v712
      %v714 = vrot.slane %v474, %v713
      %v715 = vlaneseq
      %v716 = vshrl.u32 %v715, 7
      %v717 = vsub.s32 1, %v716
      %v718 = vrot.slane %v474, %v717
      %v719 = vlaneseq
      %v720 = vshrl.u32 %v719, 7
      %v721 = vsub.s32 0, %v720
      %v722 = vrot.slane %v476, %v721
      %v723 = vlaneseq
      %v724 = vshrl.u32 %v723, 7
      %v725 = vsub.s32 1, %v724
      %v726 = vrot.slane %v476, %v725
      %v727 = vlaneseq
      %v728 = vshrl.u32 %v727, 7
      %v729 = vsub.s32 0, %v728
      %v730 = vrot.slane %v478, %v729
      %v731 = vlaneseq
      %v732 = vshrl.u32 %v731, 7
      %v733 = vsub.s32 1, %v732
      %v734 = vrot.slane %v478, %v733
      %800 = vset.pattern.permute.xlu0 0
      %801 = vperm.xlu0 %800, %v231
      %v802 = vpop.permute.xlu0 %801
      %805 = vset.pattern.permute.xlu0 0
      %806 = vperm.xlu0 %805, %v232
      %v807 = vpop.permute.xlu0 %806
      %810 = vset.pattern.permute.xlu0 0
      %811 = vperm.xlu0 %810, %v233
      %v812 = vpop.permute.xlu0 %811
      %815 = vset.pattern.permute.xlu0 0
      %816 = vperm.xlu0 %815, %v234
      %v817 = vpop.permute.xlu0 %816
      %v819 = vmul.f32 %v482, %v802
      %v820 = vmul.f32 %v486, %v802
      %v821 = vmul.f32 %v482, %v807
      %v822 = vmul.f32 %v486, %v807
      %v823 = vmul.f32 %v482, %v812
      %v824 = vmul.f32 %v486, %v812
      %v825 = vmul.f32 %v482, %v817
      %v826 = vmul.f32 %v486, %v817
      %v827 = vmul.f32 %v490, %v802
      %v828 = vmul.f32 %v494, %v802
      %v829 = vmul.f32 %v490, %v807
      %v830 = vmul.f32 %v494, %v807
      %v831 = vmul.f32 %v490, %v812
      %v832 = vmul.f32 %v494, %v812
      %v833 = vmul.f32 %v490, %v817
      %v834 = vmul.f32 %v494, %v817
      %v835 = vmul.f32 %v498, %v802
      %v836 = vmul.f32 %v502, %v802
      %v837 = vmul.f32 %v498, %v807
      %v838 = vmul.f32 %v502, %v807
      %v839 = vmul.f32 %v498, %v812
      %v840 = vmul.f32 %v502, %v812
      %v841 = vmul.f32 %v498, %v817
      %v842 = vmul.f32 %v502, %v817
      %v843 = vmul.f32 %v506, %v802
      %v844 = vmul.f32 %v510, %v802
      %v845 = vmul.f32 %v506, %v807
      %v846 = vmul.f32 %v510, %v807
      %v847 = vmul.f32 %v506, %v812
      %v848 = vmul.f32 %v510, %v812
      %v849 = vmul.f32 %v506, %v817
      %v850 = vmul.f32 %v510, %v817
      %v851 = vmul.f32 %v514, %v802
      %v852 = vmul.f32 %v518, %v802
      %v853 = vmul.f32 %v514, %v807
      %v854 = vmul.f32 %v518, %v807
      %v855 = vmul.f32 %v514, %v812
      %v856 = vmul.f32 %v518, %v812
      %v857 = vmul.f32 %v514, %v817
      %v858 = vmul.f32 %v518, %v817
      %v859 = vmul.f32 %v522, %v802
      %v860 = vmul.f32 %v526, %v802
      %v861 = vmul.f32 %v522, %v807
      %v862 = vmul.f32 %v526, %v807
      %v863 = vmul.f32 %v522, %v812
      %v864 = vmul.f32 %v526, %v812
      %v865 = vmul.f32 %v522, %v817
      %v866 = vmul.f32 %v526, %v817
      %v867 = vmul.f32 %v530, %v802
      %v868 = vmul.f32 %v534, %v802
      %v869 = vmul.f32 %v530, %v807
      %v870 = vmul.f32 %v534, %v807
      %v871 = vmul.f32 %v530, %v812
      %v872 = vmul.f32 %v534, %v812
      %v873 = vmul.f32 %v530, %v817
      %v874 = vmul.f32 %v534, %v817
      %v875 = vmul.f32 %v538, %v802
      %v876 = vmul.f32 %v542, %v802
      %v877 = vmul.f32 %v538, %v807
      %v878 = vmul.f32 %v542, %v807
      %v879 = vmul.f32 %v538, %v812
      %v880 = vmul.f32 %v542, %v812
      %v881 = vmul.f32 %v538, %v817
      %v882 = vmul.f32 %v542, %v817
      %v883 = vmul.f32 %v546, %v802
      %v884 = vmul.f32 %v550, %v802
      %v885 = vmul.f32 %v546, %v807
      %v886 = vmul.f32 %v550, %v807
      %v887 = vmul.f32 %v546, %v812
      %v888 = vmul.f32 %v550, %v812
      %v889 = vmul.f32 %v546, %v817
      %v890 = vmul.f32 %v550, %v817
      %v891 = vmul.f32 %v554, %v802
      %v892 = vmul.f32 %v558, %v802
      %v893 = vmul.f32 %v554, %v807
      %v894 = vmul.f32 %v558, %v807
      %v895 = vmul.f32 %v554, %v812
      %v896 = vmul.f32 %v558, %v812
      %v897 = vmul.f32 %v554, %v817
      %v898 = vmul.f32 %v558, %v817
      %v899 = vmul.f32 %v562, %v802
      %v900 = vmul.f32 %v566, %v802
      %v901 = vmul.f32 %v562, %v807
      %v902 = vmul.f32 %v566, %v807
      %v903 = vmul.f32 %v562, %v812
      %v904 = vmul.f32 %v566, %v812
      %v905 = vmul.f32 %v562, %v817
      %v906 = vmul.f32 %v566, %v817
      %v907 = vmul.f32 %v570, %v802
      %v908 = vmul.f32 %v574, %v802
      %v909 = vmul.f32 %v570, %v807
      %v910 = vmul.f32 %v574, %v807
      %v911 = vmul.f32 %v570, %v812
      %v912 = vmul.f32 %v574, %v812
      %v913 = vmul.f32 %v570, %v817
      %v914 = vmul.f32 %v574, %v817
      %v915 = vmul.f32 %v578, %v802
      %v916 = vmul.f32 %v582, %v802
      %v917 = vmul.f32 %v578, %v807
      %v918 = vmul.f32 %v582, %v807
      %v919 = vmul.f32 %v578, %v812
      %v920 = vmul.f32 %v582, %v812
      %v921 = vmul.f32 %v578, %v817
      %v922 = vmul.f32 %v582, %v817
      %v923 = vmul.f32 %v586, %v802
      %v924 = vmul.f32 %v590, %v802
      %v925 = vmul.f32 %v586, %v807
      %v926 = vmul.f32 %v590, %v807
      %v927 = vmul.f32 %v586, %v812
      %v928 = vmul.f32 %v590, %v812
      %v929 = vmul.f32 %v586, %v817
      %v930 = vmul.f32 %v590, %v817
      %v931 = vmul.f32 %v594, %v802
      %v932 = vmul.f32 %v598, %v802
      %v933 = vmul.f32 %v594, %v807
      %v934 = vmul.f32 %v598, %v807
      %v935 = vmul.f32 %v594, %v812
      %v936 = vmul.f32 %v598, %v812
      %v937 = vmul.f32 %v594, %v817
      %v938 = vmul.f32 %v598, %v817
      %v939 = vmul.f32 %v602, %v802
      %v940 = vmul.f32 %v606, %v802
      %v941 = vmul.f32 %v602, %v807
      %v942 = vmul.f32 %v606, %v807
      %v943 = vmul.f32 %v602, %v812
      %v944 = vmul.f32 %v606, %v812
      %v945 = vmul.f32 %v602, %v817
      %v946 = vmul.f32 %v606, %v817
      %v947 = vmul.f32 %v610, %v802
      %v948 = vmul.f32 %v614, %v802
      %v949 = vmul.f32 %v610, %v807
      %v950 = vmul.f32 %v614, %v807
      %v951 = vmul.f32 %v610, %v812
      %v952 = vmul.f32 %v614, %v812
      %v953 = vmul.f32 %v610, %v817
      %v954 = vmul.f32 %v614, %v817
      %v955 = vmul.f32 %v618, %v802
      %v956 = vmul.f32 %v622, %v802
      %v957 = vmul.f32 %v618, %v807
      %v958 = vmul.f32 %v622, %v807
      %v959 = vmul.f32 %v618, %v812
      %v960 = vmul.f32 %v622, %v812
      %v961 = vmul.f32 %v618, %v817
      %v962 = vmul.f32 %v622, %v817
      %v963 = vmul.f32 %v626, %v802
      %v964 = vmul.f32 %v630, %v802
      %v965 = vmul.f32 %v626, %v807
      %v966 = vmul.f32 %v630, %v807
      %v967 = vmul.f32 %v626, %v812
      %v968 = vmul.f32 %v630, %v812
      %v969 = vmul.f32 %v626, %v817
      %v970 = vmul.f32 %v630, %v817
      %v971 = vmul.f32 %v634, %v802
      %v972 = vmul.f32 %v638, %v802
      %v973 = vmul.f32 %v634, %v807
      %v974 = vmul.f32 %v638, %v807
      %v975 = vmul.f32 %v634, %v812
      %v976 = vmul.f32 %v638, %v812
      %v977 = vmul.f32 %v634, %v817
      %v978 = vmul.f32 %v638, %v817
      %v979 = vmul.f32 %v642, %v802
      %v980 = vmul.f32 %v646, %v802
      %v981 = vmul.f32 %v642, %v807
      %v982 = vmul.f32 %v646, %v807
      %v983 = vmul.f32 %v642, %v812
      %v984 = vmul.f32 %v646, %v812
      %v985 = vmul.f32 %v642, %v817
      %v986 = vmul.f32 %v646, %v817
      %v987 = vmul.f32 %v650, %v802
      %v988 = vmul.f32 %v654, %v802
      %v989 = vmul.f32 %v650, %v807
      %v990 = vmul.f32 %v654, %v807
      %v991 = vmul.f32 %v650, %v812
      %v992 = vmul.f32 %v654, %v812
      %v993 = vmul.f32 %v650, %v817
      %v994 = vmul.f32 %v654, %v817
      %v995 = vmul.f32 %v658, %v802
      %v996 = vmul.f32 %v662, %v802
      %v997 = vmul.f32 %v658, %v807
      %v998 = vmul.f32 %v662, %v807
      %v999 = vmul.f32 %v658, %v812
      %v1000 = vmul.f32 %v662, %v812
      %v1001 = vmul.f32 %v658, %v817
      %v1002 = vmul.f32 %v662, %v817
      %v1003 = vmul.f32 %v666, %v802
      %v1004 = vmul.f32 %v670, %v802
      %v1005 = vmul.f32 %v666, %v807
      %v1006 = vmul.f32 %v670, %v807
      %v1007 = vmul.f32 %v666, %v812
      %v1008 = vmul.f32 %v670, %v812
      %v1009 = vmul.f32 %v666, %v817
      %v1010 = vmul.f32 %v670, %v817
      %v1011 = vmul.f32 %v674, %v802
      %v1012 = vmul.f32 %v678, %v802
      %v1013 = vmul.f32 %v674, %v807
      %v1014 = vmul.f32 %v678, %v807
      %v1015 = vmul.f32 %v674, %v812
      %v1016 = vmul.f32 %v678, %v812
      %v1017 = vmul.f32 %v674, %v817
      %v1018 = vmul.f32 %v678, %v817
      %v1019 = vmul.f32 %v682, %v802
      %v1020 = vmul.f32 %v686, %v802
      %v1021 = vmul.f32 %v682, %v807
      %v1022 = vmul.f32 %v686, %v807
      %v1023 = vmul.f32 %v682, %v812
      %v1024 = vmul.f32 %v686, %v812
      %v1025 = vmul.f32 %v682, %v817
      %v1026 = vmul.f32 %v686, %v817
      %v1027 = vmul.f32 %v690, %v802
      %v1028 = vmul.f32 %v694, %v802
      %v1029 = vmul.f32 %v690, %v807
      %v1030 = vmul.f32 %v694, %v807
      %v1031 = vmul.f32 %v690, %v812
      %v1032 = vmul.f32 %v694, %v812
      %v1033 = vmul.f32 %v690, %v817
      %v1034 = vmul.f32 %v694, %v817
      %v1035 = vmul.f32 %v698, %v802
      %v1036 = vmul.f32 %v702, %v802
      %v1037 = vmul.f32 %v698, %v807
      %v1038 = vmul.f32 %v702, %v807
      %v1039 = vmul.f32 %v698, %v812
      %v1040 = vmul.f32 %v702, %v812
      %v1041 = vmul.f32 %v698, %v817
      %v1042 = vmul.f32 %v702, %v817
      %v1043 = vmul.f32 %v706, %v802
      %v1044 = vmul.f32 %v710, %v802
      %v1045 = vmul.f32 %v706, %v807
      %v1046 = vmul.f32 %v710, %v807
      %v1047 = vmul.f32 %v706, %v812
      %v1048 = vmul.f32 %v710, %v812
      %v1049 = vmul.f32 %v706, %v817
      %v1050 = vmul.f32 %v710, %v817
      %v1051 = vmul.f32 %v714, %v802
      %v1052 = vmul.f32 %v718, %v802
      %v1053 = vmul.f32 %v714, %v807
      %v1054 = vmul.f32 %v718, %v807
      %v1055 = vmul.f32 %v714, %v812
      %v1056 = vmul.f32 %v718, %v812
      %v1057 = vmul.f32 %v714, %v817
      %v1058 = vmul.f32 %v718, %v817
      %v1059 = vmul.f32 %v722, %v802
      %v1060 = vmul.f32 %v726, %v802
      %v1061 = vmul.f32 %v722, %v807
      %v1062 = vmul.f32 %v726, %v807
      %v1063 = vmul.f32 %v722, %v812
      %v1064 = vmul.f32 %v726, %v812
      %v1065 = vmul.f32 %v722, %v817
      %v1066 = vmul.f32 %v726, %v817
      %v1067 = vmul.f32 %v730, %v802
      %v1068 = vmul.f32 %v734, %v802
      %v1069 = vmul.f32 %v730, %v807
      %v1070 = vmul.f32 %v734, %v807
      %v1071 = vmul.f32 %v730, %v812
      %v1072 = vmul.f32 %v734, %v812
      %v1073 = vmul.f32 %v730, %v817
      %v1074 = vmul.f32 %v734, %v817
      %v1083 = vcombine.low %v255, %v256
      %v1084 = vcombine.high %v255, %v256
      %v1086 = vunpack.c.l.s4 1966171168
      %v1087 = vunpack.c.0.s8 %v1086
      %v1088 = vlaneseq
      %v1089 = vshrl.u32 %v1088, 7
      %v1090 = vsub.s32 %v1087, %v1089
      %v1091 = vrot.slane %v1083, %v1090
      %v1093 = vunpack.c.l.s4 1966171168
      %v1094 = vunpack.c.0.s8 %v1093
      %v1095 = vlaneseq
      %v1096 = vshrl.u32 %v1095, 7
      %v1097 = vsub.s32 %v1094, %v1096
      %v1098 = vrot.slane %v1084, %v1097
      %v1099 = vcombine.high %v1091, %v1091
      %v1100 = vcombine.high %v1098, %v1098
      %v1102 = vunpack.c.l.s4 1966171168
      %v1103 = vunpack.c.0.s8 %v1102
      %v1104 = vlaneseq
      %v1105 = vshrl.u32 %v1104, 7
      %v1106 = vsub.s32 %v1103, %v1105
      %v1107 = vrot.slane %v1091, %v1106
      %v1109 = vunpack.c.l.s4 1966171168
      %v1110 = vunpack.c.0.s8 %v1109
      %v1111 = vlaneseq
      %v1112 = vshrl.u32 %v1111, 7
      %v1113 = vsub.s32 %v1110, %v1112
      %v1114 = vrot.slane %v1098, %v1113
      %v1116 = vunpack.c.l.s4 1966171168
      %v1117 = vunpack.c.0.s8 %v1116
      %v1118 = vlaneseq
      %v1119 = vshrl.u32 %v1118, 7
      %v1120 = vsub.s32 %v1117, %v1119
      %v1121 = vrot.slane %v1099, %v1120
      %v1123 = vunpack.c.l.s4 1966171168
      %v1124 = vunpack.c.0.s8 %v1123
      %v1125 = vlaneseq
      %v1126 = vshrl.u32 %v1125, 7
      %v1127 = vsub.s32 %v1124, %v1126
      %v1128 = vrot.slane %v1100, %v1127
      %v1129 = vcombine.high %v1107, %v1107
      %v1130 = vcombine.high %v1114, %v1114
      %v1131 = vcombine.high %v1121, %v1121
      %v1132 = vcombine.high %v1128, %v1128
      %v1133 = vcombine.low %v257, %v258
      %v1134 = vcombine.high %v257, %v258
      %v1136 = vunpack.c.l.s4 1966171168
      %v1137 = vunpack.c.0.s8 %v1136
      %v1138 = vlaneseq
      %v1139 = vshrl.u32 %v1138, 7
      %v1140 = vsub.s32 %v1137, %v1139
      %v1141 = vrot.slane %v1133, %v1140
      %v1143 = vunpack.c.l.s4 1966171168
      %v1144 = vunpack.c.0.s8 %v1143
      %v1145 = vlaneseq
      %v1146 = vshrl.u32 %v1145, 7
      %v1147 = vsub.s32 %v1144, %v1146
      %v1148 = vrot.slane %v1134, %v1147
      %v1149 = vcombine.high %v1141, %v1141
      %v1150 = vcombine.high %v1148, %v1148
      %v1152 = vunpack.c.l.s4 1966171168
      %v1153 = vunpack.c.0.s8 %v1152
      %v1154 = vlaneseq
      %v1155 = vshrl.u32 %v1154, 7
      %v1156 = vsub.s32 %v1153, %v1155
      %v1157 = vrot.slane %v1141, %v1156
      %v1159 = vunpack.c.l.s4 1966171168
      %v1160 = vunpack.c.0.s8 %v1159
      %v1161 = vlaneseq
      %v1162 = vshrl.u32 %v1161, 7
      %v1163 = vsub.s32 %v1160, %v1162
      %v1164 = vrot.slane %v1148, %v1163
      %v1166 = vunpack.c.l.s4 1966171168
      %v1167 = vunpack.c.0.s8 %v1166
      %v1168 = vlaneseq
      %v1169 = vshrl.u32 %v1168, 7
      %v1170 = vsub.s32 %v1167, %v1169
      %v1171 = vrot.slane %v1149, %v1170
      %v1173 = vunpack.c.l.s4 1966171168
      %v1174 = vunpack.c.0.s8 %v1173
      %v1175 = vlaneseq
      %v1176 = vshrl.u32 %v1175, 7
      %v1177 = vsub.s32 %v1174, %v1176
      %v1178 = vrot.slane %v1150, %v1177
      %v1179 = vcombine.high %v1157, %v1157
      %v1180 = vcombine.high %v1164, %v1164
      %v1181 = vcombine.high %v1171, %v1171
      %v1182 = vcombine.high %v1178, %v1178
      %v1183 = vcombine.low %v259, %v260
      %v1184 = vcombine.high %v259, %v260
      %v1186 = vunpack.c.l.s4 1966171168
      %v1187 = vunpack.c.0.s8 %v1186
      %v1188 = vlaneseq
      %v1189 = vshrl.u32 %v1188, 7
      %v1190 = vsub.s32 %v1187, %v1189
      %v1191 = vrot.slane %v1183, %v1190
      %v1193 = vunpack.c.l.s4 1966171168
      %v1194 = vunpack.c.0.s8 %v1193
      %v1195 = vlaneseq
      %v1196 = vshrl.u32 %v1195, 7
      %v1197 = vsub.s32 %v1194, %v1196
      %v1198 = vrot.slane %v1184, %v1197
      %v1199 = vcombine.high %v1191, %v1191
      %v1200 = vcombine.high %v1198, %v1198
      %v1202 = vunpack.c.l.s4 1966171168
      %v1203 = vunpack.c.0.s8 %v1202
      %v1204 = vlaneseq
      %v1205 = vshrl.u32 %v1204, 7
      %v1206 = vsub.s32 %v1203, %v1205
      %v1207 = vrot.slane %v1191, %v1206
      %v1209 = vunpack.c.l.s4 1966171168
      %v1210 = vunpack.c.0.s8 %v1209
      %v1211 = vlaneseq
      %v1212 = vshrl.u32 %v1211, 7
      %v1213 = vsub.s32 %v1210, %v1212
      %v1214 = vrot.slane %v1198, %v1213
      %v1216 = vunpack.c.l.s4 1966171168
      %v1217 = vunpack.c.0.s8 %v1216
      %v1218 = vlaneseq
      %v1219 = vshrl.u32 %v1218, 7
      %v1220 = vsub.s32 %v1217, %v1219
      %v1221 = vrot.slane %v1199, %v1220
      %v1223 = vunpack.c.l.s4 1966171168
      %v1224 = vunpack.c.0.s8 %v1223
      %v1225 = vlaneseq
      %v1226 = vshrl.u32 %v1225, 7
      %v1227 = vsub.s32 %v1224, %v1226
      %v1228 = vrot.slane %v1200, %v1227
      %v1229 = vcombine.high %v1207, %v1207
      %v1230 = vcombine.high %v1214, %v1214
      %v1231 = vcombine.high %v1221, %v1221
      %v1232 = vcombine.high %v1228, %v1228
      %v1233 = vcombine.low %v261, %v262
      %v1234 = vcombine.high %v261, %v262
      %v1236 = vunpack.c.l.s4 1966171168
      %v1237 = vunpack.c.0.s8 %v1236
      %v1238 = vlaneseq
      %v1239 = vshrl.u32 %v1238, 7
      %v1240 = vsub.s32 %v1237, %v1239
      %v1241 = vrot.slane %v1233, %v1240
      %v1243 = vunpack.c.l.s4 1966171168
      %v1244 = vunpack.c.0.s8 %v1243
      %v1245 = vlaneseq
      %v1246 = vshrl.u32 %v1245, 7
      %v1247 = vsub.s32 %v1244, %v1246
      %v1248 = vrot.slane %v1234, %v1247
      %v1249 = vcombine.high %v1241, %v1241
      %v1250 = vcombine.high %v1248, %v1248
      %v1252 = vunpack.c.l.s4 1966171168
      %v1253 = vunpack.c.0.s8 %v1252
      %v1254 = vlaneseq
      %v1255 = vshrl.u32 %v1254, 7
      %v1256 = vsub.s32 %v1253, %v1255
      %v1257 = vrot.slane %v1241, %v1256
      %v1259 = vunpack.c.l.s4 1966171168
      %v1260 = vunpack.c.0.s8 %v1259
      %v1261 = vlaneseq
      %v1262 = vshrl.u32 %v1261, 7
      %v1263 = vsub.s32 %v1260, %v1262
      %v1264 = vrot.slane %v1248, %v1263
      %v1266 = vunpack.c.l.s4 1966171168
      %v1267 = vunpack.c.0.s8 %v1266
      %v1268 = vlaneseq
      %v1269 = vshrl.u32 %v1268, 7
      %v1270 = vsub.s32 %v1267, %v1269
      %v1271 = vrot.slane %v1249, %v1270
      %v1273 = vunpack.c.l.s4 1966171168
      %v1274 = vunpack.c.0.s8 %v1273
      %v1275 = vlaneseq
      %v1276 = vshrl.u32 %v1275, 7
      %v1277 = vsub.s32 %v1274, %v1276
      %v1278 = vrot.slane %v1250, %v1277
      %v1279 = vcombine.high %v1257, %v1257
      %v1280 = vcombine.high %v1264, %v1264
      %v1281 = vcombine.high %v1271, %v1271
      %v1282 = vcombine.high %v1278, %v1278
      %v1283 = vlaneseq
      %v1284 = vshrl.u32 %v1283, 7
      %v1285 = vsub.s32 0, %v1284
      %v1286 = vrot.slane %v1107, %v1285
      %v1287 = vlaneseq
      %v1288 = vshrl.u32 %v1287, 7
      %v1289 = vsub.s32 1, %v1288
      %v1290 = vrot.slane %v1107, %v1289
      %v1291 = vlaneseq
      %v1292 = vshrl.u32 %v1291, 7
      %v1293 = vsub.s32 0, %v1292
      %v1294 = vrot.slane %v1121, %v1293
      %v1295 = vlaneseq
      %v1296 = vshrl.u32 %v1295, 7
      %v1297 = vsub.s32 1, %v1296
      %v1298 = vrot.slane %v1121, %v1297
      %v1299 = vlaneseq
      %v1300 = vshrl.u32 %v1299, 7
      %v1301 = vsub.s32 0, %v1300
      %v1302 = vrot.slane %v1129, %v1301
      %v1303 = vlaneseq
      %v1304 = vshrl.u32 %v1303, 7
      %v1305 = vsub.s32 1, %v1304
      %v1306 = vrot.slane %v1129, %v1305
      %v1307 = vlaneseq
      %v1308 = vshrl.u32 %v1307, 7
      %v1309 = vsub.s32 0, %v1308
      %v1310 = vrot.slane %v1131, %v1309
      %v1311 = vlaneseq
      %v1312 = vshrl.u32 %v1311, 7
      %v1313 = vsub.s32 1, %v1312
      %v1314 = vrot.slane %v1131, %v1313
      %v1315 = vlaneseq
      %v1316 = vshrl.u32 %v1315, 7
      %v1317 = vsub.s32 0, %v1316
      %v1318 = vrot.slane %v1114, %v1317
      %v1319 = vlaneseq
      %v1320 = vshrl.u32 %v1319, 7
      %v1321 = vsub.s32 1, %v1320
      %v1322 = vrot.slane %v1114, %v1321
      %v1323 = vlaneseq
      %v1324 = vshrl.u32 %v1323, 7
      %v1325 = vsub.s32 0, %v1324
      %v1326 = vrot.slane %v1128, %v1325
      %v1327 = vlaneseq
      %v1328 = vshrl.u32 %v1327, 7
      %v1329 = vsub.s32 1, %v1328
      %v1330 = vrot.slane %v1128, %v1329
      %v1331 = vlaneseq
      %v1332 = vshrl.u32 %v1331, 7
      %v1333 = vsub.s32 0, %v1332
      %v1334 = vrot.slane %v1130, %v1333
      %v1335 = vlaneseq
      %v1336 = vshrl.u32 %v1335, 7
      %v1337 = vsub.s32 1, %v1336
      %v1338 = vrot.slane %v1130, %v1337
      %v1339 = vlaneseq
      %v1340 = vshrl.u32 %v1339, 7
      %v1341 = vsub.s32 0, %v1340
      %v1342 = vrot.slane %v1132, %v1341
      %v1343 = vlaneseq
      %v1344 = vshrl.u32 %v1343, 7
      %v1345 = vsub.s32 1, %v1344
      %v1346 = vrot.slane %v1132, %v1345
      %v1347 = vlaneseq
      %v1348 = vshrl.u32 %v1347, 7
      %v1349 = vsub.s32 0, %v1348
      %v1350 = vrot.slane %v1157, %v1349
      %v1351 = vlaneseq
      %v1352 = vshrl.u32 %v1351, 7
      %v1353 = vsub.s32 1, %v1352
      %v1354 = vrot.slane %v1157, %v1353
      %v1355 = vlaneseq
      %v1356 = vshrl.u32 %v1355, 7
      %v1357 = vsub.s32 0, %v1356
      %v1358 = vrot.slane %v1171, %v1357
      %v1359 = vlaneseq
      %v1360 = vshrl.u32 %v1359, 7
      %v1361 = vsub.s32 1, %v1360
      %v1362 = vrot.slane %v1171, %v1361
      %v1363 = vlaneseq
      %v1364 = vshrl.u32 %v1363, 7
      %v1365 = vsub.s32 0, %v1364
      %v1366 = vrot.slane %v1179, %v1365
      %v1367 = vlaneseq
      %v1368 = vshrl.u32 %v1367, 7
      %v1369 = vsub.s32 1, %v1368
      %v1370 = vrot.slane %v1179, %v1369
      %v1371 = vlaneseq
      %v1372 = vshrl.u32 %v1371, 7
      %v1373 = vsub.s32 0, %v1372
      %v1374 = vrot.slane %v1181, %v1373
      %v1375 = vlaneseq
      %v1376 = vshrl.u32 %v1375, 7
      %v1377 = vsub.s32 1, %v1376
      %v1378 = vrot.slane %v1181, %v1377
      %v1379 = vlaneseq
      %v1380 = vshrl.u32 %v1379, 7
      %v1381 = vsub.s32 0, %v1380
      %v1382 = vrot.slane %v1164, %v1381
      %v1383 = vlaneseq
      %v1384 = vshrl.u32 %v1383, 7
      %v1385 = vsub.s32 1, %v1384
      %v1386 = vrot.slane %v1164, %v1385
      %v1387 = vlaneseq
      %v1388 = vshrl.u32 %v1387, 7
      %v1389 = vsub.s32 0, %v1388
      %v1390 = vrot.slane %v1178, %v1389
      %v1391 = vlaneseq
      %v1392 = vshrl.u32 %v1391, 7
      %v1393 = vsub.s32 1, %v1392
      %v1394 = vrot.slane %v1178, %v1393
      %v1395 = vlaneseq
      %v1396 = vshrl.u32 %v1395, 7
      %v1397 = vsub.s32 0, %v1396
      %v1398 = vrot.slane %v1180, %v1397
      %v1399 = vlaneseq
      %v1400 = vshrl.u32 %v1399, 7
      %v1401 = vsub.s32 1, %v1400
      %v1402 = vrot.slane %v1180, %v1401
      %v1403 = vlaneseq
      %v1404 = vshrl.u32 %v1403, 7
      %v1405 = vsub.s32 0, %v1404
      %v1406 = vrot.slane %v1182, %v1405
      %v1407 = vlaneseq
      %v1408 = vshrl.u32 %v1407, 7
      %v1409 = vsub.s32 1, %v1408
      %v1410 = vrot.slane %v1182, %v1409
      %v1411 = vlaneseq
      %v1412 = vshrl.u32 %v1411, 7
      %v1413 = vsub.s32 0, %v1412
      %v1414 = vrot.slane %v1207, %v1413
      %v1415 = vlaneseq
      %v1416 = vshrl.u32 %v1415, 7
      %v1417 = vsub.s32 1, %v1416
      %v1418 = vrot.slane %v1207, %v1417
      %v1419 = vlaneseq
      %v1420 = vshrl.u32 %v1419, 7
      %v1421 = vsub.s32 0, %v1420
      %v1422 = vrot.slane %v1221, %v1421
      %v1423 = vlaneseq
      %v1424 = vshrl.u32 %v1423, 7
      %v1425 = vsub.s32 1, %v1424
      %v1426 = vrot.slane %v1221, %v1425
      %v1427 = vlaneseq
      %v1428 = vshrl.u32 %v1427, 7
      %v1429 = vsub.s32 0, %v1428
      %v1430 = vrot.slane %v1229, %v1429
      %v1431 = vlaneseq
      %v1432 = vshrl.u32 %v1431, 7
      %v1433 = vsub.s32 1, %v1432
      %v1434 = vrot.slane %v1229, %v1433
      %v1435 = vlaneseq
      %v1436 = vshrl.u32 %v1435, 7
      %v1437 = vsub.s32 0, %v1436
      %v1438 = vrot.slane %v1231, %v1437
      %v1439 = vlaneseq
      %v1440 = vshrl.u32 %v1439, 7
      %v1441 = vsub.s32 1, %v1440
      %v1442 = vrot.slane %v1231, %v1441
      %v1443 = vlaneseq
      %v1444 = vshrl.u32 %v1443, 7
      %v1445 = vsub.s32 0, %v1444
      %v1446 = vrot.slane %v1214, %v1445
      %v1447 = vlaneseq
      %v1448 = vshrl.u32 %v1447, 7
      %v1449 = vsub.s32 1, %v1448
      %v1450 = vrot.slane %v1214, %v1449
      %v1451 = vlaneseq
      %v1452 = vshrl.u32 %v1451, 7
      %v1453 = vsub.s32 0, %v1452
      %v1454 = vrot.slane %v1228, %v1453
      %v1455 = vlaneseq
      %v1456 = vshrl.u32 %v1455, 7
      %v1457 = vsub.s32 1, %v1456
      %v1458 = vrot.slane %v1228, %v1457
      %v1459 = vlaneseq
      %v1460 = vshrl.u32 %v1459, 7
      %v1461 = vsub.s32 0, %v1460
      %v1462 = vrot.slane %v1230, %v1461
      %v1463 = vlaneseq
      %v1464 = vshrl.u32 %v1463, 7
      %v1465 = vsub.s32 1, %v1464
      %v1466 = vrot.slane %v1230, %v1465
      %v1467 = vlaneseq
      %v1468 = vshrl.u32 %v1467, 7
      %v1469 = vsub.s32 0, %v1468
      %v1470 = vrot.slane %v1232, %v1469
      %v1471 = vlaneseq
      %v1472 = vshrl.u32 %v1471, 7
      %v1473 = vsub.s32 1, %v1472
      %v1474 = vrot.slane %v1232, %v1473
      %v1475 = vlaneseq
      %v1476 = vshrl.u32 %v1475, 7
      %v1477 = vsub.s32 0, %v1476
      %v1478 = vrot.slane %v1257, %v1477
      %v1479 = vlaneseq
      %v1480 = vshrl.u32 %v1479, 7
      %v1481 = vsub.s32 1, %v1480
      %v1482 = vrot.slane %v1257, %v1481
      %v1483 = vlaneseq
      %v1484 = vshrl.u32 %v1483, 7
      %v1485 = vsub.s32 0, %v1484
      %v1486 = vrot.slane %v1271, %v1485
      %v1487 = vlaneseq
      %v1488 = vshrl.u32 %v1487, 7
      %v1489 = vsub.s32 1, %v1488
      %v1490 = vrot.slane %v1271, %v1489
      %v1491 = vlaneseq
      %v1492 = vshrl.u32 %v1491, 7
      %v1493 = vsub.s32 0, %v1492
      %v1494 = vrot.slane %v1279, %v1493
      %v1495 = vlaneseq
      %v1496 = vshrl.u32 %v1495, 7
      %v1497 = vsub.s32 1, %v1496
      %v1498 = vrot.slane %v1279, %v1497
      %v1499 = vlaneseq
      %v1500 = vshrl.u32 %v1499, 7
      %v1501 = vsub.s32 0, %v1500
      %v1502 = vrot.slane %v1281, %v1501
      %v1503 = vlaneseq
      %v1504 = vshrl.u32 %v1503, 7
      %v1505 = vsub.s32 1, %v1504
      %v1506 = vrot.slane %v1281, %v1505
      %v1507 = vlaneseq
      %v1508 = vshrl.u32 %v1507, 7
      %v1509 = vsub.s32 0, %v1508
      %v1510 = vrot.slane %v1264, %v1509
      %v1511 = vlaneseq
      %v1512 = vshrl.u32 %v1511, 7
      %v1513 = vsub.s32 1, %v1512
      %v1514 = vrot.slane %v1264, %v1513
      %v1515 = vlaneseq
      %v1516 = vshrl.u32 %v1515, 7
      %v1517 = vsub.s32 0, %v1516
      %v1518 = vrot.slane %v1278, %v1517
      %v1519 = vlaneseq
      %v1520 = vshrl.u32 %v1519, 7
      %v1521 = vsub.s32 1, %v1520
      %v1522 = vrot.slane %v1278, %v1521
      %v1523 = vlaneseq
      %v1524 = vshrl.u32 %v1523, 7
      %v1525 = vsub.s32 0, %v1524
      %v1526 = vrot.slane %v1280, %v1525
      %v1527 = vlaneseq
      %v1528 = vshrl.u32 %v1527, 7
      %v1529 = vsub.s32 1, %v1528
      %v1530 = vrot.slane %v1280, %v1529
      %v1531 = vlaneseq
      %v1532 = vshrl.u32 %v1531, 7
      %v1533 = vsub.s32 0, %v1532
      %v1534 = vrot.slane %v1282, %v1533
      %v1535 = vlaneseq
      %v1536 = vshrl.u32 %v1535, 7
      %v1537 = vsub.s32 1, %v1536
      %v1538 = vrot.slane %v1282, %v1537
      %1604 = vset.pattern.permute.xlu0 0
      %1605 = vperm.xlu0 %1604, %v235
      %v1606 = vpop.permute.xlu0 %1605
      %1609 = vset.pattern.permute.xlu0 0
      %1610 = vperm.xlu0 %1609, %v236
      %v1611 = vpop.permute.xlu0 %1610
      %1614 = vset.pattern.permute.xlu0 0
      %1615 = vperm.xlu0 %1614, %v237
      %v1616 = vpop.permute.xlu0 %1615
      %1619 = vset.pattern.permute.xlu0 0
      %1620 = vperm.xlu0 %1619, %v238
      %v1621 = vpop.permute.xlu0 %1620
      %v1623 = vmul.f32 %v1286, %v1606
      %v1624 = vmul.f32 %v1290, %v1606
      %v1625 = vmul.f32 %v1286, %v1611
      %v1626 = vmul.f32 %v1290, %v1611
      %v1627 = vmul.f32 %v1286, %v1616
      %v1628 = vmul.f32 %v1290, %v1616
      %v1629 = vmul.f32 %v1286, %v1621
      %v1630 = vmul.f32 %v1290, %v1621
      %v1631 = vmul.f32 %v1294, %v1606
      %v1632 = vmul.f32 %v1298, %v1606
      %v1633 = vmul.f32 %v1294, %v1611
      %v1634 = vmul.f32 %v1298, %v1611
      %v1635 = vmul.f32 %v1294, %v1616
      %v1636 = vmul.f32 %v1298, %v1616
      %v1637 = vmul.f32 %v1294, %v1621
      %v1638 = vmul.f32 %v1298, %v1621
      %v1639 = vmul.f32 %v1302, %v1606
      %v1640 = vmul.f32 %v1306, %v1606
      %v1641 = vmul.f32 %v1302, %v1611
      %v1642 = vmul.f32 %v1306, %v1611
      %v1643 = vmul.f32 %v1302, %v1616
      %v1644 = vmul.f32 %v1306, %v1616
      %v1645 = vmul.f32 %v1302, %v1621
      %v1646 = vmul.f32 %v1306, %v1621
      %v1647 = vmul.f32 %v1310, %v1606
      %v1648 = vmul.f32 %v1314, %v1606
      %v1649 = vmul.f32 %v1310, %v1611
      %v1650 = vmul.f32 %v1314, %v1611
      %v1651 = vmul.f32 %v1310, %v1616
      %v1652 = vmul.f32 %v1314, %v1616
      %v1653 = vmul.f32 %v1310, %v1621
      %v1654 = vmul.f32 %v1314, %v1621
      %v1655 = vmul.f32 %v1318, %v1606
      %v1656 = vmul.f32 %v1322, %v1606
      %v1657 = vmul.f32 %v1318, %v1611
      %v1658 = vmul.f32 %v1322, %v1611
      %v1659 = vmul.f32 %v1318, %v1616
      %v1660 = vmul.f32 %v1322, %v1616
      %v1661 = vmul.f32 %v1318, %v1621
      %v1662 = vmul.f32 %v1322, %v1621
      %v1663 = vmul.f32 %v1326, %v1606
      %v1664 = vmul.f32 %v1330, %v1606
      %v1665 = vmul.f32 %v1326, %v1611
      %v1666 = vmul.f32 %v1330, %v1611
      %v1667 = vmul.f32 %v1326, %v1616
      %v1668 = vmul.f32 %v1330, %v1616
      %v1669 = vmul.f32 %v1326, %v1621
      %v1670 = vmul.f32 %v1330, %v1621
      %v1671 = vmul.f32 %v1334, %v1606
      %v1672 = vmul.f32 %v1338, %v1606
      %v1673 = vmul.f32 %v1334, %v1611
      %v1674 = vmul.f32 %v1338, %v1611
      %v1675 = vmul.f32 %v1334, %v1616
      %v1676 = vmul.f32 %v1338, %v1616
      %v1677 = vmul.f32 %v1334, %v1621
      %v1678 = vmul.f32 %v1338, %v1621
      %v1679 = vmul.f32 %v1342, %v1606
      %v1680 = vmul.f32 %v1346, %v1606
      %v1681 = vmul.f32 %v1342, %v1611
      %v1682 = vmul.f32 %v1346, %v1611
      %v1683 = vmul.f32 %v1342, %v1616
      %v1684 = vmul.f32 %v1346, %v1616
      %v1685 = vmul.f32 %v1342, %v1621
      %v1686 = vmul.f32 %v1346, %v1621
      %v1687 = vmul.f32 %v1350, %v1606
      %v1688 = vmul.f32 %v1354, %v1606
      %v1689 = vmul.f32 %v1350, %v1611
      %v1690 = vmul.f32 %v1354, %v1611
      %v1691 = vmul.f32 %v1350, %v1616
      %v1692 = vmul.f32 %v1354, %v1616
      %v1693 = vmul.f32 %v1350, %v1621
      %v1694 = vmul.f32 %v1354, %v1621
      %v1695 = vmul.f32 %v1358, %v1606
      %v1696 = vmul.f32 %v1362, %v1606
      %v1697 = vmul.f32 %v1358, %v1611
      %v1698 = vmul.f32 %v1362, %v1611
      %v1699 = vmul.f32 %v1358, %v1616
      %v1700 = vmul.f32 %v1362, %v1616
      %v1701 = vmul.f32 %v1358, %v1621
      %v1702 = vmul.f32 %v1362, %v1621
      %v1703 = vmul.f32 %v1366, %v1606
      %v1704 = vmul.f32 %v1370, %v1606
      %v1705 = vmul.f32 %v1366, %v1611
      %v1706 = vmul.f32 %v1370, %v1611
      %v1707 = vmul.f32 %v1366, %v1616
      %v1708 = vmul.f32 %v1370, %v1616
      %v1709 = vmul.f32 %v1366, %v1621
      %v1710 = vmul.f32 %v1370, %v1621
      %v1711 = vmul.f32 %v1374, %v1606
      %v1712 = vmul.f32 %v1378, %v1606
      %v1713 = vmul.f32 %v1374, %v1611
      %v1714 = vmul.f32 %v1378, %v1611
      %v1715 = vmul.f32 %v1374, %v1616
      %v1716 = vmul.f32 %v1378, %v1616
      %v1717 = vmul.f32 %v1374, %v1621
      %v1718 = vmul.f32 %v1378, %v1621
      %v1719 = vmul.f32 %v1382, %v1606
      %v1720 = vmul.f32 %v1386, %v1606
      %v1721 = vmul.f32 %v1382, %v1611
      %v1722 = vmul.f32 %v1386, %v1611
      %v1723 = vmul.f32 %v1382, %v1616
      %v1724 = vmul.f32 %v1386, %v1616
      %v1725 = vmul.f32 %v1382, %v1621
      %v1726 = vmul.f32 %v1386, %v1621
      %v1727 = vmul.f32 %v1390, %v1606
      %v1728 = vmul.f32 %v1394, %v1606
      %v1729 = vmul.f32 %v1390, %v1611
      %v1730 = vmul.f32 %v1394, %v1611
      %v1731 = vmul.f32 %v1390, %v1616
      %v1732 = vmul.f32 %v1394, %v1616
      %v1733 = vmul.f32 %v1390, %v1621
      %v1734 = vmul.f32 %v1394, %v1621
      %v1735 = vmul.f32 %v1398, %v1606
      %v1736 = vmul.f32 %v1402, %v1606
      %v1737 = vmul.f32 %v1398, %v1611
      %v1738 = vmul.f32 %v1402, %v1611
      %v1739 = vmul.f32 %v1398, %v1616
      %v1740 = vmul.f32 %v1402, %v1616
      %v1741 = vmul.f32 %v1398, %v1621
      %v1742 = vmul.f32 %v1402, %v1621
      %v1743 = vmul.f32 %v1406, %v1606
      %v1744 = vmul.f32 %v1410, %v1606
      %v1745 = vmul.f32 %v1406, %v1611
      %v1746 = vmul.f32 %v1410, %v1611
      %v1747 = vmul.f32 %v1406, %v1616
      %v1748 = vmul.f32 %v1410, %v1616
      %v1749 = vmul.f32 %v1406, %v1621
      %v1750 = vmul.f32 %v1410, %v1621
      %v1751 = vmul.f32 %v1414, %v1606
      %v1752 = vmul.f32 %v1418, %v1606
      %v1753 = vmul.f32 %v1414, %v1611
      %v1754 = vmul.f32 %v1418, %v1611
      %v1755 = vmul.f32 %v1414, %v1616
      %v1756 = vmul.f32 %v1418, %v1616
      %v1757 = vmul.f32 %v1414, %v1621
      %v1758 = vmul.f32 %v1418, %v1621
      %v1759 = vmul.f32 %v1422, %v1606
      %v1760 = vmul.f32 %v1426, %v1606
      %v1761 = vmul.f32 %v1422, %v1611
      %v1762 = vmul.f32 %v1426, %v1611
      %v1763 = vmul.f32 %v1422, %v1616
      %v1764 = vmul.f32 %v1426, %v1616
      %v1765 = vmul.f32 %v1422, %v1621
      %v1766 = vmul.f32 %v1426, %v1621
      %v1767 = vmul.f32 %v1430, %v1606
      %v1768 = vmul.f32 %v1434, %v1606
      %v1769 = vmul.f32 %v1430, %v1611
      %v1770 = vmul.f32 %v1434, %v1611
      %v1771 = vmul.f32 %v1430, %v1616
      %v1772 = vmul.f32 %v1434, %v1616
      %v1773 = vmul.f32 %v1430, %v1621
      %v1774 = vmul.f32 %v1434, %v1621
      %v1775 = vmul.f32 %v1438, %v1606
      %v1776 = vmul.f32 %v1442, %v1606
      %v1777 = vmul.f32 %v1438, %v1611
      %v1778 = vmul.f32 %v1442, %v1611
      %v1779 = vmul.f32 %v1438, %v1616
      %v1780 = vmul.f32 %v1442, %v1616
      %v1781 = vmul.f32 %v1438, %v1621
      %v1782 = vmul.f32 %v1442, %v1621
      %v1783 = vmul.f32 %v1446, %v1606
      %v1784 = vmul.f32 %v1450, %v1606
      %v1785 = vmul.f32 %v1446, %v1611
      %v1786 = vmul.f32 %v1450, %v1611
      %v1787 = vmul.f32 %v1446, %v1616
      %v1788 = vmul.f32 %v1450, %v1616
      %v1789 = vmul.f32 %v1446, %v1621
      %v1790 = vmul.f32 %v1450, %v1621
      %v1791 = vmul.f32 %v1454, %v1606
      %v1792 = vmul.f32 %v1458, %v1606
      %v1793 = vmul.f32 %v1454, %v1611
      %v1794 = vmul.f32 %v1458, %v1611
      %v1795 = vmul.f32 %v1454, %v1616
      %v1796 = vmul.f32 %v1458, %v1616
      %v1797 = vmul.f32 %v1454, %v1621
      %v1798 = vmul.f32 %v1458, %v1621
      %v1799 = vmul.f32 %v1462, %v1606
      %v1800 = vmul.f32 %v1466, %v1606
      %v1801 = vmul.f32 %v1462, %v1611
      %v1802 = vmul.f32 %v1466, %v1611
      %v1803 = vmul.f32 %v1462, %v1616
      %v1804 = vmul.f32 %v1466, %v1616
      %v1805 = vmul.f32 %v1462, %v1621
      %v1806 = vmul.f32 %v1466, %v1621
      %v1807 = vmul.f32 %v1470, %v1606
      %v1808 = vmul.f32 %v1474, %v1606
      %v1809 = vmul.f32 %v1470, %v1611
      %v1810 = vmul.f32 %v1474, %v1611
      %v1811 = vmul.f32 %v1470, %v1616
      %v1812 = vmul.f32 %v1474, %v1616
      %v1813 = vmul.f32 %v1470, %v1621
      %v1814 = vmul.f32 %v1474, %v1621
      %v1815 = vmul.f32 %v1478, %v1606
      %v1816 = vmul.f32 %v1482, %v1606
      %v1817 = vmul.f32 %v1478, %v1611
      %v1818 = vmul.f32 %v1482, %v1611
      %v1819 = vmul.f32 %v1478, %v1616
      %v1820 = vmul.f32 %v1482, %v1616
      %v1821 = vmul.f32 %v1478, %v1621
      %v1822 = vmul.f32 %v1482, %v1621
      %v1823 = vmul.f32 %v1486, %v1606
      %v1824 = vmul.f32 %v1490, %v1606
      %v1825 = vmul.f32 %v1486, %v1611
      %v1826 = vmul.f32 %v1490, %v1611
      %v1827 = vmul.f32 %v1486, %v1616
      %v1828 = vmul.f32 %v1490, %v1616
      %v1829 = vmul.f32 %v1486, %v1621
      %v1830 = vmul.f32 %v1490, %v1621
      %v1831 = vmul.f32 %v1494, %v1606
      %v1832 = vmul.f32 %v1498, %v1606
      %v1833 = vmul.f32 %v1494, %v1611
      %v1834 = vmul.f32 %v1498, %v1611
      %v1835 = vmul.f32 %v1494, %v1616
      %v1836 = vmul.f32 %v1498, %v1616
      %v1837 = vmul.f32 %v1494, %v1621
      %v1838 = vmul.f32 %v1498, %v1621
      %v1839 = vmul.f32 %v1502, %v1606
      %v1840 = vmul.f32 %v1506, %v1606
      %v1841 = vmul.f32 %v1502, %v1611
      %v1842 = vmul.f32 %v1506, %v1611
      %v1843 = vmul.f32 %v1502, %v1616
      %v1844 = vmul.f32 %v1506, %v1616
      %v1845 = vmul.f32 %v1502, %v1621
      %v1846 = vmul.f32 %v1506, %v1621
      %v1847 = vmul.f32 %v1510, %v1606
      %v1848 = vmul.f32 %v1514, %v1606
      %v1849 = vmul.f32 %v1510, %v1611
      %v1850 = vmul.f32 %v1514, %v1611
      %v1851 = vmul.f32 %v1510, %v1616
      %v1852 = vmul.f32 %v1514, %v1616
      %v1853 = vmul.f32 %v1510, %v1621
      %v1854 = vmul.f32 %v1514, %v1621
      %v1855 = vmul.f32 %v1518, %v1606
      %v1856 = vmul.f32 %v1522, %v1606
      %v1857 = vmul.f32 %v1518, %v1611
      %v1858 = vmul.f32 %v1522, %v1611
      %v1859 = vmul.f32 %v1518, %v1616
      %v1860 = vmul.f32 %v1522, %v1616
      %v1861 = vmul.f32 %v1518, %v1621
      %v1862 = vmul.f32 %v1522, %v1621
      %v1863 = vmul.f32 %v1526, %v1606
      %v1864 = vmul.f32 %v1530, %v1606
      %v1865 = vmul.f32 %v1526, %v1611
      %v1866 = vmul.f32 %v1530, %v1611
      %v1867 = vmul.f32 %v1526, %v1616
      %v1868 = vmul.f32 %v1530, %v1616
      %v1869 = vmul.f32 %v1526, %v1621
      %v1870 = vmul.f32 %v1530, %v1621
      %v1871 = vmul.f32 %v1534, %v1606
      %v1872 = vmul.f32 %v1538, %v1606
      %v1873 = vmul.f32 %v1534, %v1611
      %v1874 = vmul.f32 %v1538, %v1611
      %v1875 = vmul.f32 %v1534, %v1616
      %v1876 = vmul.f32 %v1538, %v1616
      %v1877 = vmul.f32 %v1534, %v1621
      %v1878 = vmul.f32 %v1538, %v1621
      %v1879 = vadd.f32 %v819, %v1623
      %v1880 = vadd.f32 %v820, %v1624
      %v1881 = vadd.f32 %v821, %v1625
      %v1882 = vadd.f32 %v822, %v1626
      %v1883 = vadd.f32 %v823, %v1627
      %v1884 = vadd.f32 %v824, %v1628
      %v1885 = vadd.f32 %v825, %v1629
      %v1886 = vadd.f32 %v826, %v1630
      %v1887 = vadd.f32 %v827, %v1631
      %v1888 = vadd.f32 %v828, %v1632
      %v1889 = vadd.f32 %v829, %v1633
      %v1890 = vadd.f32 %v830, %v1634
      %v1891 = vadd.f32 %v831, %v1635
      %v1892 = vadd.f32 %v832, %v1636
      %v1893 = vadd.f32 %v833, %v1637
      %v1894 = vadd.f32 %v834, %v1638
      %v1895 = vadd.f32 %v835, %v1639
      %v1896 = vadd.f32 %v836, %v1640
      %v1897 = vadd.f32 %v837, %v1641
      %v1898 = vadd.f32 %v838, %v1642
      %v1899 = vadd.f32 %v839, %v1643
      %v1900 = vadd.f32 %v840, %v1644
      %v1901 = vadd.f32 %v841, %v1645
      %v1902 = vadd.f32 %v842, %v1646
      %v1903 = vadd.f32 %v843, %v1647
      %v1904 = vadd.f32 %v844, %v1648
      %v1905 = vadd.f32 %v845, %v1649
      %v1906 = vadd.f32 %v846, %v1650
      %v1907 = vadd.f32 %v847, %v1651
      %v1908 = vadd.f32 %v848, %v1652
      %v1909 = vadd.f32 %v849, %v1653
      %v1910 = vadd.f32 %v850, %v1654
      %v1911 = vadd.f32 %v851, %v1655
      %v1912 = vadd.f32 %v852, %v1656
      %v1913 = vadd.f32 %v853, %v1657
      %v1914 = vadd.f32 %v854, %v1658
      %v1915 = vadd.f32 %v855, %v1659
      %v1916 = vadd.f32 %v856, %v1660
      %v1917 = vadd.f32 %v857, %v1661
      %v1918 = vadd.f32 %v858, %v1662
      %v1919 = vadd.f32 %v859, %v1663
      %v1920 = vadd.f32 %v860, %v1664
      %v1921 = vadd.f32 %v861, %v1665
      %v1922 = vadd.f32 %v862, %v1666
      %v1923 = vadd.f32 %v863, %v1667
      %v1924 = vadd.f32 %v864, %v1668
      %v1925 = vadd.f32 %v865, %v1669
      %v1926 = vadd.f32 %v866, %v1670
      %v1927 = vadd.f32 %v867, %v1671
      %v1928 = vadd.f32 %v868, %v1672
      %v1929 = vadd.f32 %v869, %v1673
      %v1930 = vadd.f32 %v870, %v1674
      %v1931 = vadd.f32 %v871, %v1675
      %v1932 = vadd.f32 %v872, %v1676
      %v1933 = vadd.f32 %v873, %v1677
      %v1934 = vadd.f32 %v874, %v1678
      %v1935 = vadd.f32 %v875, %v1679
      %v1936 = vadd.f32 %v876, %v1680
      %v1937 = vadd.f32 %v877, %v1681
      %v1938 = vadd.f32 %v878, %v1682
      %v1939 = vadd.f32 %v879, %v1683
      %v1940 = vadd.f32 %v880, %v1684
      %v1941 = vadd.f32 %v881, %v1685
      %v1942 = vadd.f32 %v882, %v1686
      %v1943 = vadd.f32 %v883, %v1687
      %v1944 = vadd.f32 %v884, %v1688
      %v1945 = vadd.f32 %v885, %v1689
      %v1946 = vadd.f32 %v886, %v1690
      %v1947 = vadd.f32 %v887, %v1691
      %v1948 = vadd.f32 %v888, %v1692
      %v1949 = vadd.f32 %v889, %v1693
      %v1950 = vadd.f32 %v890, %v1694
      %v1951 = vadd.f32 %v891, %v1695
      %v1952 = vadd.f32 %v892, %v1696
      %v1953 = vadd.f32 %v893, %v1697
      %v1954 = vadd.f32 %v894, %v1698
      %v1955 = vadd.f32 %v895, %v1699
      %v1956 = vadd.f32 %v896, %v1700
      %v1957 = vadd.f32 %v897, %v1701
      %v1958 = vadd.f32 %v898, %v1702
      %v1959 = vadd.f32 %v899, %v1703
      %v1960 = vadd.f32 %v900, %v1704
      %v1961 = vadd.f32 %v901, %v1705
      %v1962 = vadd.f32 %v902, %v1706
      %v1963 = vadd.f32 %v903, %v1707
      %v1964 = vadd.f32 %v904, %v1708
      %v1965 = vadd.f32 %v905, %v1709
      %v1966 = vadd.f32 %v906, %v1710
      %v1967 = vadd.f32 %v907, %v1711
      %v1968 = vadd.f32 %v908, %v1712
      %v1969 = vadd.f32 %v909, %v1713
      %v1970 = vadd.f32 %v910, %v1714
      %v1971 = vadd.f32 %v911, %v1715
      %v1972 = vadd.f32 %v912, %v1716
      %v1973 = vadd.f32 %v913, %v1717
      %v1974 = vadd.f32 %v914, %v1718
      %v1975 = vadd.f32 %v915, %v1719
      %v1976 = vadd.f32 %v916, %v1720
      %v1977 = vadd.f32 %v917, %v1721
      %v1978 = vadd.f32 %v918, %v1722
      %v1979 = vadd.f32 %v919, %v1723
      %v1980 = vadd.f32 %v920, %v1724
      %v1981 = vadd.f32 %v921, %v1725
      %v1982 = vadd.f32 %v922, %v1726
      %v1983 = vadd.f32 %v923, %v1727
      %v1984 = vadd.f32 %v924, %v1728
      %v1985 = vadd.f32 %v925, %v1729
      %v1986 = vadd.f32 %v926, %v1730
      %v1987 = vadd.f32 %v927, %v1731
      %v1988 = vadd.f32 %v928, %v1732
      %v1989 = vadd.f32 %v929, %v1733
      %v1990 = vadd.f32 %v930, %v1734
      %v1991 = vadd.f32 %v931, %v1735
      %v1992 = vadd.f32 %v932, %v1736
      %v1993 = vadd.f32 %v933, %v1737
      %v1994 = vadd.f32 %v934, %v1738
      %v1995 = vadd.f32 %v935, %v1739
      %v1996 = vadd.f32 %v936, %v1740
      %v1997 = vadd.f32 %v937, %v1741
      %v1998 = vadd.f32 %v938, %v1742
      %v1999 = vadd.f32 %v939, %v1743
      %v2000 = vadd.f32 %v940, %v1744
      %v2001 = vadd.f32 %v941, %v1745
      %v2002 = vadd.f32 %v942, %v1746
      %v2003 = vadd.f32 %v943, %v1747
      %v2004 = vadd.f32 %v944, %v1748
      %v2005 = vadd.f32 %v945, %v1749
      %v2006 = vadd.f32 %v946, %v1750
      %v2007 = vadd.f32 %v947, %v1751
      %v2008 = vadd.f32 %v948, %v1752
      %v2009 = vadd.f32 %v949, %v1753
      %v2010 = vadd.f32 %v950, %v1754
      %v2011 = vadd.f32 %v951, %v1755
      %v2012 = vadd.f32 %v952, %v1756
      %v2013 = vadd.f32 %v953, %v1757
      %v2014 = vadd.f32 %v954, %v1758
      %v2015 = vadd.f32 %v955, %v1759
      %v2016 = vadd.f32 %v956, %v1760
      %v2017 = vadd.f32 %v957, %v1761
      %v2018 = vadd.f32 %v958, %v1762
      %v2019 = vadd.f32 %v959, %v1763
      %v2020 = vadd.f32 %v960, %v1764
      %v2021 = vadd.f32 %v961, %v1765
      %v2022 = vadd.f32 %v962, %v1766
      %v2023 = vadd.f32 %v963, %v1767
      %v2024 = vadd.f32 %v964, %v1768
      %v2025 = vadd.f32 %v965, %v1769
      %v2026 = vadd.f32 %v966, %v1770
      %v2027 = vadd.f32 %v967, %v1771
      %v2028 = vadd.f32 %v968, %v1772
      %v2029 = vadd.f32 %v969, %v1773
      %v2030 = vadd.f32 %v970, %v1774
      %v2031 = vadd.f32 %v971, %v1775
      %v2032 = vadd.f32 %v972, %v1776
      %v2033 = vadd.f32 %v973, %v1777
      %v2034 = vadd.f32 %v974, %v1778
      %v2035 = vadd.f32 %v975, %v1779
      %v2036 = vadd.f32 %v976, %v1780
      %v2037 = vadd.f32 %v977, %v1781
      %v2038 = vadd.f32 %v978, %v1782
      %v2039 = vadd.f32 %v979, %v1783
      %v2040 = vadd.f32 %v980, %v1784
      %v2041 = vadd.f32 %v981, %v1785
      %v2042 = vadd.f32 %v982, %v1786
      %v2043 = vadd.f32 %v983, %v1787
      %v2044 = vadd.f32 %v984, %v1788
      %v2045 = vadd.f32 %v985, %v1789
      %v2046 = vadd.f32 %v986, %v1790
      %v2047 = vadd.f32 %v987, %v1791
      %v2048 = vadd.f32 %v988, %v1792
      %v2049 = vadd.f32 %v989, %v1793
      %v2050 = vadd.f32 %v990, %v1794
      %v2051 = vadd.f32 %v991, %v1795
      %v2052 = vadd.f32 %v992, %v1796
      %v2053 = vadd.f32 %v993, %v1797
      %v2054 = vadd.f32 %v994, %v1798
      %v2055 = vadd.f32 %v995, %v1799
      %v2056 = vadd.f32 %v996, %v1800
      %v2057 = vadd.f32 %v997, %v1801
      %v2058 = vadd.f32 %v998, %v1802
      %v2059 = vadd.f32 %v999, %v1803
      %v2060 = vadd.f32 %v1000, %v1804
      %v2061 = vadd.f32 %v1001, %v1805
      %v2062 = vadd.f32 %v1002, %v1806
      %v2063 = vadd.f32 %v1003, %v1807
      %v2064 = vadd.f32 %v1004, %v1808
      %v2065 = vadd.f32 %v1005, %v1809
      %v2066 = vadd.f32 %v1006, %v1810
      %v2067 = vadd.f32 %v1007, %v1811
      %v2068 = vadd.f32 %v1008, %v1812
      %v2069 = vadd.f32 %v1009, %v1813
      %v2070 = vadd.f32 %v1010, %v1814
      %v2071 = vadd.f32 %v1011, %v1815
      %v2072 = vadd.f32 %v1012, %v1816
      %v2073 = vadd.f32 %v1013, %v1817
      %v2074 = vadd.f32 %v1014, %v1818
      %v2075 = vadd.f32 %v1015, %v1819
      %v2076 = vadd.f32 %v1016, %v1820
      %v2077 = vadd.f32 %v1017, %v1821
      %v2078 = vadd.f32 %v1018, %v1822
      %v2079 = vadd.f32 %v1019, %v1823
      %v2080 = vadd.f32 %v1020, %v1824
      %v2081 = vadd.f32 %v1021, %v1825
      %v2082 = vadd.f32 %v1022, %v1826
      %v2083 = vadd.f32 %v1023, %v1827
      %v2084 = vadd.f32 %v1024, %v1828
      %v2085 = vadd.f32 %v1025, %v1829
      %v2086 = vadd.f32 %v1026, %v1830
      %v2087 = vadd.f32 %v1027, %v1831
      %v2088 = vadd.f32 %v1028, %v1832
      %v2089 = vadd.f32 %v1029, %v1833
      %v2090 = vadd.f32 %v1030, %v1834
      %v2091 = vadd.f32 %v1031, %v1835
      %v2092 = vadd.f32 %v1032, %v1836
      %v2093 = vadd.f32 %v1033, %v1837
      %v2094 = vadd.f32 %v1034, %v1838
      %v2095 = vadd.f32 %v1035, %v1839
      %v2096 = vadd.f32 %v1036, %v1840
      %v2097 = vadd.f32 %v1037, %v1841
      %v2098 = vadd.f32 %v1038, %v1842
      %v2099 = vadd.f32 %v1039, %v1843
      %v2100 = vadd.f32 %v1040, %v1844
      %v2101 = vadd.f32 %v1041, %v1845
      %v2102 = vadd.f32 %v1042, %v1846
      %v2103 = vadd.f32 %v1043, %v1847
      %v2104 = vadd.f32 %v1044, %v1848
      %v2105 = vadd.f32 %v1045, %v1849
      %v2106 = vadd.f32 %v1046, %v1850
      %v2107 = vadd.f32 %v1047, %v1851
      %v2108 = vadd.f32 %v1048, %v1852
      %v2109 = vadd.f32 %v1049, %v1853
      %v2110 = vadd.f32 %v1050, %v1854
      %v2111 = vadd.f32 %v1051, %v1855
      %v2112 = vadd.f32 %v1052, %v1856
      %v2113 = vadd.f32 %v1053, %v1857
      %v2114 = vadd.f32 %v1054, %v1858
      %v2115 = vadd.f32 %v1055, %v1859
      %v2116 = vadd.f32 %v1056, %v1860
      %v2117 = vadd.f32 %v1057, %v1861
      %v2118 = vadd.f32 %v1058, %v1862
      %v2119 = vadd.f32 %v1059, %v1863
      %v2120 = vadd.f32 %v1060, %v1864
      %v2121 = vadd.f32 %v1061, %v1865
      %v2122 = vadd.f32 %v1062, %v1866
      %v2123 = vadd.f32 %v1063, %v1867
      %v2124 = vadd.f32 %v1064, %v1868
      %v2125 = vadd.f32 %v1065, %v1869
      %v2126 = vadd.f32 %v1066, %v1870
      %v2127 = vadd.f32 %v1067, %v1871
      %v2128 = vadd.f32 %v1068, %v1872
      %v2129 = vadd.f32 %v1069, %v1873
      %v2130 = vadd.f32 %v1070, %v1874
      %v2131 = vadd.f32 %v1071, %v1875
      %v2132 = vadd.f32 %v1072, %v1876
      %v2133 = vadd.f32 %v1073, %v1877
      %v2134 = vadd.f32 %v1074, %v1878
      %v2143 = vcombine.low %v263, %v264
      %v2144 = vcombine.high %v263, %v264
      %v2146 = vunpack.c.l.s4 1966171168
      %v2147 = vunpack.c.0.s8 %v2146
      %v2148 = vlaneseq
      %v2149 = vshrl.u32 %v2148, 7
      %v2150 = vsub.s32 %v2147, %v2149
      %v2151 = vrot.slane %v2143, %v2150
      %v2153 = vunpack.c.l.s4 1966171168
      %v2154 = vunpack.c.0.s8 %v2153
      %v2155 = vlaneseq
      %v2156 = vshrl.u32 %v2155, 7
      %v2157 = vsub.s32 %v2154, %v2156
      %v2158 = vrot.slane %v2144, %v2157
      %v2159 = vcombine.high %v2151, %v2151
      %v2160 = vcombine.high %v2158, %v2158
      %v2162 = vunpack.c.l.s4 1966171168
      %v2163 = vunpack.c.0.s8 %v2162
      %v2164 = vlaneseq
      %v2165 = vshrl.u32 %v2164, 7
      %v2166 = vsub.s32 %v2163, %v2165
      %v2167 = vrot.slane %v2151, %v2166
      %v2169 = vunpack.c.l.s4 1966171168
      %v2170 = vunpack.c.0.s8 %v2169
      %v2171 = vlaneseq
      %v2172 = vshrl.u32 %v2171, 7
      %v2173 = vsub.s32 %v2170, %v2172
      %v2174 = vrot.slane %v2158, %v2173
      %v2176 = vunpack.c.l.s4 1966171168
      %v2177 = vunpack.c.0.s8 %v2176
      %v2178 = vlaneseq
      %v2179 = vshrl.u32 %v2178, 7
      %v2180 = vsub.s32 %v2177, %v2179
      %v2181 = vrot.slane %v2159, %v2180
      %v2183 = vunpack.c.l.s4 1966171168
      %v2184 = vunpack.c.0.s8 %v2183
      %v2185 = vlaneseq
      %v2186 = vshrl.u32 %v2185, 7
      %v2187 = vsub.s32 %v2184, %v2186
      %v2188 = vrot.slane %v2160, %v2187
      %v2189 = vcombine.high %v2167, %v2167
      %v2190 = vcombine.high %v2174, %v2174
      %v2191 = vcombine.high %v2181, %v2181
      %v2192 = vcombine.high %v2188, %v2188
      %v2193 = vcombine.low %v265, %v266
      %v2194 = vcombine.high %v265, %v266
      %v2196 = vunpack.c.l.s4 1966171168
      %v2197 = vunpack.c.0.s8 %v2196
      %v2198 = vlaneseq
      %v2199 = vshrl.u32 %v2198, 7
      %v2200 = vsub.s32 %v2197, %v2199
      %v2201 = vrot.slane %v2193, %v2200
      %v2203 = vunpack.c.l.s4 1966171168
      %v2204 = vunpack.c.0.s8 %v2203
      %v2205 = vlaneseq
      %v2206 = vshrl.u32 %v2205, 7
      %v2207 = vsub.s32 %v2204, %v2206
      %v2208 = vrot.slane %v2194, %v2207
      %v2209 = vcombine.high %v2201, %v2201
      %v2210 = vcombine.high %v2208, %v2208
      %v2212 = vunpack.c.l.s4 1966171168
      %v2213 = vunpack.c.0.s8 %v2212
      %v2214 = vlaneseq
      %v2215 = vshrl.u32 %v2214, 7
      %v2216 = vsub.s32 %v2213, %v2215
      %v2217 = vrot.slane %v2201, %v2216
      %v2219 = vunpack.c.l.s4 1966171168
      %v2220 = vunpack.c.0.s8 %v2219
      %v2221 = vlaneseq
      %v2222 = vshrl.u32 %v2221, 7
      %v2223 = vsub.s32 %v2220, %v2222
      %v2224 = vrot.slane %v2208, %v2223
      %v2226 = vunpack.c.l.s4 1966171168
      %v2227 = vunpack.c.0.s8 %v2226
      %v2228 = vlaneseq
      %v2229 = vshrl.u32 %v2228, 7
      %v2230 = vsub.s32 %v2227, %v2229
      %v2231 = vrot.slane %v2209, %v2230
      %v2233 = vunpack.c.l.s4 1966171168
      %v2234 = vunpack.c.0.s8 %v2233
      %v2235 = vlaneseq
      %v2236 = vshrl.u32 %v2235, 7
      %v2237 = vsub.s32 %v2234, %v2236
      %v2238 = vrot.slane %v2210, %v2237
      %v2239 = vcombine.high %v2217, %v2217
      %v2240 = vcombine.high %v2224, %v2224
      %v2241 = vcombine.high %v2231, %v2231
      %v2242 = vcombine.high %v2238, %v2238
      %v2243 = vcombine.low %v267, %v268
      %v2244 = vcombine.high %v267, %v268
      %v2246 = vunpack.c.l.s4 1966171168
      %v2247 = vunpack.c.0.s8 %v2246
      %v2248 = vlaneseq
      %v2249 = vshrl.u32 %v2248, 7
      %v2250 = vsub.s32 %v2247, %v2249
      %v2251 = vrot.slane %v2243, %v2250
      %v2253 = vunpack.c.l.s4 1966171168
      %v2254 = vunpack.c.0.s8 %v2253
      %v2255 = vlaneseq
      %v2256 = vshrl.u32 %v2255, 7
      %v2257 = vsub.s32 %v2254, %v2256
      %v2258 = vrot.slane %v2244, %v2257
      %v2259 = vcombine.high %v2251, %v2251
      %v2260 = vcombine.high %v2258, %v2258
      %v2262 = vunpack.c.l.s4 1966171168
      %v2263 = vunpack.c.0.s8 %v2262
      %v2264 = vlaneseq
      %v2265 = vshrl.u32 %v2264, 7
      %v2266 = vsub.s32 %v2263, %v2265
      %v2267 = vrot.slane %v2251, %v2266
      %v2269 = vunpack.c.l.s4 1966171168
      %v2270 = vunpack.c.0.s8 %v2269
      %v2271 = vlaneseq
      %v2272 = vshrl.u32 %v2271, 7
      %v2273 = vsub.s32 %v2270, %v2272
      %v2274 = vrot.slane %v2258, %v2273
      %v2276 = vunpack.c.l.s4 1966171168
      %v2277 = vunpack.c.0.s8 %v2276
      %v2278 = vlaneseq
      %v2279 = vshrl.u32 %v2278, 7
      %v2280 = vsub.s32 %v2277, %v2279
      %v2281 = vrot.slane %v2259, %v2280
      %v2283 = vunpack.c.l.s4 1966171168
      %v2284 = vunpack.c.0.s8 %v2283
      %v2285 = vlaneseq
      %v2286 = vshrl.u32 %v2285, 7
      %v2287 = vsub.s32 %v2284, %v2286
      %v2288 = vrot.slane %v2260, %v2287
      %v2289 = vcombine.high %v2267, %v2267
      %v2290 = vcombine.high %v2274, %v2274
      %v2291 = vcombine.high %v2281, %v2281
      %v2292 = vcombine.high %v2288, %v2288
      %v2293 = vcombine.low %v269, %v270
      %v2294 = vcombine.high %v269, %v270
      %v2296 = vunpack.c.l.s4 1966171168
      %v2297 = vunpack.c.0.s8 %v2296
      %v2298 = vlaneseq
      %v2299 = vshrl.u32 %v2298, 7
      %v2300 = vsub.s32 %v2297, %v2299
      %v2301 = vrot.slane %v2293, %v2300
      %v2303 = vunpack.c.l.s4 1966171168
      %v2304 = vunpack.c.0.s8 %v2303
      %v2305 = vlaneseq
      %v2306 = vshrl.u32 %v2305, 7
      %v2307 = vsub.s32 %v2304, %v2306
      %v2308 = vrot.slane %v2294, %v2307
      %v2309 = vcombine.high %v2301, %v2301
      %v2310 = vcombine.high %v2308, %v2308
      %v2312 = vunpack.c.l.s4 1966171168
      %v2313 = vunpack.c.0.s8 %v2312
      %v2314 = vlaneseq
      %v2315 = vshrl.u32 %v2314, 7
      %v2316 = vsub.s32 %v2313, %v2315
      %v2317 = vrot.slane %v2301, %v2316
      %v2319 = vunpack.c.l.s4 1966171168
      %v2320 = vunpack.c.0.s8 %v2319
      %v2321 = vlaneseq
      %v2322 = vshrl.u32 %v2321, 7
      %v2323 = vsub.s32 %v2320, %v2322
      %v2324 = vrot.slane %v2308, %v2323
      %v2326 = vunpack.c.l.s4 1966171168
      %v2327 = vunpack.c.0.s8 %v2326
      %v2328 = vlaneseq
      %v2329 = vshrl.u32 %v2328, 7
      %v2330 = vsub.s32 %v2327, %v2329
      %v2331 = vrot.slane %v2309, %v2330
      %v2333 = vunpack.c.l.s4 1966171168
      %v2334 = vunpack.c.0.s8 %v2333
      %v2335 = vlaneseq
      %v2336 = vshrl.u32 %v2335, 7
      %v2337 = vsub.s32 %v2334, %v2336
      %v2338 = vrot.slane %v2310, %v2337
      %v2339 = vcombine.high %v2317, %v2317
      %v2340 = vcombine.high %v2324, %v2324
      %v2341 = vcombine.high %v2331, %v2331
      %v2342 = vcombine.high %v2338, %v2338
      %v2343 = vlaneseq
      %v2344 = vshrl.u32 %v2343, 7
      %v2345 = vsub.s32 0, %v2344
      %v2346 = vrot.slane %v2167, %v2345
      %v2347 = vlaneseq
      %v2348 = vshrl.u32 %v2347, 7
      %v2349 = vsub.s32 1, %v2348
      %v2350 = vrot.slane %v2167, %v2349
      %v2351 = vlaneseq
      %v2352 = vshrl.u32 %v2351, 7
      %v2353 = vsub.s32 0, %v2352
      %v2354 = vrot.slane %v2181, %v2353
      %v2355 = vlaneseq
      %v2356 = vshrl.u32 %v2355, 7
      %v2357 = vsub.s32 1, %v2356
      %v2358 = vrot.slane %v2181, %v2357
      %v2359 = vlaneseq
      %v2360 = vshrl.u32 %v2359, 7
      %v2361 = vsub.s32 0, %v2360
      %v2362 = vrot.slane %v2189, %v2361
      %v2363 = vlaneseq
      %v2364 = vshrl.u32 %v2363, 7
      %v2365 = vsub.s32 1, %v2364
      %v2366 = vrot.slane %v2189, %v2365
      %v2367 = vlaneseq
      %v2368 = vshrl.u32 %v2367, 7
      %v2369 = vsub.s32 0, %v2368
      %v2370 = vrot.slane %v2191, %v2369
      %v2371 = vlaneseq
      %v2372 = vshrl.u32 %v2371, 7
      %v2373 = vsub.s32 1, %v2372
      %v2374 = vrot.slane %v2191, %v2373
      %v2375 = vlaneseq
      %v2376 = vshrl.u32 %v2375, 7
      %v2377 = vsub.s32 0, %v2376
      %v2378 = vrot.slane %v2174, %v2377
      %v2379 = vlaneseq
      %v2380 = vshrl.u32 %v2379, 7
      %v2381 = vsub.s32 1, %v2380
      %v2382 = vrot.slane %v2174, %v2381
      %v2383 = vlaneseq
      %v2384 = vshrl.u32 %v2383, 7
      %v2385 = vsub.s32 0, %v2384
      %v2386 = vrot.slane %v2188, %v2385
      %v2387 = vlaneseq
      %v2388 = vshrl.u32 %v2387, 7
      %v2389 = vsub.s32 1, %v2388
      %v2390 = vrot.slane %v2188, %v2389
      %v2391 = vlaneseq
      %v2392 = vshrl.u32 %v2391, 7
      %v2393 = vsub.s32 0, %v2392
      %v2394 = vrot.slane %v2190, %v2393
      %v2395 = vlaneseq
      %v2396 = vshrl.u32 %v2395, 7
      %v2397 = vsub.s32 1, %v2396
      %v2398 = vrot.slane %v2190, %v2397
      %v2399 = vlaneseq
      %v2400 = vshrl.u32 %v2399, 7
      %v2401 = vsub.s32 0, %v2400
      %v2402 = vrot.slane %v2192, %v2401
      %v2403 = vlaneseq
      %v2404 = vshrl.u32 %v2403, 7
      %v2405 = vsub.s32 1, %v2404
      %v2406 = vrot.slane %v2192, %v2405
      %v2407 = vlaneseq
      %v2408 = vshrl.u32 %v2407, 7
      %v2409 = vsub.s32 0, %v2408
      %v2410 = vrot.slane %v2217, %v2409
      %v2411 = vlaneseq
      %v2412 = vshrl.u32 %v2411, 7
      %v2413 = vsub.s32 1, %v2412
      %v2414 = vrot.slane %v2217, %v2413
      %v2415 = vlaneseq
      %v2416 = vshrl.u32 %v2415, 7
      %v2417 = vsub.s32 0, %v2416
      %v2418 = vrot.slane %v2231, %v2417
      %v2419 = vlaneseq
      %v2420 = vshrl.u32 %v2419, 7
      %v2421 = vsub.s32 1, %v2420
      %v2422 = vrot.slane %v2231, %v2421
      %v2423 = vlaneseq
      %v2424 = vshrl.u32 %v2423, 7
      %v2425 = vsub.s32 0, %v2424
      %v2426 = vrot.slane %v2239, %v2425
      %v2427 = vlaneseq
      %v2428 = vshrl.u32 %v2427, 7
      %v2429 = vsub.s32 1, %v2428
      %v2430 = vrot.slane %v2239, %v2429
      %v2431 = vlaneseq
      %v2432 = vshrl.u32 %v2431, 7
      %v2433 = vsub.s32 0, %v2432
      %v2434 = vrot.slane %v2241, %v2433
      %v2435 = vlaneseq
      %v2436 = vshrl.u32 %v2435, 7
      %v2437 = vsub.s32 1, %v2436
      %v2438 = vrot.slane %v2241, %v2437
      %v2439 = vlaneseq
      %v2440 = vshrl.u32 %v2439, 7
      %v2441 = vsub.s32 0, %v2440
      %v2442 = vrot.slane %v2224, %v2441
      %v2443 = vlaneseq
      %v2444 = vshrl.u32 %v2443, 7
      %v2445 = vsub.s32 1, %v2444
      %v2446 = vrot.slane %v2224, %v2445
      %v2447 = vlaneseq
      %v2448 = vshrl.u32 %v2447, 7
      %v2449 = vsub.s32 0, %v2448
      %v2450 = vrot.slane %v2238, %v2449
      %v2451 = vlaneseq
      %v2452 = vshrl.u32 %v2451, 7
      %v2453 = vsub.s32 1, %v2452
      %v2454 = vrot.slane %v2238, %v2453
      %v2455 = vlaneseq
      %v2456 = vshrl.u32 %v2455, 7
      %v2457 = vsub.s32 0, %v2456
      %v2458 = vrot.slane %v2240, %v2457
      %v2459 = vlaneseq
      %v2460 = vshrl.u32 %v2459, 7
      %v2461 = vsub.s32 1, %v2460
      %v2462 = vrot.slane %v2240, %v2461
      %v2463 = vlaneseq
      %v2464 = vshrl.u32 %v2463, 7
      %v2465 = vsub.s32 0, %v2464
      %v2466 = vrot.slane %v2242, %v2465
      %v2467 = vlaneseq
      %v2468 = vshrl.u32 %v2467, 7
      %v2469 = vsub.s32 1, %v2468
      %v2470 = vrot.slane %v2242, %v2469
      %v2471 = vlaneseq
      %v2472 = vshrl.u32 %v2471, 7
      %v2473 = vsub.s32 0, %v2472
      %v2474 = vrot.slane %v2267, %v2473
      %v2475 = vlaneseq
      %v2476 = vshrl.u32 %v2475, 7
      %v2477 = vsub.s32 1, %v2476
      %v2478 = vrot.slane %v2267, %v2477
      %v2479 = vlaneseq
      %v2480 = vshrl.u32 %v2479, 7
      %v2481 = vsub.s32 0, %v2480
      %v2482 = vrot.slane %v2281, %v2481
      %v2483 = vlaneseq
      %v2484 = vshrl.u32 %v2483, 7
      %v2485 = vsub.s32 1, %v2484
      %v2486 = vrot.slane %v2281, %v2485
      %v2487 = vlaneseq
      %v2488 = vshrl.u32 %v2487, 7
      %v2489 = vsub.s32 0, %v2488
      %v2490 = vrot.slane %v2289, %v2489
      %v2491 = vlaneseq
      %v2492 = vshrl.u32 %v2491, 7
      %v2493 = vsub.s32 1, %v2492
      %v2494 = vrot.slane %v2289, %v2493
      %v2495 = vlaneseq
      %v2496 = vshrl.u32 %v2495, 7
      %v2497 = vsub.s32 0, %v2496
      %v2498 = vrot.slane %v2291, %v2497
      %v2499 = vlaneseq
      %v2500 = vshrl.u32 %v2499, 7
      %v2501 = vsub.s32 1, %v2500
      %v2502 = vrot.slane %v2291, %v2501
      %v2503 = vlaneseq
      %v2504 = vshrl.u32 %v2503, 7
      %v2505 = vsub.s32 0, %v2504
      %v2506 = vrot.slane %v2274, %v2505
      %v2507 = vlaneseq
      %v2508 = vshrl.u32 %v2507, 7
      %v2509 = vsub.s32 1, %v2508
      %v2510 = vrot.slane %v2274, %v2509
      %v2511 = vlaneseq
      %v2512 = vshrl.u32 %v2511, 7
      %v2513 = vsub.s32 0, %v2512
      %v2514 = vrot.slane %v2288, %v2513
      %v2515 = vlaneseq
      %v2516 = vshrl.u32 %v2515, 7
      %v2517 = vsub.s32 1, %v2516
      %v2518 = vrot.slane %v2288, %v2517
      %v2519 = vlaneseq
      %v2520 = vshrl.u32 %v2519, 7
      %v2521 = vsub.s32 0, %v2520
      %v2522 = vrot.slane %v2290, %v2521
      %v2523 = vlaneseq
      %v2524 = vshrl.u32 %v2523, 7
      %v2525 = vsub.s32 1, %v2524
      %v2526 = vrot.slane %v2290, %v2525
      %v2527 = vlaneseq
      %v2528 = vshrl.u32 %v2527, 7
      %v2529 = vsub.s32 0, %v2528
      %v2530 = vrot.slane %v2292, %v2529
      %v2531 = vlaneseq
      %v2532 = vshrl.u32 %v2531, 7
      %v2533 = vsub.s32 1, %v2532
      %v2534 = vrot.slane %v2292, %v2533
      %v2535 = vlaneseq
      %v2536 = vshrl.u32 %v2535, 7
      %v2537 = vsub.s32 0, %v2536
      %v2538 = vrot.slane %v2317, %v2537
      %v2539 = vlaneseq
      %v2540 = vshrl.u32 %v2539, 7
      %v2541 = vsub.s32 1, %v2540
      %v2542 = vrot.slane %v2317, %v2541
      %v2543 = vlaneseq
      %v2544 = vshrl.u32 %v2543, 7
      %v2545 = vsub.s32 0, %v2544
      %v2546 = vrot.slane %v2331, %v2545
      %v2547 = vlaneseq
      %v2548 = vshrl.u32 %v2547, 7
      %v2549 = vsub.s32 1, %v2548
      %v2550 = vrot.slane %v2331, %v2549
      %v2551 = vlaneseq
      %v2552 = vshrl.u32 %v2551, 7
      %v2553 = vsub.s32 0, %v2552
      %v2554 = vrot.slane %v2339, %v2553
      %v2555 = vlaneseq
      %v2556 = vshrl.u32 %v2555, 7
      %v2557 = vsub.s32 1, %v2556
      %v2558 = vrot.slane %v2339, %v2557
      %v2559 = vlaneseq
      %v2560 = vshrl.u32 %v2559, 7
      %v2561 = vsub.s32 0, %v2560
      %v2562 = vrot.slane %v2341, %v2561
      %v2563 = vlaneseq
      %v2564 = vshrl.u32 %v2563, 7
      %v2565 = vsub.s32 1, %v2564
      %v2566 = vrot.slane %v2341, %v2565
      %v2567 = vlaneseq
      %v2568 = vshrl.u32 %v2567, 7
      %v2569 = vsub.s32 0, %v2568
      %v2570 = vrot.slane %v2324, %v2569
      %v2571 = vlaneseq
      %v2572 = vshrl.u32 %v2571, 7
      %v2573 = vsub.s32 1, %v2572
      %v2574 = vrot.slane %v2324, %v2573
      %v2575 = vlaneseq
      %v2576 = vshrl.u32 %v2575, 7
      %v2577 = vsub.s32 0, %v2576
      %v2578 = vrot.slane %v2338, %v2577
      %v2579 = vlaneseq
      %v2580 = vshrl.u32 %v2579, 7
      %v2581 = vsub.s32 1, %v2580
      %v2582 = vrot.slane %v2338, %v2581
      %v2583 = vlaneseq
      %v2584 = vshrl.u32 %v2583, 7
      %v2585 = vsub.s32 0, %v2584
      %v2586 = vrot.slane %v2340, %v2585
      %v2587 = vlaneseq
      %v2588 = vshrl.u32 %v2587, 7
      %v2589 = vsub.s32 1, %v2588
      %v2590 = vrot.slane %v2340, %v2589
      %v2591 = vlaneseq
      %v2592 = vshrl.u32 %v2591, 7
      %v2593 = vsub.s32 0, %v2592
      %v2594 = vrot.slane %v2342, %v2593
      %v2595 = vlaneseq
      %v2596 = vshrl.u32 %v2595, 7
      %v2597 = vsub.s32 1, %v2596
      %v2598 = vrot.slane %v2342, %v2597
      %2664 = vset.pattern.permute.xlu0 0
      %2665 = vperm.xlu0 %2664, %v239
      %v2666 = vpop.permute.xlu0 %2665
      %2669 = vset.pattern.permute.xlu0 0
      %2670 = vperm.xlu0 %2669, %v240
      %v2671 = vpop.permute.xlu0 %2670
      %2674 = vset.pattern.permute.xlu0 0
      %2675 = vperm.xlu0 %2674, %v241
      %v2676 = vpop.permute.xlu0 %2675
      %2679 = vset.pattern.permute.xlu0 0
      %2680 = vperm.xlu0 %2679, %v242
      %v2681 = vpop.permute.xlu0 %2680
      %v2683 = vmul.f32 %v2346, %v2666
      %v2684 = vmul.f32 %v2350, %v2666
      %v2685 = vmul.f32 %v2346, %v2671
      %v2686 = vmul.f32 %v2350, %v2671
      %v2687 = vmul.f32 %v2346, %v2676
      %v2688 = vmul.f32 %v2350, %v2676
      %v2689 = vmul.f32 %v2346, %v2681
      %v2690 = vmul.f32 %v2350, %v2681
      %v2691 = vmul.f32 %v2354, %v2666
      %v2692 = vmul.f32 %v2358, %v2666
      %v2693 = vmul.f32 %v2354, %v2671
      %v2694 = vmul.f32 %v2358, %v2671
      %v2695 = vmul.f32 %v2354, %v2676
      %v2696 = vmul.f32 %v2358, %v2676
      %v2697 = vmul.f32 %v2354, %v2681
      %v2698 = vmul.f32 %v2358, %v2681
      %v2699 = vmul.f32 %v2362, %v2666
      %v2700 = vmul.f32 %v2366, %v2666
      %v2701 = vmul.f32 %v2362, %v2671
      %v2702 = vmul.f32 %v2366, %v2671
      %v2703 = vmul.f32 %v2362, %v2676
      %v2704 = vmul.f32 %v2366, %v2676
      %v2705 = vmul.f32 %v2362, %v2681
      %v2706 = vmul.f32 %v2366, %v2681
      %v2707 = vmul.f32 %v2370, %v2666
      %v2708 = vmul.f32 %v2374, %v2666
      %v2709 = vmul.f32 %v2370, %v2671
      %v2710 = vmul.f32 %v2374, %v2671
      %v2711 = vmul.f32 %v2370, %v2676
      %v2712 = vmul.f32 %v2374, %v2676
      %v2713 = vmul.f32 %v2370, %v2681
      %v2714 = vmul.f32 %v2374, %v2681
      %v2715 = vmul.f32 %v2378, %v2666
      %v2716 = vmul.f32 %v2382, %v2666
      %v2717 = vmul.f32 %v2378, %v2671
      %v2718 = vmul.f32 %v2382, %v2671
      %v2719 = vmul.f32 %v2378, %v2676
      %v2720 = vmul.f32 %v2382, %v2676
      %v2721 = vmul.f32 %v2378, %v2681
      %v2722 = vmul.f32 %v2382, %v2681
      %v2723 = vmul.f32 %v2386, %v2666
      %v2724 = vmul.f32 %v2390, %v2666
      %v2725 = vmul.f32 %v2386, %v2671
      %v2726 = vmul.f32 %v2390, %v2671
      %v2727 = vmul.f32 %v2386, %v2676
      %v2728 = vmul.f32 %v2390, %v2676
      %v2729 = vmul.f32 %v2386, %v2681
      %v2730 = vmul.f32 %v2390, %v2681
      %v2731 = vmul.f32 %v2394, %v2666
      %v2732 = vmul.f32 %v2398, %v2666
      %v2733 = vmul.f32 %v2394, %v2671
      %v2734 = vmul.f32 %v2398, %v2671
      %v2735 = vmul.f32 %v2394, %v2676
      %v2736 = vmul.f32 %v2398, %v2676
      %v2737 = vmul.f32 %v2394, %v2681
      %v2738 = vmul.f32 %v2398, %v2681
      %v2739 = vmul.f32 %v2402, %v2666
      %v2740 = vmul.f32 %v2406, %v2666
      %v2741 = vmul.f32 %v2402, %v2671
      %v2742 = vmul.f32 %v2406, %v2671
      %v2743 = vmul.f32 %v2402, %v2676
      %v2744 = vmul.f32 %v2406, %v2676
      %v2745 = vmul.f32 %v2402, %v2681
      %v2746 = vmul.f32 %v2406, %v2681
      %v2747 = vmul.f32 %v2410, %v2666
      %v2748 = vmul.f32 %v2414, %v2666
      %v2749 = vmul.f32 %v2410, %v2671
      %v2750 = vmul.f32 %v2414, %v2671
      %v2751 = vmul.f32 %v2410, %v2676
      %v2752 = vmul.f32 %v2414, %v2676
      %v2753 = vmul.f32 %v2410, %v2681
      %v2754 = vmul.f32 %v2414, %v2681
      %v2755 = vmul.f32 %v2418, %v2666
      %v2756 = vmul.f32 %v2422, %v2666
      %v2757 = vmul.f32 %v2418, %v2671
      %v2758 = vmul.f32 %v2422, %v2671
      %v2759 = vmul.f32 %v2418, %v2676
      %v2760 = vmul.f32 %v2422, %v2676
      %v2761 = vmul.f32 %v2418, %v2681
      %v2762 = vmul.f32 %v2422, %v2681
      %v2763 = vmul.f32 %v2426, %v2666
      %v2764 = vmul.f32 %v2430, %v2666
      %v2765 = vmul.f32 %v2426, %v2671
      %v2766 = vmul.f32 %v2430, %v2671
      %v2767 = vmul.f32 %v2426, %v2676
      %v2768 = vmul.f32 %v2430, %v2676
      %v2769 = vmul.f32 %v2426, %v2681
      %v2770 = vmul.f32 %v2430, %v2681
      %v2771 = vmul.f32 %v2434, %v2666
      %v2772 = vmul.f32 %v2438, %v2666
      %v2773 = vmul.f32 %v2434, %v2671
      %v2774 = vmul.f32 %v2438, %v2671
      %v2775 = vmul.f32 %v2434, %v2676
      %v2776 = vmul.f32 %v2438, %v2676
      %v2777 = vmul.f32 %v2434, %v2681
      %v2778 = vmul.f32 %v2438, %v2681
      %v2779 = vmul.f32 %v2442, %v2666
      %v2780 = vmul.f32 %v2446, %v2666
      %v2781 = vmul.f32 %v2442, %v2671
      %v2782 = vmul.f32 %v2446, %v2671
      %v2783 = vmul.f32 %v2442, %v2676
      %v2784 = vmul.f32 %v2446, %v2676
      %v2785 = vmul.f32 %v2442, %v2681
      %v2786 = vmul.f32 %v2446, %v2681
      %v2787 = vmul.f32 %v2450, %v2666
      %v2788 = vmul.f32 %v2454, %v2666
      %v2789 = vmul.f32 %v2450, %v2671
      %v2790 = vmul.f32 %v2454, %v2671
      %v2791 = vmul.f32 %v2450, %v2676
      %v2792 = vmul.f32 %v2454, %v2676
      %v2793 = vmul.f32 %v2450, %v2681
      %v2794 = vmul.f32 %v2454, %v2681
      %v2795 = vmul.f32 %v2458, %v2666
      %v2796 = vmul.f32 %v2462, %v2666
      %v2797 = vmul.f32 %v2458, %v2671
      %v2798 = vmul.f32 %v2462, %v2671
      %v2799 = vmul.f32 %v2458, %v2676
      %v2800 = vmul.f32 %v2462, %v2676
      %v2801 = vmul.f32 %v2458, %v2681
      %v2802 = vmul.f32 %v2462, %v2681
      %v2803 = vmul.f32 %v2466, %v2666
      %v2804 = vmul.f32 %v2470, %v2666
      %v2805 = vmul.f32 %v2466, %v2671
      %v2806 = vmul.f32 %v2470, %v2671
      %v2807 = vmul.f32 %v2466, %v2676
      %v2808 = vmul.f32 %v2470, %v2676
      %v2809 = vmul.f32 %v2466, %v2681
      %v2810 = vmul.f32 %v2470, %v2681
      %v2811 = vmul.f32 %v2474, %v2666
      %v2812 = vmul.f32 %v2478, %v2666
      %v2813 = vmul.f32 %v2474, %v2671
      %v2814 = vmul.f32 %v2478, %v2671
      %v2815 = vmul.f32 %v2474, %v2676
      %v2816 = vmul.f32 %v2478, %v2676
      %v2817 = vmul.f32 %v2474, %v2681
      %v2818 = vmul.f32 %v2478, %v2681
      %v2819 = vmul.f32 %v2482, %v2666
      %v2820 = vmul.f32 %v2486, %v2666
      %v2821 = vmul.f32 %v2482, %v2671
      %v2822 = vmul.f32 %v2486, %v2671
      %v2823 = vmul.f32 %v2482, %v2676
      %v2824 = vmul.f32 %v2486, %v2676
      %v2825 = vmul.f32 %v2482, %v2681
      %v2826 = vmul.f32 %v2486, %v2681
      %v2827 = vmul.f32 %v2490, %v2666
      %v2828 = vmul.f32 %v2494, %v2666
      %v2829 = vmul.f32 %v2490, %v2671
      %v2830 = vmul.f32 %v2494, %v2671
      %v2831 = vmul.f32 %v2490, %v2676
      %v2832 = vmul.f32 %v2494, %v2676
      %v2833 = vmul.f32 %v2490, %v2681
      %v2834 = vmul.f32 %v2494, %v2681
      %v2835 = vmul.f32 %v2498, %v2666
      %v2836 = vmul.f32 %v2502, %v2666
      %v2837 = vmul.f32 %v2498, %v2671
      %v2838 = vmul.f32 %v2502, %v2671
      %v2839 = vmul.f32 %v2498, %v2676
      %v2840 = vmul.f32 %v2502, %v2676
      %v2841 = vmul.f32 %v2498, %v2681
      %v2842 = vmul.f32 %v2502, %v2681
      %v2843 = vmul.f32 %v2506, %v2666
      %v2844 = vmul.f32 %v2510, %v2666
      %v2845 = vmul.f32 %v2506, %v2671
      %v2846 = vmul.f32 %v2510, %v2671
      %v2847 = vmul.f32 %v2506, %v2676
      %v2848 = vmul.f32 %v2510, %v2676
      %v2849 = vmul.f32 %v2506, %v2681
      %v2850 = vmul.f32 %v2510, %v2681
      %v2851 = vmul.f32 %v2514, %v2666
      %v2852 = vmul.f32 %v2518, %v2666
      %v2853 = vmul.f32 %v2514, %v2671
      %v2854 = vmul.f32 %v2518, %v2671
      %v2855 = vmul.f32 %v2514, %v2676
      %v2856 = vmul.f32 %v2518, %v2676
      %v2857 = vmul.f32 %v2514, %v2681
      %v2858 = vmul.f32 %v2518, %v2681
      %v2859 = vmul.f32 %v2522, %v2666
      %v2860 = vmul.f32 %v2526, %v2666
      %v2861 = vmul.f32 %v2522, %v2671
      %v2862 = vmul.f32 %v2526, %v2671
      %v2863 = vmul.f32 %v2522, %v2676
      %v2864 = vmul.f32 %v2526, %v2676
      %v2865 = vmul.f32 %v2522, %v2681
      %v2866 = vmul.f32 %v2526, %v2681
      %v2867 = vmul.f32 %v2530, %v2666
      %v2868 = vmul.f32 %v2534, %v2666
      %v2869 = vmul.f32 %v2530, %v2671
      %v2870 = vmul.f32 %v2534, %v2671
      %v2871 = vmul.f32 %v2530, %v2676
      %v2872 = vmul.f32 %v2534, %v2676
      %v2873 = vmul.f32 %v2530, %v2681
      %v2874 = vmul.f32 %v2534, %v2681
      %v2875 = vmul.f32 %v2538, %v2666
      %v2876 = vmul.f32 %v2542, %v2666
      %v2877 = vmul.f32 %v2538, %v2671
      %v2878 = vmul.f32 %v2542, %v2671
      %v2879 = vmul.f32 %v2538, %v2676
      %v2880 = vmul.f32 %v2542, %v2676
      %v2881 = vmul.f32 %v2538, %v2681
      %v2882 = vmul.f32 %v2542, %v2681
      %v2883 = vmul.f32 %v2546, %v2666
      %v2884 = vmul.f32 %v2550, %v2666
      %v2885 = vmul.f32 %v2546, %v2671
      %v2886 = vmul.f32 %v2550, %v2671
      %v2887 = vmul.f32 %v2546, %v2676
      %v2888 = vmul.f32 %v2550, %v2676
      %v2889 = vmul.f32 %v2546, %v2681
      %v2890 = vmul.f32 %v2550, %v2681
      %v2891 = vmul.f32 %v2554, %v2666
      %v2892 = vmul.f32 %v2558, %v2666
      %v2893 = vmul.f32 %v2554, %v2671
      %v2894 = vmul.f32 %v2558, %v2671
      %v2895 = vmul.f32 %v2554, %v2676
      %v2896 = vmul.f32 %v2558, %v2676
      %v2897 = vmul.f32 %v2554, %v2681
      %v2898 = vmul.f32 %v2558, %v2681
      %v2899 = vmul.f32 %v2562, %v2666
      %v2900 = vmul.f32 %v2566, %v2666
      %v2901 = vmul.f32 %v2562, %v2671
      %v2902 = vmul.f32 %v2566, %v2671
      %v2903 = vmul.f32 %v2562, %v2676
      %v2904 = vmul.f32 %v2566, %v2676
      %v2905 = vmul.f32 %v2562, %v2681
      %v2906 = vmul.f32 %v2566, %v2681
      %v2907 = vmul.f32 %v2570, %v2666
      %v2908 = vmul.f32 %v2574, %v2666
      %v2909 = vmul.f32 %v2570, %v2671
      %v2910 = vmul.f32 %v2574, %v2671
      %v2911 = vmul.f32 %v2570, %v2676
      %v2912 = vmul.f32 %v2574, %v2676
      %v2913 = vmul.f32 %v2570, %v2681
      %v2914 = vmul.f32 %v2574, %v2681
      %v2915 = vmul.f32 %v2578, %v2666
      %v2916 = vmul.f32 %v2582, %v2666
      %v2917 = vmul.f32 %v2578, %v2671
      %v2918 = vmul.f32 %v2582, %v2671
      %v2919 = vmul.f32 %v2578, %v2676
      %v2920 = vmul.f32 %v2582, %v2676
      %v2921 = vmul.f32 %v2578, %v2681
      %v2922 = vmul.f32 %v2582, %v2681
      %v2923 = vmul.f32 %v2586, %v2666
      %v2924 = vmul.f32 %v2590, %v2666
      %v2925 = vmul.f32 %v2586, %v2671
      %v2926 = vmul.f32 %v2590, %v2671
      %v2927 = vmul.f32 %v2586, %v2676
      %v2928 = vmul.f32 %v2590, %v2676
      %v2929 = vmul.f32 %v2586, %v2681
      %v2930 = vmul.f32 %v2590, %v2681
      %v2931 = vmul.f32 %v2594, %v2666
      %v2932 = vmul.f32 %v2598, %v2666
      %v2933 = vmul.f32 %v2594, %v2671
      %v2934 = vmul.f32 %v2598, %v2671
      %v2935 = vmul.f32 %v2594, %v2676
      %v2936 = vmul.f32 %v2598, %v2676
      %v2937 = vmul.f32 %v2594, %v2681
      %v2938 = vmul.f32 %v2598, %v2681
      %v2939 = vadd.f32 %v1879, %v2683
      %v2940 = vadd.f32 %v1880, %v2684
      %v2941 = vadd.f32 %v1881, %v2685
      %v2942 = vadd.f32 %v1882, %v2686
      %v2943 = vadd.f32 %v1883, %v2687
      %v2944 = vadd.f32 %v1884, %v2688
      %v2945 = vadd.f32 %v1885, %v2689
      %v2946 = vadd.f32 %v1886, %v2690
      %v2947 = vadd.f32 %v1887, %v2691
      %v2948 = vadd.f32 %v1888, %v2692
      %v2949 = vadd.f32 %v1889, %v2693
      %v2950 = vadd.f32 %v1890, %v2694
      %v2951 = vadd.f32 %v1891, %v2695
      %v2952 = vadd.f32 %v1892, %v2696
      %v2953 = vadd.f32 %v1893, %v2697
      %v2954 = vadd.f32 %v1894, %v2698
      %v2955 = vadd.f32 %v1895, %v2699
      %v2956 = vadd.f32 %v1896, %v2700
      %v2957 = vadd.f32 %v1897, %v2701
      %v2958 = vadd.f32 %v1898, %v2702
      %v2959 = vadd.f32 %v1899, %v2703
      %v2960 = vadd.f32 %v1900, %v2704
      %v2961 = vadd.f32 %v1901, %v2705
      %v2962 = vadd.f32 %v1902, %v2706
      %v2963 = vadd.f32 %v1903, %v2707
      %v2964 = vadd.f32 %v1904, %v2708
      %v2965 = vadd.f32 %v1905, %v2709
      %v2966 = vadd.f32 %v1906, %v2710
      %v2967 = vadd.f32 %v1907, %v2711
      %v2968 = vadd.f32 %v1908, %v2712
      %v2969 = vadd.f32 %v1909, %v2713
      %v2970 = vadd.f32 %v1910, %v2714
      %v2971 = vadd.f32 %v1911, %v2715
      %v2972 = vadd.f32 %v1912, %v2716
      %v2973 = vadd.f32 %v1913, %v2717
      %v2974 = vadd.f32 %v1914, %v2718
      %v2975 = vadd.f32 %v1915, %v2719
      %v2976 = vadd.f32 %v1916, %v2720
      %v2977 = vadd.f32 %v1917, %v2721
      %v2978 = vadd.f32 %v1918, %v2722
      %v2979 = vadd.f32 %v1919, %v2723
      %v2980 = vadd.f32 %v1920, %v2724
      %v2981 = vadd.f32 %v1921, %v2725
      %v2982 = vadd.f32 %v1922, %v2726
      %v2983 = vadd.f32 %v1923, %v2727
      %v2984 = vadd.f32 %v1924, %v2728
      %v2985 = vadd.f32 %v1925, %v2729
      %v2986 = vadd.f32 %v1926, %v2730
      %v2987 = vadd.f32 %v1927, %v2731
      %v2988 = vadd.f32 %v1928, %v2732
      %v2989 = vadd.f32 %v1929, %v2733
      %v2990 = vadd.f32 %v1930, %v2734
      %v2991 = vadd.f32 %v1931, %v2735
      %v2992 = vadd.f32 %v1932, %v2736
      %v2993 = vadd.f32 %v1933, %v2737
      %v2994 = vadd.f32 %v1934, %v2738
      %v2995 = vadd.f32 %v1935, %v2739
      %v2996 = vadd.f32 %v1936, %v2740
      %v2997 = vadd.f32 %v1937, %v2741
      %v2998 = vadd.f32 %v1938, %v2742
      %v2999 = vadd.f32 %v1939, %v2743
      %v3000 = vadd.f32 %v1940, %v2744
      %v3001 = vadd.f32 %v1941, %v2745
      %v3002 = vadd.f32 %v1942, %v2746
      %v3003 = vadd.f32 %v1943, %v2747
      %v3004 = vadd.f32 %v1944, %v2748
      %v3005 = vadd.f32 %v1945, %v2749
      %v3006 = vadd.f32 %v1946, %v2750
      %v3007 = vadd.f32 %v1947, %v2751
      %v3008 = vadd.f32 %v1948, %v2752
      %v3009 = vadd.f32 %v1949, %v2753
      %v3010 = vadd.f32 %v1950, %v2754
      %v3011 = vadd.f32 %v1951, %v2755
      %v3012 = vadd.f32 %v1952, %v2756
      %v3013 = vadd.f32 %v1953, %v2757
      %v3014 = vadd.f32 %v1954, %v2758
      %v3015 = vadd.f32 %v1955, %v2759
      %v3016 = vadd.f32 %v1956, %v2760
      %v3017 = vadd.f32 %v1957, %v2761
      %v3018 = vadd.f32 %v1958, %v2762
      %v3019 = vadd.f32 %v1959, %v2763
      %v3020 = vadd.f32 %v1960, %v2764
      %v3021 = vadd.f32 %v1961, %v2765
      %v3022 = vadd.f32 %v1962, %v2766
      %v3023 = vadd.f32 %v1963, %v2767
      %v3024 = vadd.f32 %v1964, %v2768
      %v3025 = vadd.f32 %v1965, %v2769
      %v3026 = vadd.f32 %v1966, %v2770
      %v3027 = vadd.f32 %v1967, %v2771
      %v3028 = vadd.f32 %v1968, %v2772
      %v3029 = vadd.f32 %v1969, %v2773
      %v3030 = vadd.f32 %v1970, %v2774
      %v3031 = vadd.f32 %v1971, %v2775
      %v3032 = vadd.f32 %v1972, %v2776
      %v3033 = vadd.f32 %v1973, %v2777
      %v3034 = vadd.f32 %v1974, %v2778
      %v3035 = vadd.f32 %v1975, %v2779
      %v3036 = vadd.f32 %v1976, %v2780
      %v3037 = vadd.f32 %v1977, %v2781
      %v3038 = vadd.f32 %v1978, %v2782
      %v3039 = vadd.f32 %v1979, %v2783
      %v3040 = vadd.f32 %v1980, %v2784
      %v3041 = vadd.f32 %v1981, %v2785
      %v3042 = vadd.f32 %v1982, %v2786
      %v3043 = vadd.f32 %v1983, %v2787
      %v3044 = vadd.f32 %v1984, %v2788
      %v3045 = vadd.f32 %v1985, %v2789
      %v3046 = vadd.f32 %v1986, %v2790
      %v3047 = vadd.f32 %v1987, %v2791
      %v3048 = vadd.f32 %v1988, %v2792
      %v3049 = vadd.f32 %v1989, %v2793
      %v3050 = vadd.f32 %v1990, %v2794
      %v3051 = vadd.f32 %v1991, %v2795
      %v3052 = vadd.f32 %v1992, %v2796
      %v3053 = vadd.f32 %v1993, %v2797
      %v3054 = vadd.f32 %v1994, %v2798
      %v3055 = vadd.f32 %v1995, %v2799
      %v3056 = vadd.f32 %v1996, %v2800
      %v3057 = vadd.f32 %v1997, %v2801
      %v3058 = vadd.f32 %v1998, %v2802
      %v3059 = vadd.f32 %v1999, %v2803
      %v3060 = vadd.f32 %v2000, %v2804
      %v3061 = vadd.f32 %v2001, %v2805
      %v3062 = vadd.f32 %v2002, %v2806
      %v3063 = vadd.f32 %v2003, %v2807
      %v3064 = vadd.f32 %v2004, %v2808
      %v3065 = vadd.f32 %v2005, %v2809
      %v3066 = vadd.f32 %v2006, %v2810
      %v3067 = vadd.f32 %v2007, %v2811
      %v3068 = vadd.f32 %v2008, %v2812
      %v3069 = vadd.f32 %v2009, %v2813
      %v3070 = vadd.f32 %v2010, %v2814
      %v3071 = vadd.f32 %v2011, %v2815
      %v3072 = vadd.f32 %v2012, %v2816
      %v3073 = vadd.f32 %v2013, %v2817
      %v3074 = vadd.f32 %v2014, %v2818
      %v3075 = vadd.f32 %v2015, %v2819
      %v3076 = vadd.f32 %v2016, %v2820
      %v3077 = vadd.f32 %v2017, %v2821
      %v3078 = vadd.f32 %v2018, %v2822
      %v3079 = vadd.f32 %v2019, %v2823
      %v3080 = vadd.f32 %v2020, %v2824
      %v3081 = vadd.f32 %v2021, %v2825
      %v3082 = vadd.f32 %v2022, %v2826
      %v3083 = vadd.f32 %v2023, %v2827
      %v3084 = vadd.f32 %v2024, %v2828
      %v3085 = vadd.f32 %v2025, %v2829
      %v3086 = vadd.f32 %v2026, %v2830
      %v3087 = vadd.f32 %v2027, %v2831
      %v3088 = vadd.f32 %v2028, %v2832
      %v3089 = vadd.f32 %v2029, %v2833
      %v3090 = vadd.f32 %v2030, %v2834
      %v3091 = vadd.f32 %v2031, %v2835
      %v3092 = vadd.f32 %v2032, %v2836
      %v3093 = vadd.f32 %v2033, %v2837
      %v3094 = vadd.f32 %v2034, %v2838
      %v3095 = vadd.f32 %v2035, %v2839
      %v3096 = vadd.f32 %v2036, %v2840
      %v3097 = vadd.f32 %v2037, %v2841
      %v3098 = vadd.f32 %v2038, %v2842
      %v3099 = vadd.f32 %v2039, %v2843
      %v3100 = vadd.f32 %v2040, %v2844
      %v3101 = vadd.f32 %v2041, %v2845
      %v3102 = vadd.f32 %v2042, %v2846
      %v3103 = vadd.f32 %v2043, %v2847
      %v3104 = vadd.f32 %v2044, %v2848
      %v3105 = vadd.f32 %v2045, %v2849
      %v3106 = vadd.f32 %v2046, %v2850
      %v3107 = vadd.f32 %v2047, %v2851
      %v3108 = vadd.f32 %v2048, %v2852
      %v3109 = vadd.f32 %v2049, %v2853
      %v3110 = vadd.f32 %v2050, %v2854
      %v3111 = vadd.f32 %v2051, %v2855
      %v3112 = vadd.f32 %v2052, %v2856
      %v3113 = vadd.f32 %v2053, %v2857
      %v3114 = vadd.f32 %v2054, %v2858
      %v3115 = vadd.f32 %v2055, %v2859
      %v3116 = vadd.f32 %v2056, %v2860
      %v3117 = vadd.f32 %v2057, %v2861
      %v3118 = vadd.f32 %v2058, %v2862
      %v3119 = vadd.f32 %v2059, %v2863
      %v3120 = vadd.f32 %v2060, %v2864
      %v3121 = vadd.f32 %v2061, %v2865
      %v3122 = vadd.f32 %v2062, %v2866
      %v3123 = vadd.f32 %v2063, %v2867
      %v3124 = vadd.f32 %v2064, %v2868
      %v3125 = vadd.f32 %v2065, %v2869
      %v3126 = vadd.f32 %v2066, %v2870
      %v3127 = vadd.f32 %v2067, %v2871
      %v3128 = vadd.f32 %v2068, %v2872
      %v3129 = vadd.f32 %v2069, %v2873
      %v3130 = vadd.f32 %v2070, %v2874
      %v3131 = vadd.f32 %v2071, %v2875
      %v3132 = vadd.f32 %v2072, %v2876
      %v3133 = vadd.f32 %v2073, %v2877
      %v3134 = vadd.f32 %v2074, %v2878
      %v3135 = vadd.f32 %v2075, %v2879
      %v3136 = vadd.f32 %v2076, %v2880
      %v3137 = vadd.f32 %v2077, %v2881
      %v3138 = vadd.f32 %v2078, %v2882
      %v3139 = vadd.f32 %v2079, %v2883
      %v3140 = vadd.f32 %v2080, %v2884
      %v3141 = vadd.f32 %v2081, %v2885
      %v3142 = vadd.f32 %v2082, %v2886
      %v3143 = vadd.f32 %v2083, %v2887
      %v3144 = vadd.f32 %v2084, %v2888
      %v3145 = vadd.f32 %v2085, %v2889
      %v3146 = vadd.f32 %v2086, %v2890
      %v3147 = vadd.f32 %v2087, %v2891
      %v3148 = vadd.f32 %v2088, %v2892
      %v3149 = vadd.f32 %v2089, %v2893
      %v3150 = vadd.f32 %v2090, %v2894
      %v3151 = vadd.f32 %v2091, %v2895
      %v3152 = vadd.f32 %v2092, %v2896
      %v3153 = vadd.f32 %v2093, %v2897
      %v3154 = vadd.f32 %v2094, %v2898
      %v3155 = vadd.f32 %v2095, %v2899
      %v3156 = vadd.f32 %v2096, %v2900
      %v3157 = vadd.f32 %v2097, %v2901
      %v3158 = vadd.f32 %v2098, %v2902
      %v3159 = vadd.f32 %v2099, %v2903
      %v3160 = vadd.f32 %v2100, %v2904
      %v3161 = vadd.f32 %v2101, %v2905
      %v3162 = vadd.f32 %v2102, %v2906
      %v3163 = vadd.f32 %v2103, %v2907
      %v3164 = vadd.f32 %v2104, %v2908
      %v3165 = vadd.f32 %v2105, %v2909
      %v3166 = vadd.f32 %v2106, %v2910
      %v3167 = vadd.f32 %v2107, %v2911
      %v3168 = vadd.f32 %v2108, %v2912
      %v3169 = vadd.f32 %v2109, %v2913
      %v3170 = vadd.f32 %v2110, %v2914
      %v3171 = vadd.f32 %v2111, %v2915
      %v3172 = vadd.f32 %v2112, %v2916
      %v3173 = vadd.f32 %v2113, %v2917
      %v3174 = vadd.f32 %v2114, %v2918
      %v3175 = vadd.f32 %v2115, %v2919
      %v3176 = vadd.f32 %v2116, %v2920
      %v3177 = vadd.f32 %v2117, %v2921
      %v3178 = vadd.f32 %v2118, %v2922
      %v3179 = vadd.f32 %v2119, %v2923
      %v3180 = vadd.f32 %v2120, %v2924
      %v3181 = vadd.f32 %v2121, %v2925
      %v3182 = vadd.f32 %v2122, %v2926
      %v3183 = vadd.f32 %v2123, %v2927
      %v3184 = vadd.f32 %v2124, %v2928
      %v3185 = vadd.f32 %v2125, %v2929
      %v3186 = vadd.f32 %v2126, %v2930
      %v3187 = vadd.f32 %v2127, %v2931
      %v3188 = vadd.f32 %v2128, %v2932
      %v3189 = vadd.f32 %v2129, %v2933
      %v3190 = vadd.f32 %v2130, %v2934
      %v3191 = vadd.f32 %v2131, %v2935
      %v3192 = vadd.f32 %v2132, %v2936
      %v3193 = vadd.f32 %v2133, %v2937
      %v3194 = vadd.f32 %v2134, %v2938
      %3196 = vset.pattern.permute.xlu0 0
      %3197 = vperm.xlu0 %3196, %v243
      %v3198 = vpop.permute.xlu0 %3197
      %3201 = vset.pattern.permute.xlu0 0
      %3202 = vperm.xlu0 %3201, %v244
      %v3203 = vpop.permute.xlu0 %3202
      %3206 = vset.pattern.permute.xlu0 0
      %3207 = vperm.xlu0 %3206, %v245
      %v3208 = vpop.permute.xlu0 %3207
      %3211 = vset.pattern.permute.xlu0 0
      %3212 = vperm.xlu0 %3211, %v246
      %v3213 = vpop.permute.xlu0 %3212
      %v3215 = vadd.f32 %v2939, %v3198
      %v3216 = vadd.f32 %v2940, %v3198
      %v3217 = vadd.f32 %v2941, %v3203
      %v3218 = vadd.f32 %v2942, %v3203
      %v3219 = vadd.f32 %v2943, %v3208
      %v3220 = vadd.f32 %v2944, %v3208
      %v3221 = vadd.f32 %v2945, %v3213
      %v3222 = vadd.f32 %v2946, %v3213
      %v3223 = vadd.f32 %v2947, %v3198
      %v3224 = vadd.f32 %v2948, %v3198
      %v3225 = vadd.f32 %v2949, %v3203
      %v3226 = vadd.f32 %v2950, %v3203
      %v3227 = vadd.f32 %v2951, %v3208
      %v3228 = vadd.f32 %v2952, %v3208
      %v3229 = vadd.f32 %v2953, %v3213
      %v3230 = vadd.f32 %v2954, %v3213
      %v3231 = vadd.f32 %v2955, %v3198
      %v3232 = vadd.f32 %v2956, %v3198
      %v3233 = vadd.f32 %v2957, %v3203
      %v3234 = vadd.f32 %v2958, %v3203
      %v3235 = vadd.f32 %v2959, %v3208
      %v3236 = vadd.f32 %v2960, %v3208
      %v3237 = vadd.f32 %v2961, %v3213
      %v3238 = vadd.f32 %v2962, %v3213
      %v3239 = vadd.f32 %v2963, %v3198
      %v3240 = vadd.f32 %v2964, %v3198
      %v3241 = vadd.f32 %v2965, %v3203
      %v3242 = vadd.f32 %v2966, %v3203
      %v3243 = vadd.f32 %v2967, %v3208
      %v3244 = vadd.f32 %v2968, %v3208
      %v3245 = vadd.f32 %v2969, %v3213
      %v3246 = vadd.f32 %v2970, %v3213
      %v3247 = vadd.f32 %v2971, %v3198
      %v3248 = vadd.f32 %v2972, %v3198
      %v3249 = vadd.f32 %v2973, %v3203
      %v3250 = vadd.f32 %v2974, %v3203
      %v3251 = vadd.f32 %v2975, %v3208
      %v3252 = vadd.f32 %v2976, %v3208
      %v3253 = vadd.f32 %v2977, %v3213
      %v3254 = vadd.f32 %v2978, %v3213
      %v3255 = vadd.f32 %v2979, %v3198
      %v3256 = vadd.f32 %v2980, %v3198
      %v3257 = vadd.f32 %v2981, %v3203
      %v3258 = vadd.f32 %v2982, %v3203
      %v3259 = vadd.f32 %v2983, %v3208
      %v3260 = vadd.f32 %v2984, %v3208
      %v3261 = vadd.f32 %v2985, %v3213
      %v3262 = vadd.f32 %v2986, %v3213
      %v3263 = vadd.f32 %v2987, %v3198
      %v3264 = vadd.f32 %v2988, %v3198
      %v3265 = vadd.f32 %v2989, %v3203
      %v3266 = vadd.f32 %v2990, %v3203
      %v3267 = vadd.f32 %v2991, %v3208
      %v3268 = vadd.f32 %v2992, %v3208
      %v3269 = vadd.f32 %v2993, %v3213
      %v3270 = vadd.f32 %v2994, %v3213
      %v3271 = vadd.f32 %v2995, %v3198
      %v3272 = vadd.f32 %v2996, %v3198
      %v3273 = vadd.f32 %v2997, %v3203
      %v3274 = vadd.f32 %v2998, %v3203
      %v3275 = vadd.f32 %v2999, %v3208
      %v3276 = vadd.f32 %v3000, %v3208
      %v3277 = vadd.f32 %v3001, %v3213
      %v3278 = vadd.f32 %v3002, %v3213
      %v3279 = vadd.f32 %v3003, %v3198
      %v3280 = vadd.f32 %v3004, %v3198
      %v3281 = vadd.f32 %v3005, %v3203
      %v3282 = vadd.f32 %v3006, %v3203
      %v3283 = vadd.f32 %v3007, %v3208
      %v3284 = vadd.f32 %v3008, %v3208
      %v3285 = vadd.f32 %v3009, %v3213
      %v3286 = vadd.f32 %v3010, %v3213
      %v3287 = vadd.f32 %v3011, %v3198
      %v3288 = vadd.f32 %v3012, %v3198
      %v3289 = vadd.f32 %v3013, %v3203
      %v3290 = vadd.f32 %v3014, %v3203
      %v3291 = vadd.f32 %v3015, %v3208
      %v3292 = vadd.f32 %v3016, %v3208
      %v3293 = vadd.f32 %v3017, %v3213
      %v3294 = vadd.f32 %v3018, %v3213
      %v3295 = vadd.f32 %v3019, %v3198
      %v3296 = vadd.f32 %v3020, %v3198
      %v3297 = vadd.f32 %v3021, %v3203
      %v3298 = vadd.f32 %v3022, %v3203
      %v3299 = vadd.f32 %v3023, %v3208
      %v3300 = vadd.f32 %v3024, %v3208
      %v3301 = vadd.f32 %v3025, %v3213
      %v3302 = vadd.f32 %v3026, %v3213
      %v3303 = vadd.f32 %v3027, %v3198
      %v3304 = vadd.f32 %v3028, %v3198
      %v3305 = vadd.f32 %v3029, %v3203
      %v3306 = vadd.f32 %v3030, %v3203
      %v3307 = vadd.f32 %v3031, %v3208
      %v3308 = vadd.f32 %v3032, %v3208
      %v3309 = vadd.f32 %v3033, %v3213
      %v3310 = vadd.f32 %v3034, %v3213
      %v3311 = vadd.f32 %v3035, %v3198
      %v3312 = vadd.f32 %v3036, %v3198
      %v3313 = vadd.f32 %v3037, %v3203
      %v3314 = vadd.f32 %v3038, %v3203
      %v3315 = vadd.f32 %v3039, %v3208
      %v3316 = vadd.f32 %v3040, %v3208
      %v3317 = vadd.f32 %v3041, %v3213
      %v3318 = vadd.f32 %v3042, %v3213
      %v3319 = vadd.f32 %v3043, %v3198
      %v3320 = vadd.f32 %v3044, %v3198
      %v3321 = vadd.f32 %v3045, %v3203
      %v3322 = vadd.f32 %v3046, %v3203
      %v3323 = vadd.f32 %v3047, %v3208
      %v3324 = vadd.f32 %v3048, %v3208
      %v3325 = vadd.f32 %v3049, %v3213
      %v3326 = vadd.f32 %v3050, %v3213
      %v3327 = vadd.f32 %v3051, %v3198
      %v3328 = vadd.f32 %v3052, %v3198
      %v3329 = vadd.f32 %v3053, %v3203
      %v3330 = vadd.f32 %v3054, %v3203
      %v3331 = vadd.f32 %v3055, %v3208
      %v3332 = vadd.f32 %v3056, %v3208
      %v3333 = vadd.f32 %v3057, %v3213
      %v3334 = vadd.f32 %v3058, %v3213
      %v3335 = vadd.f32 %v3059, %v3198
      %v3336 = vadd.f32 %v3060, %v3198
      %v3337 = vadd.f32 %v3061, %v3203
      %v3338 = vadd.f32 %v3062, %v3203
      %v3339 = vadd.f32 %v3063, %v3208
      %v3340 = vadd.f32 %v3064, %v3208
      %v3341 = vadd.f32 %v3065, %v3213
      %v3342 = vadd.f32 %v3066, %v3213
      %v3343 = vadd.f32 %v3067, %v3198
      %v3344 = vadd.f32 %v3068, %v3198
      %v3345 = vadd.f32 %v3069, %v3203
      %v3346 = vadd.f32 %v3070, %v3203
      %v3347 = vadd.f32 %v3071, %v3208
      %v3348 = vadd.f32 %v3072, %v3208
      %v3349 = vadd.f32 %v3073, %v3213
      %v3350 = vadd.f32 %v3074, %v3213
      %v3351 = vadd.f32 %v3075, %v3198
      %v3352 = vadd.f32 %v3076, %v3198
      %v3353 = vadd.f32 %v3077, %v3203
      %v3354 = vadd.f32 %v3078, %v3203
      %v3355 = vadd.f32 %v3079, %v3208
      %v3356 = vadd.f32 %v3080, %v3208
      %v3357 = vadd.f32 %v3081, %v3213
      %v3358 = vadd.f32 %v3082, %v3213
      %v3359 = vadd.f32 %v3083, %v3198
      %v3360 = vadd.f32 %v3084, %v3198
      %v3361 = vadd.f32 %v3085, %v3203
      %v3362 = vadd.f32 %v3086, %v3203
      %v3363 = vadd.f32 %v3087, %v3208
      %v3364 = vadd.f32 %v3088, %v3208
      %v3365 = vadd.f32 %v3089, %v3213
      %v3366 = vadd.f32 %v3090, %v3213
      %v3367 = vadd.f32 %v3091, %v3198
      %v3368 = vadd.f32 %v3092, %v3198
      %v3369 = vadd.f32 %v3093, %v3203
      %v3370 = vadd.f32 %v3094, %v3203
      %v3371 = vadd.f32 %v3095, %v3208
      %v3372 = vadd.f32 %v3096, %v3208
      %v3373 = vadd.f32 %v3097, %v3213
      %v3374 = vadd.f32 %v3098, %v3213
      %v3375 = vadd.f32 %v3099, %v3198
      %v3376 = vadd.f32 %v3100, %v3198
      %v3377 = vadd.f32 %v3101, %v3203
      %v3378 = vadd.f32 %v3102, %v3203
      %v3379 = vadd.f32 %v3103, %v3208
      %v3380 = vadd.f32 %v3104, %v3208
      %v3381 = vadd.f32 %v3105, %v3213
      %v3382 = vadd.f32 %v3106, %v3213
      %v3383 = vadd.f32 %v3107, %v3198
      %v3384 = vadd.f32 %v3108, %v3198
      %v3385 = vadd.f32 %v3109, %v3203
      %v3386 = vadd.f32 %v3110, %v3203
      %v3387 = vadd.f32 %v3111, %v3208
      %v3388 = vadd.f32 %v3112, %v3208
      %v3389 = vadd.f32 %v3113, %v3213
      %v3390 = vadd.f32 %v3114, %v3213
      %v3391 = vadd.f32 %v3115, %v3198
      %v3392 = vadd.f32 %v3116, %v3198
      %v3393 = vadd.f32 %v3117, %v3203
      %v3394 = vadd.f32 %v3118, %v3203
      %v3395 = vadd.f32 %v3119, %v3208
      %v3396 = vadd.f32 %v3120, %v3208
      %v3397 = vadd.f32 %v3121, %v3213
      %v3398 = vadd.f32 %v3122, %v3213
      %v3399 = vadd.f32 %v3123, %v3198
      %v3400 = vadd.f32 %v3124, %v3198
      %v3401 = vadd.f32 %v3125, %v3203
      %v3402 = vadd.f32 %v3126, %v3203
      %v3403 = vadd.f32 %v3127, %v3208
      %v3404 = vadd.f32 %v3128, %v3208
      %v3405 = vadd.f32 %v3129, %v3213
      %v3406 = vadd.f32 %v3130, %v3213
      %v3407 = vadd.f32 %v3131, %v3198
      %v3408 = vadd.f32 %v3132, %v3198
      %v3409 = vadd.f32 %v3133, %v3203
      %v3410 = vadd.f32 %v3134, %v3203
      %v3411 = vadd.f32 %v3135, %v3208
      %v3412 = vadd.f32 %v3136, %v3208
      %v3413 = vadd.f32 %v3137, %v3213
      %v3414 = vadd.f32 %v3138, %v3213
      %v3415 = vadd.f32 %v3139, %v3198
      %v3416 = vadd.f32 %v3140, %v3198
      %v3417 = vadd.f32 %v3141, %v3203
      %v3418 = vadd.f32 %v3142, %v3203
      %v3419 = vadd.f32 %v3143, %v3208
      %v3420 = vadd.f32 %v3144, %v3208
      %v3421 = vadd.f32 %v3145, %v3213
      %v3422 = vadd.f32 %v3146, %v3213
      %v3423 = vadd.f32 %v3147, %v3198
      %v3424 = vadd.f32 %v3148, %v3198
      %v3425 = vadd.f32 %v3149, %v3203
      %v3426 = vadd.f32 %v3150, %v3203
      %v3427 = vadd.f32 %v3151, %v3208
      %v3428 = vadd.f32 %v3152, %v3208
      %v3429 = vadd.f32 %v3153, %v3213
      %v3430 = vadd.f32 %v3154, %v3213
      %v3431 = vadd.f32 %v3155, %v3198
      %v3432 = vadd.f32 %v3156, %v3198
      %v3433 = vadd.f32 %v3157, %v3203
      %v3434 = vadd.f32 %v3158, %v3203
      %v3435 = vadd.f32 %v3159, %v3208
      %v3436 = vadd.f32 %v3160, %v3208
      %v3437 = vadd.f32 %v3161, %v3213
      %v3438 = vadd.f32 %v3162, %v3213
      %v3439 = vadd.f32 %v3163, %v3198
      %v3440 = vadd.f32 %v3164, %v3198
      %v3441 = vadd.f32 %v3165, %v3203
      %v3442 = vadd.f32 %v3166, %v3203
      %v3443 = vadd.f32 %v3167, %v3208
      %v3444 = vadd.f32 %v3168, %v3208
      %v3445 = vadd.f32 %v3169, %v3213
      %v3446 = vadd.f32 %v3170, %v3213
      %v3447 = vadd.f32 %v3171, %v3198
      %v3448 = vadd.f32 %v3172, %v3198
      %v3449 = vadd.f32 %v3173, %v3203
      %v3450 = vadd.f32 %v3174, %v3203
      %v3451 = vadd.f32 %v3175, %v3208
      %v3452 = vadd.f32 %v3176, %v3208
      %v3453 = vadd.f32 %v3177, %v3213
      %v3454 = vadd.f32 %v3178, %v3213
      %v3455 = vadd.f32 %v3179, %v3198
      %v3456 = vadd.f32 %v3180, %v3198
      %v3457 = vadd.f32 %v3181, %v3203
      %v3458 = vadd.f32 %v3182, %v3203
      %v3459 = vadd.f32 %v3183, %v3208
      %v3460 = vadd.f32 %v3184, %v3208
      %v3461 = vadd.f32 %v3185, %v3213
      %v3462 = vadd.f32 %v3186, %v3213
      %v3463 = vadd.f32 %v3187, %v3198
      %v3464 = vadd.f32 %v3188, %v3198
      %v3465 = vadd.f32 %v3189, %v3203
      %v3466 = vadd.f32 %v3190, %v3203
      %v3467 = vadd.f32 %v3191, %v3208
      %v3468 = vadd.f32 %v3192, %v3208
      %v3469 = vadd.f32 %v3193, %v3213
      %v3470 = vadd.f32 %v3194, %v3213
      %v3471 = vmax.f32 %v3215, 0.0
      %v3472 = vmax.f32 %v3216, 0.0
      %v3473 = vmax.f32 %v3217, 0.0
      %v3474 = vmax.f32 %v3218, 0.0
      %v3475 = vmax.f32 %v3219, 0.0
      %v3476 = vmax.f32 %v3220, 0.0
      %v3477 = vmax.f32 %v3221, 0.0
      %v3478 = vmax.f32 %v3222, 0.0
      %v3479 = vmax.f32 %v3223, 0.0
      %v3480 = vmax.f32 %v3224, 0.0
      %v3481 = vmax.f32 %v3225, 0.0
      %v3482 = vmax.f32 %v3226, 0.0
      %v3483 = vmax.f32 %v3227, 0.0
      %v3484 = vmax.f32 %v3228, 0.0
      %v3485 = vmax.f32 %v3229, 0.0
      %v3486 = vmax.f32 %v3230, 0.0
      %v3487 = vmax.f32 %v3231, 0.0
      %v3488 = vmax.f32 %v3232, 0.0
      %v3489 = vmax.f32 %v3233, 0.0
      %v3490 = vmax.f32 %v3234, 0.0
      %v3491 = vmax.f32 %v3235, 0.0
      %v3492 = vmax.f32 %v3236, 0.0
      %v3493 = vmax.f32 %v3237, 0.0
      %v3494 = vmax.f32 %v3238, 0.0
      %v3495 = vmax.f32 %v3239, 0.0
      %v3496 = vmax.f32 %v3240, 0.0
      %v3497 = vmax.f32 %v3241, 0.0
      %v3498 = vmax.f32 %v3242, 0.0
      %v3499 = vmax.f32 %v3243, 0.0
      %v3500 = vmax.f32 %v3244, 0.0
      %v3501 = vmax.f32 %v3245, 0.0
      %v3502 = vmax.f32 %v3246, 0.0
      %v3503 = vmax.f32 %v3247, 0.0
      %v3504 = vmax.f32 %v3248, 0.0
      %v3505 = vmax.f32 %v3249, 0.0
      %v3506 = vmax.f32 %v3250, 0.0
      %v3507 = vmax.f32 %v3251, 0.0
      %v3508 = vmax.f32 %v3252, 0.0
      %v3509 = vmax.f32 %v3253, 0.0
      %v3510 = vmax.f32 %v3254, 0.0
      %v3511 = vmax.f32 %v3255, 0.0
      %v3512 = vmax.f32 %v3256, 0.0
      %v3513 = vmax.f32 %v3257, 0.0
      %v3514 = vmax.f32 %v3258, 0.0
      %v3515 = vmax.f32 %v3259, 0.0
      %v3516 = vmax.f32 %v3260, 0.0
      %v3517 = vmax.f32 %v3261, 0.0
      %v3518 = vmax.f32 %v3262, 0.0
      %v3519 = vmax.f32 %v3263, 0.0
      %v3520 = vmax.f32 %v3264, 0.0
      %v3521 = vmax.f32 %v3265, 0.0
      %v3522 = vmax.f32 %v3266, 0.0
      %v3523 = vmax.f32 %v3267, 0.0
      %v3524 = vmax.f32 %v3268, 0.0
      %v3525 = vmax.f32 %v3269, 0.0
      %v3526 = vmax.f32 %v3270, 0.0
      %v3527 = vmax.f32 %v3271, 0.0
      %v3528 = vmax.f32 %v3272, 0.0
      %v3529 = vmax.f32 %v3273, 0.0
      %v3530 = vmax.f32 %v3274, 0.0
      %v3531 = vmax.f32 %v3275, 0.0
      %v3532 = vmax.f32 %v3276, 0.0
      %v3533 = vmax.f32 %v3277, 0.0
      %v3534 = vmax.f32 %v3278, 0.0
      %v3535 = vmax.f32 %v3279, 0.0
      %v3536 = vmax.f32 %v3280, 0.0
      %v3537 = vmax.f32 %v3281, 0.0
      %v3538 = vmax.f32 %v3282, 0.0
      %v3539 = vmax.f32 %v3283, 0.0
      %v3540 = vmax.f32 %v3284, 0.0
      %v3541 = vmax.f32 %v3285, 0.0
      %v3542 = vmax.f32 %v3286, 0.0
      %v3543 = vmax.f32 %v3287, 0.0
      %v3544 = vmax.f32 %v3288, 0.0
      %v3545 = vmax.f32 %v3289, 0.0
      %v3546 = vmax.f32 %v3290, 0.0
      %v3547 = vmax.f32 %v3291, 0.0
      %v3548 = vmax.f32 %v3292, 0.0
      %v3549 = vmax.f32 %v3293, 0.0
      %v3550 = vmax.f32 %v3294, 0.0
      %v3551 = vmax.f32 %v3295, 0.0
      %v3552 = vmax.f32 %v3296, 0.0
      %v3553 = vmax.f32 %v3297, 0.0
      %v3554 = vmax.f32 %v3298, 0.0
      %v3555 = vmax.f32 %v3299, 0.0
      %v3556 = vmax.f32 %v3300, 0.0
      %v3557 = vmax.f32 %v3301, 0.0
      %v3558 = vmax.f32 %v3302, 0.0
      %v3559 = vmax.f32 %v3303, 0.0
      %v3560 = vmax.f32 %v3304, 0.0
      %v3561 = vmax.f32 %v3305, 0.0
      %v3562 = vmax.f32 %v3306, 0.0
      %v3563 = vmax.f32 %v3307, 0.0
      %v3564 = vmax.f32 %v3308, 0.0
      %v3565 = vmax.f32 %v3309, 0.0
      %v3566 = vmax.f32 %v3310, 0.0
      %v3567 = vmax.f32 %v3311, 0.0
      %v3568 = vmax.f32 %v3312, 0.0
      %v3569 = vmax.f32 %v3313, 0.0
      %v3570 = vmax.f32 %v3314, 0.0
      %v3571 = vmax.f32 %v3315, 0.0
      %v3572 = vmax.f32 %v3316, 0.0
      %v3573 = vmax.f32 %v3317, 0.0
      %v3574 = vmax.f32 %v3318, 0.0
      %v3575 = vmax.f32 %v3319, 0.0
      %v3576 = vmax.f32 %v3320, 0.0
      %v3577 = vmax.f32 %v3321, 0.0
      %v3578 = vmax.f32 %v3322, 0.0
      %v3579 = vmax.f32 %v3323, 0.0
      %v3580 = vmax.f32 %v3324, 0.0
      %v3581 = vmax.f32 %v3325, 0.0
      %v3582 = vmax.f32 %v3326, 0.0
      %v3583 = vmax.f32 %v3327, 0.0
      %v3584 = vmax.f32 %v3328, 0.0
      %v3585 = vmax.f32 %v3329, 0.0
      %v3586 = vmax.f32 %v3330, 0.0
      %v3587 = vmax.f32 %v3331, 0.0
      %v3588 = vmax.f32 %v3332, 0.0
      %v3589 = vmax.f32 %v3333, 0.0
      %v3590 = vmax.f32 %v3334, 0.0
      %v3591 = vmax.f32 %v3335, 0.0
      %v3592 = vmax.f32 %v3336, 0.0
      %v3593 = vmax.f32 %v3337, 0.0
      %v3594 = vmax.f32 %v3338, 0.0
      %v3595 = vmax.f32 %v3339, 0.0
      %v3596 = vmax.f32 %v3340, 0.0
      %v3597 = vmax.f32 %v3341, 0.0
      %v3598 = vmax.f32 %v3342, 0.0
      %v3599 = vmax.f32 %v3343, 0.0
      %v3600 = vmax.f32 %v3344, 0.0
      %v3601 = vmax.f32 %v3345, 0.0
      %v3602 = vmax.f32 %v3346, 0.0
      %v3603 = vmax.f32 %v3347, 0.0
      %v3604 = vmax.f32 %v3348, 0.0
      %v3605 = vmax.f32 %v3349, 0.0
      %v3606 = vmax.f32 %v3350, 0.0
      %v3607 = vmax.f32 %v3351, 0.0
      %v3608 = vmax.f32 %v3352, 0.0
      %v3609 = vmax.f32 %v3353, 0.0
      %v3610 = vmax.f32 %v3354, 0.0
      %v3611 = vmax.f32 %v3355, 0.0
      %v3612 = vmax.f32 %v3356, 0.0
      %v3613 = vmax.f32 %v3357, 0.0
      %v3614 = vmax.f32 %v3358, 0.0
      %v3615 = vmax.f32 %v3359, 0.0
      %v3616 = vmax.f32 %v3360, 0.0
      %v3617 = vmax.f32 %v3361, 0.0
      %v3618 = vmax.f32 %v3362, 0.0
      %v3619 = vmax.f32 %v3363, 0.0
      %v3620 = vmax.f32 %v3364, 0.0
      %v3621 = vmax.f32 %v3365, 0.0
      %v3622 = vmax.f32 %v3366, 0.0
      %v3623 = vmax.f32 %v3367, 0.0
      %v3624 = vmax.f32 %v3368, 0.0
      %v3625 = vmax.f32 %v3369, 0.0
      %v3626 = vmax.f32 %v3370, 0.0
      %v3627 = vmax.f32 %v3371, 0.0
      %v3628 = vmax.f32 %v3372, 0.0
      %v3629 = vmax.f32 %v3373, 0.0
      %v3630 = vmax.f32 %v3374, 0.0
      %v3631 = vmax.f32 %v3375, 0.0
      %v3632 = vmax.f32 %v3376, 0.0
      %v3633 = vmax.f32 %v3377, 0.0
      %v3634 = vmax.f32 %v3378, 0.0
      %v3635 = vmax.f32 %v3379, 0.0
      %v3636 = vmax.f32 %v3380, 0.0
      %v3637 = vmax.f32 %v3381, 0.0
      %v3638 = vmax.f32 %v3382, 0.0
      %v3639 = vmax.f32 %v3383, 0.0
      %v3640 = vmax.f32 %v3384, 0.0
      %v3641 = vmax.f32 %v3385, 0.0
      %v3642 = vmax.f32 %v3386, 0.0
      %v3643 = vmax.f32 %v3387, 0.0
      %v3644 = vmax.f32 %v3388, 0.0
      %v3645 = vmax.f32 %v3389, 0.0
      %v3646 = vmax.f32 %v3390, 0.0
      %v3647 = vmax.f32 %v3391, 0.0
      %v3648 = vmax.f32 %v3392, 0.0
      %v3649 = vmax.f32 %v3393, 0.0
      %v3650 = vmax.f32 %v3394, 0.0
      %v3651 = vmax.f32 %v3395, 0.0
      %v3652 = vmax.f32 %v3396, 0.0
      %v3653 = vmax.f32 %v3397, 0.0
      %v3654 = vmax.f32 %v3398, 0.0
      %v3655 = vmax.f32 %v3399, 0.0
      %v3656 = vmax.f32 %v3400, 0.0
      %v3657 = vmax.f32 %v3401, 0.0
      %v3658 = vmax.f32 %v3402, 0.0
      %v3659 = vmax.f32 %v3403, 0.0
      %v3660 = vmax.f32 %v3404, 0.0
      %v3661 = vmax.f32 %v3405, 0.0
      %v3662 = vmax.f32 %v3406, 0.0
      %v3663 = vmax.f32 %v3407, 0.0
      %v3664 = vmax.f32 %v3408, 0.0
      %v3665 = vmax.f32 %v3409, 0.0
      %v3666 = vmax.f32 %v3410, 0.0
      %v3667 = vmax.f32 %v3411, 0.0
      %v3668 = vmax.f32 %v3412, 0.0
      %v3669 = vmax.f32 %v3413, 0.0
      %v3670 = vmax.f32 %v3414, 0.0
      %v3671 = vmax.f32 %v3415, 0.0
      %v3672 = vmax.f32 %v3416, 0.0
      %v3673 = vmax.f32 %v3417, 0.0
      %v3674 = vmax.f32 %v3418, 0.0
      %v3675 = vmax.f32 %v3419, 0.0
      %v3676 = vmax.f32 %v3420, 0.0
      %v3677 = vmax.f32 %v3421, 0.0
      %v3678 = vmax.f32 %v3422, 0.0
      %v3679 = vmax.f32 %v3423, 0.0
      %v3680 = vmax.f32 %v3424, 0.0
      %v3681 = vmax.f32 %v3425, 0.0
      %v3682 = vmax.f32 %v3426, 0.0
      %v3683 = vmax.f32 %v3427, 0.0
      %v3684 = vmax.f32 %v3428, 0.0
      %v3685 = vmax.f32 %v3429, 0.0
      %v3686 = vmax.f32 %v3430, 0.0
      %v3687 = vmax.f32 %v3431, 0.0
      %v3688 = vmax.f32 %v3432, 0.0
      %v3689 = vmax.f32 %v3433, 0.0
      %v3690 = vmax.f32 %v3434, 0.0
      %v3691 = vmax.f32 %v3435, 0.0
      %v3692 = vmax.f32 %v3436, 0.0
      %v3693 = vmax.f32 %v3437, 0.0
      %v3694 = vmax.f32 %v3438, 0.0
      %v3695 = vmax.f32 %v3439, 0.0
      %v3696 = vmax.f32 %v3440, 0.0
      %v3697 = vmax.f32 %v3441, 0.0
      %v3698 = vmax.f32 %v3442, 0.0
      %v3699 = vmax.f32 %v3443, 0.0
      %v3700 = vmax.f32 %v3444, 0.0
      %v3701 = vmax.f32 %v3445, 0.0
      %v3702 = vmax.f32 %v3446, 0.0
      %v3703 = vmax.f32 %v3447, 0.0
      %v3704 = vmax.f32 %v3448, 0.0
      %v3705 = vmax.f32 %v3449, 0.0
      %v3706 = vmax.f32 %v3450, 0.0
      %v3707 = vmax.f32 %v3451, 0.0
      %v3708 = vmax.f32 %v3452, 0.0
      %v3709 = vmax.f32 %v3453, 0.0
      %v3710 = vmax.f32 %v3454, 0.0
      %v3711 = vmax.f32 %v3455, 0.0
      %v3712 = vmax.f32 %v3456, 0.0
      %v3713 = vmax.f32 %v3457, 0.0
      %v3714 = vmax.f32 %v3458, 0.0
      %v3715 = vmax.f32 %v3459, 0.0
      %v3716 = vmax.f32 %v3460, 0.0
      %v3717 = vmax.f32 %v3461, 0.0
      %v3718 = vmax.f32 %v3462, 0.0
      %v3719 = vmax.f32 %v3463, 0.0
      %v3720 = vmax.f32 %v3464, 0.0
      %v3721 = vmax.f32 %v3465, 0.0
      %v3722 = vmax.f32 %v3466, 0.0
      %v3723 = vmax.f32 %v3467, 0.0
      %v3724 = vmax.f32 %v3468, 0.0
      %v3725 = vmax.f32 %v3469, 0.0
      %v3726 = vmax.f32 %v3470, 0.0
      %v3727 = vadd.f32 %v3471, %v3472
      %3728 = vadd.xlane.f32.xlu0 %v3727
      %v3729 = vpop.xlane.xlu0 %3728
      %v3730 = vadd.f32 %v3473, %v3474
      %3731 = vadd.xlane.f32.xlu0 %v3730
      %v3732 = vpop.xlane.xlu0 %3731
      %v3733 = vadd.f32 %v3475, %v3476
      %3734 = vadd.xlane.f32.xlu0 %v3733
      %v3735 = vpop.xlane.xlu0 %3734
      %v3736 = vadd.f32 %v3477, %v3478
      %3737 = vadd.xlane.f32.xlu0 %v3736
      %v3738 = vpop.xlane.xlu0 %3737
      %v3739 = vadd.f32 %v3479, %v3480
      %3740 = vadd.xlane.f32.xlu0 %v3739
      %v3741 = vpop.xlane.xlu0 %3740
      %v3742 = vadd.f32 %v3481, %v3482
      %3743 = vadd.xlane.f32.xlu0 %v3742
      %v3744 = vpop.xlane.xlu0 %3743
      %v3745 = vadd.f32 %v3483, %v3484
      %3746 = vadd.xlane.f32.xlu0 %v3745
      %v3747 = vpop.xlane.xlu0 %3746
      %v3748 = vadd.f32 %v3485, %v3486
      %3749 = vadd.xlane.f32.xlu0 %v3748
      %v3750 = vpop.xlane.xlu0 %3749
      %v3751 = vadd.f32 %v3487, %v3488
      %3752 = vadd.xlane.f32.xlu0 %v3751
      %v3753 = vpop.xlane.xlu0 %3752
      %v3754 = vadd.f32 %v3489, %v3490
      %3755 = vadd.xlane.f32.xlu0 %v3754
      %v3756 = vpop.xlane.xlu0 %3755
      %v3757 = vadd.f32 %v3491, %v3492
      %3758 = vadd.xlane.f32.xlu0 %v3757
      %v3759 = vpop.xlane.xlu0 %3758
      %v3760 = vadd.f32 %v3493, %v3494
      %3761 = vadd.xlane.f32.xlu0 %v3760
      %v3762 = vpop.xlane.xlu0 %3761
      %v3763 = vadd.f32 %v3495, %v3496
      %3764 = vadd.xlane.f32.xlu0 %v3763
      %v3765 = vpop.xlane.xlu0 %3764
      %v3766 = vadd.f32 %v3497, %v3498
      %3767 = vadd.xlane.f32.xlu0 %v3766
      %v3768 = vpop.xlane.xlu0 %3767
      %v3769 = vadd.f32 %v3499, %v3500
      %3770 = vadd.xlane.f32.xlu0 %v3769
      %v3771 = vpop.xlane.xlu0 %3770
      %v3772 = vadd.f32 %v3501, %v3502
      %3773 = vadd.xlane.f32.xlu0 %v3772
      %v3774 = vpop.xlane.xlu0 %3773
      %v3775 = vadd.f32 %v3503, %v3504
      %3776 = vadd.xlane.f32.xlu0 %v3775
      %v3777 = vpop.xlane.xlu0 %3776
      %v3778 = vadd.f32 %v3505, %v3506
      %3779 = vadd.xlane.f32.xlu0 %v3778
      %v3780 = vpop.xlane.xlu0 %3779
      %v3781 = vadd.f32 %v3507, %v3508
      %3782 = vadd.xlane.f32.xlu0 %v3781
      %v3783 = vpop.xlane.xlu0 %3782
      %v3784 = vadd.f32 %v3509, %v3510
      %3785 = vadd.xlane.f32.xlu0 %v3784
      %v3786 = vpop.xlane.xlu0 %3785
      %v3787 = vadd.f32 %v3511, %v3512
      %3788 = vadd.xlane.f32.xlu0 %v3787
      %v3789 = vpop.xlane.xlu0 %3788
      %v3790 = vadd.f32 %v3513, %v3514
      %3791 = vadd.xlane.f32.xlu0 %v3790
      %v3792 = vpop.xlane.xlu0 %3791
      %v3793 = vadd.f32 %v3515, %v3516
      %3794 = vadd.xlane.f32.xlu0 %v3793
      %v3795 = vpop.xlane.xlu0 %3794
      %v3796 = vadd.f32 %v3517, %v3518
      %3797 = vadd.xlane.f32.xlu0 %v3796
      %v3798 = vpop.xlane.xlu0 %3797
      %v3799 = vadd.f32 %v3519, %v3520
      %3800 = vadd.xlane.f32.xlu0 %v3799
      %v3801 = vpop.xlane.xlu0 %3800
      %v3802 = vadd.f32 %v3521, %v3522
      %3803 = vadd.xlane.f32.xlu0 %v3802
      %v3804 = vpop.xlane.xlu0 %3803
      %v3805 = vadd.f32 %v3523, %v3524
      %3806 = vadd.xlane.f32.xlu0 %v3805
      %v3807 = vpop.xlane.xlu0 %3806
      %v3808 = vadd.f32 %v3525, %v3526
      %3809 = vadd.xlane.f32.xlu0 %v3808
      %v3810 = vpop.xlane.xlu0 %3809
      %v3811 = vadd.f32 %v3527, %v3528
      %3812 = vadd.xlane.f32.xlu0 %v3811
      %v3813 = vpop.xlane.xlu0 %3812
      %v3814 = vadd.f32 %v3529, %v3530
      %3815 = vadd.xlane.f32.xlu0 %v3814
      %v3816 = vpop.xlane.xlu0 %3815
      %v3817 = vadd.f32 %v3531, %v3532
      %3818 = vadd.xlane.f32.xlu0 %v3817
      %v3819 = vpop.xlane.xlu0 %3818
      %v3820 = vadd.f32 %v3533, %v3534
      %3821 = vadd.xlane.f32.xlu0 %v3820
      %v3822 = vpop.xlane.xlu0 %3821
      %v3823 = vadd.f32 %v3535, %v3536
      %3824 = vadd.xlane.f32.xlu0 %v3823
      %v3825 = vpop.xlane.xlu0 %3824
      %v3826 = vadd.f32 %v3537, %v3538
      %3827 = vadd.xlane.f32.xlu0 %v3826
      %v3828 = vpop.xlane.xlu0 %3827
      %v3829 = vadd.f32 %v3539, %v3540
      %3830 = vadd.xlane.f32.xlu0 %v3829
      %v3831 = vpop.xlane.xlu0 %3830
      %v3832 = vadd.f32 %v3541, %v3542
      %3833 = vadd.xlane.f32.xlu0 %v3832
      %v3834 = vpop.xlane.xlu0 %3833
      %v3835 = vadd.f32 %v3543, %v3544
      %3836 = vadd.xlane.f32.xlu0 %v3835
      %v3837 = vpop.xlane.xlu0 %3836
      %v3838 = vadd.f32 %v3545, %v3546
      %3839 = vadd.xlane.f32.xlu0 %v3838
      %v3840 = vpop.xlane.xlu0 %3839
      %v3841 = vadd.f32 %v3547, %v3548
      %3842 = vadd.xlane.f32.xlu0 %v3841
      %v3843 = vpop.xlane.xlu0 %3842
      %v3844 = vadd.f32 %v3549, %v3550
      %3845 = vadd.xlane.f32.xlu0 %v3844
      %v3846 = vpop.xlane.xlu0 %3845
      %v3847 = vadd.f32 %v3551, %v3552
      %3848 = vadd.xlane.f32.xlu0 %v3847
      %v3849 = vpop.xlane.xlu0 %3848
      %v3850 = vadd.f32 %v3553, %v3554
      %3851 = vadd.xlane.f32.xlu0 %v3850
      %v3852 = vpop.xlane.xlu0 %3851
      %v3853 = vadd.f32 %v3555, %v3556
      %3854 = vadd.xlane.f32.xlu0 %v3853
      %v3855 = vpop.xlane.xlu0 %3854
      %v3856 = vadd.f32 %v3557, %v3558
      %3857 = vadd.xlane.f32.xlu0 %v3856
      %v3858 = vpop.xlane.xlu0 %3857
      %v3859 = vadd.f32 %v3559, %v3560
      %3860 = vadd.xlane.f32.xlu0 %v3859
      %v3861 = vpop.xlane.xlu0 %3860
      %v3862 = vadd.f32 %v3561, %v3562
      %3863 = vadd.xlane.f32.xlu0 %v3862
      %v3864 = vpop.xlane.xlu0 %3863
      %v3865 = vadd.f32 %v3563, %v3564
      %3866 = vadd.xlane.f32.xlu0 %v3865
      %v3867 = vpop.xlane.xlu0 %3866
      %v3868 = vadd.f32 %v3565, %v3566
      %3869 = vadd.xlane.f32.xlu0 %v3868
      %v3870 = vpop.xlane.xlu0 %3869
      %v3871 = vadd.f32 %v3567, %v3568
      %3872 = vadd.xlane.f32.xlu0 %v3871
      %v3873 = vpop.xlane.xlu0 %3872
      %v3874 = vadd.f32 %v3569, %v3570
      %3875 = vadd.xlane.f32.xlu0 %v3874
      %v3876 = vpop.xlane.xlu0 %3875
      %v3877 = vadd.f32 %v3571, %v3572
      %3878 = vadd.xlane.f32.xlu0 %v3877
      %v3879 = vpop.xlane.xlu0 %3878
      %v3880 = vadd.f32 %v3573, %v3574
      %3881 = vadd.xlane.f32.xlu0 %v3880
      %v3882 = vpop.xlane.xlu0 %3881
      %v3883 = vadd.f32 %v3575, %v3576
      %3884 = vadd.xlane.f32.xlu0 %v3883
      %v3885 = vpop.xlane.xlu0 %3884
      %v3886 = vadd.f32 %v3577, %v3578
      %3887 = vadd.xlane.f32.xlu0 %v3886
      %v3888 = vpop.xlane.xlu0 %3887
      %v3889 = vadd.f32 %v3579, %v3580
      %3890 = vadd.xlane.f32.xlu0 %v3889
      %v3891 = vpop.xlane.xlu0 %3890
      %v3892 = vadd.f32 %v3581, %v3582
      %3893 = vadd.xlane.f32.xlu0 %v3892
      %v3894 = vpop.xlane.xlu0 %3893
      %v3895 = vadd.f32 %v3583, %v3584
      %3896 = vadd.xlane.f32.xlu0 %v3895
      %v3897 = vpop.xlane.xlu0 %3896
      %v3898 = vadd.f32 %v3585, %v3586
      %3899 = vadd.xlane.f32.xlu0 %v3898
      %v3900 = vpop.xlane.xlu0 %3899
      %v3901 = vadd.f32 %v3587, %v3588
      %3902 = vadd.xlane.f32.xlu0 %v3901
      %v3903 = vpop.xlane.xlu0 %3902
      %v3904 = vadd.f32 %v3589, %v3590
      %3905 = vadd.xlane.f32.xlu0 %v3904
      %v3906 = vpop.xlane.xlu0 %3905
      %v3907 = vadd.f32 %v3591, %v3592
      %3908 = vadd.xlane.f32.xlu0 %v3907
      %v3909 = vpop.xlane.xlu0 %3908
      %v3910 = vadd.f32 %v3593, %v3594
      %3911 = vadd.xlane.f32.xlu0 %v3910
      %v3912 = vpop.xlane.xlu0 %3911
      %v3913 = vadd.f32 %v3595, %v3596
      %3914 = vadd.xlane.f32.xlu0 %v3913
      %v3915 = vpop.xlane.xlu0 %3914
      %v3916 = vadd.f32 %v3597, %v3598
      %3917 = vadd.xlane.f32.xlu0 %v3916
      %v3918 = vpop.xlane.xlu0 %3917
      %v3919 = vadd.f32 %v3599, %v3600
      %3920 = vadd.xlane.f32.xlu0 %v3919
      %v3921 = vpop.xlane.xlu0 %3920
      %v3922 = vadd.f32 %v3601, %v3602
      %3923 = vadd.xlane.f32.xlu0 %v3922
      %v3924 = vpop.xlane.xlu0 %3923
      %v3925 = vadd.f32 %v3603, %v3604
      %3926 = vadd.xlane.f32.xlu0 %v3925
      %v3927 = vpop.xlane.xlu0 %3926
      %v3928 = vadd.f32 %v3605, %v3606
      %3929 = vadd.xlane.f32.xlu0 %v3928
      %v3930 = vpop.xlane.xlu0 %3929
      %v3931 = vadd.f32 %v3607, %v3608
      %3932 = vadd.xlane.f32.xlu0 %v3931
      %v3933 = vpop.xlane.xlu0 %3932
      %v3934 = vadd.f32 %v3609, %v3610
      %3935 = vadd.xlane.f32.xlu0 %v3934
      %v3936 = vpop.xlane.xlu0 %3935
      %v3937 = vadd.f32 %v3611, %v3612
      %3938 = vadd.xlane.f32.xlu0 %v3937
      %v3939 = vpop.xlane.xlu0 %3938
      %v3940 = vadd.f32 %v3613, %v3614
      %3941 = vadd.xlane.f32.xlu0 %v3940
      %v3942 = vpop.xlane.xlu0 %3941
      %v3943 = vadd.f32 %v3615, %v3616
      %3944 = vadd.xlane.f32.xlu0 %v3943
      %v3945 = vpop.xlane.xlu0 %3944
      %v3946 = vadd.f32 %v3617, %v3618
      %3947 = vadd.xlane.f32.xlu0 %v3946
      %v3948 = vpop.xlane.xlu0 %3947
      %v3949 = vadd.f32 %v3619, %v3620
      %3950 = vadd.xlane.f32.xlu0 %v3949
      %v3951 = vpop.xlane.xlu0 %3950
      %v3952 = vadd.f32 %v3621, %v3622
      %3953 = vadd.xlane.f32.xlu0 %v3952
      %v3954 = vpop.xlane.xlu0 %3953
      %v3955 = vadd.f32 %v3623, %v3624
      %3956 = vadd.xlane.f32.xlu0 %v3955
      %v3957 = vpop.xlane.xlu0 %3956
      %v3958 = vadd.f32 %v3625, %v3626
      %3959 = vadd.xlane.f32.xlu0 %v3958
      %v3960 = vpop.xlane.xlu0 %3959
      %v3961 = vadd.f32 %v3627, %v3628
      %3962 = vadd.xlane.f32.xlu0 %v3961
      %v3963 = vpop.xlane.xlu0 %3962
      %v3964 = vadd.f32 %v3629, %v3630
      %3965 = vadd.xlane.f32.xlu0 %v3964
      %v3966 = vpop.xlane.xlu0 %3965
      %v3967 = vadd.f32 %v3631, %v3632
      %3968 = vadd.xlane.f32.xlu0 %v3967
      %v3969 = vpop.xlane.xlu0 %3968
      %v3970 = vadd.f32 %v3633, %v3634
      %3971 = vadd.xlane.f32.xlu0 %v3970
      %v3972 = vpop.xlane.xlu0 %3971
      %v3973 = vadd.f32 %v3635, %v3636
      %3974 = vadd.xlane.f32.xlu0 %v3973
      %v3975 = vpop.xlane.xlu0 %3974
      %v3976 = vadd.f32 %v3637, %v3638
      %3977 = vadd.xlane.f32.xlu0 %v3976
      %v3978 = vpop.xlane.xlu0 %3977
      %v3979 = vadd.f32 %v3639, %v3640
      %3980 = vadd.xlane.f32.xlu0 %v3979
      %v3981 = vpop.xlane.xlu0 %3980
      %v3982 = vadd.f32 %v3641, %v3642
      %3983 = vadd.xlane.f32.xlu0 %v3982
      %v3984 = vpop.xlane.xlu0 %3983
      %v3985 = vadd.f32 %v3643, %v3644
      %3986 = vadd.xlane.f32.xlu0 %v3985
      %v3987 = vpop.xlane.xlu0 %3986
      %v3988 = vadd.f32 %v3645, %v3646
      %3989 = vadd.xlane.f32.xlu0 %v3988
      %v3990 = vpop.xlane.xlu0 %3989
      %v3991 = vadd.f32 %v3647, %v3648
      %3992 = vadd.xlane.f32.xlu0 %v3991
      %v3993 = vpop.xlane.xlu0 %3992
      %v3994 = vadd.f32 %v3649, %v3650
      %3995 = vadd.xlane.f32.xlu0 %v3994
      %v3996 = vpop.xlane.xlu0 %3995
      %v3997 = vadd.f32 %v3651, %v3652
      %3998 = vadd.xlane.f32.xlu0 %v3997
      %v3999 = vpop.xlane.xlu0 %3998
      %v4000 = vadd.f32 %v3653, %v3654
      %4001 = vadd.xlane.f32.xlu0 %v4000
      %v4002 = vpop.xlane.xlu0 %4001
      %v4003 = vadd.f32 %v3655, %v3656
      %4004 = vadd.xlane.f32.xlu0 %v4003
      %v4005 = vpop.xlane.xlu0 %4004
      %v4006 = vadd.f32 %v3657, %v3658
      %4007 = vadd.xlane.f32.xlu0 %v4006
      %v4008 = vpop.xlane.xlu0 %4007
      %v4009 = vadd.f32 %v3659, %v3660
      %4010 = vadd.xlane.f32.xlu0 %v4009
      %v4011 = vpop.xlane.xlu0 %4010
      %v4012 = vadd.f32 %v3661, %v3662
      %4013 = vadd.xlane.f32.xlu0 %v4012
      %v4014 = vpop.xlane.xlu0 %4013
      %v4015 = vadd.f32 %v3663, %v3664
      %4016 = vadd.xlane.f32.xlu0 %v4015
      %v4017 = vpop.xlane.xlu0 %4016
      %v4018 = vadd.f32 %v3665, %v3666
      %4019 = vadd.xlane.f32.xlu0 %v4018
      %v4020 = vpop.xlane.xlu0 %4019
      %v4021 = vadd.f32 %v3667, %v3668
      %4022 = vadd.xlane.f32.xlu0 %v4021
      %v4023 = vpop.xlane.xlu0 %4022
      %v4024 = vadd.f32 %v3669, %v3670
      %4025 = vadd.xlane.f32.xlu0 %v4024
      %v4026 = vpop.xlane.xlu0 %4025
      %v4027 = vadd.f32 %v3671, %v3672
      %4028 = vadd.xlane.f32.xlu0 %v4027
      %v4029 = vpop.xlane.xlu0 %4028
      %v4030 = vadd.f32 %v3673, %v3674
      %4031 = vadd.xlane.f32.xlu0 %v4030
      %v4032 = vpop.xlane.xlu0 %4031
      %v4033 = vadd.f32 %v3675, %v3676
      %4034 = vadd.xlane.f32.xlu0 %v4033
      %v4035 = vpop.xlane.xlu0 %4034
      %v4036 = vadd.f32 %v3677, %v3678
      %4037 = vadd.xlane.f32.xlu0 %v4036
      %v4038 = vpop.xlane.xlu0 %4037
      %v4039 = vadd.f32 %v3679, %v3680
      %4040 = vadd.xlane.f32.xlu0 %v4039
      %v4041 = vpop.xlane.xlu0 %4040
      %v4042 = vadd.f32 %v3681, %v3682
      %4043 = vadd.xlane.f32.xlu0 %v4042
      %v4044 = vpop.xlane.xlu0 %4043
      %v4045 = vadd.f32 %v3683, %v3684
      %4046 = vadd.xlane.f32.xlu0 %v4045
      %v4047 = vpop.xlane.xlu0 %4046
      %v4048 = vadd.f32 %v3685, %v3686
      %4049 = vadd.xlane.f32.xlu0 %v4048
      %v4050 = vpop.xlane.xlu0 %4049
      %v4051 = vadd.f32 %v3687, %v3688
      %4052 = vadd.xlane.f32.xlu0 %v4051
      %v4053 = vpop.xlane.xlu0 %4052
      %v4054 = vadd.f32 %v3689, %v3690
      %4055 = vadd.xlane.f32.xlu0 %v4054
      %v4056 = vpop.xlane.xlu0 %4055
      %v4057 = vadd.f32 %v3691, %v3692
      %4058 = vadd.xlane.f32.xlu0 %v4057
      %v4059 = vpop.xlane.xlu0 %4058
      %v4060 = vadd.f32 %v3693, %v3694
      %4061 = vadd.xlane.f32.xlu0 %v4060
      %v4062 = vpop.xlane.xlu0 %4061
      %v4063 = vadd.f32 %v3695, %v3696
      %4064 = vadd.xlane.f32.xlu0 %v4063
      %v4065 = vpop.xlane.xlu0 %4064
      %v4066 = vadd.f32 %v3697, %v3698
      %4067 = vadd.xlane.f32.xlu0 %v4066
      %v4068 = vpop.xlane.xlu0 %4067
      %v4069 = vadd.f32 %v3699, %v3700
      %4070 = vadd.xlane.f32.xlu0 %v4069
      %v4071 = vpop.xlane.xlu0 %4070
      %v4072 = vadd.f32 %v3701, %v3702
      %4073 = vadd.xlane.f32.xlu0 %v4072
      %v4074 = vpop.xlane.xlu0 %4073
      %v4075 = vadd.f32 %v3703, %v3704
      %4076 = vadd.xlane.f32.xlu0 %v4075
      %v4077 = vpop.xlane.xlu0 %4076
      %v4078 = vadd.f32 %v3705, %v3706
      %4079 = vadd.xlane.f32.xlu0 %v4078
      %v4080 = vpop.xlane.xlu0 %4079
      %v4081 = vadd.f32 %v3707, %v3708
      %4082 = vadd.xlane.f32.xlu0 %v4081
      %v4083 = vpop.xlane.xlu0 %4082
      %v4084 = vadd.f32 %v3709, %v3710
      %4085 = vadd.xlane.f32.xlu0 %v4084
      %v4086 = vpop.xlane.xlu0 %4085
      %v4087 = vadd.f32 %v3711, %v3712
      %4088 = vadd.xlane.f32.xlu0 %v4087
      %v4089 = vpop.xlane.xlu0 %4088
      %v4090 = vadd.f32 %v3713, %v3714
      %4091 = vadd.xlane.f32.xlu0 %v4090
      %v4092 = vpop.xlane.xlu0 %4091
      %v4093 = vadd.f32 %v3715, %v3716
      %4094 = vadd.xlane.f32.xlu0 %v4093
      %v4095 = vpop.xlane.xlu0 %4094
      %v4096 = vadd.f32 %v3717, %v3718
      %4097 = vadd.xlane.f32.xlu0 %v4096
      %v4098 = vpop.xlane.xlu0 %4097
      %v4099 = vadd.f32 %v3719, %v3720
      %4100 = vadd.xlane.f32.xlu0 %v4099
      %v4101 = vpop.xlane.xlu0 %4100
      %v4102 = vadd.f32 %v3721, %v3722
      %4103 = vadd.xlane.f32.xlu0 %v4102
      %v4104 = vpop.xlane.xlu0 %4103
      %v4105 = vadd.f32 %v3723, %v3724
      %4106 = vadd.xlane.f32.xlu0 %v4105
      %v4107 = vpop.xlane.xlu0 %4106
      %v4108 = vadd.f32 %v3725, %v3726
      %4109 = vadd.xlane.f32.xlu0 %v4108
      %v4110 = vpop.xlane.xlu0 %4109
      %v4111 = vadd.f32 %v3729, 0.0
      %v4112 = vadd.f32 %v3732, 0.0
      %v4113 = vadd.f32 %v3735, 0.0
      %v4114 = vadd.f32 %v3738, 0.0
      %v4115 = vadd.f32 %v3741, 0.0
      %v4116 = vadd.f32 %v3744, 0.0
      %v4117 = vadd.f32 %v3747, 0.0
      %v4118 = vadd.f32 %v3750, 0.0
      %v4119 = vadd.f32 %v3753, 0.0
      %v4120 = vadd.f32 %v3756, 0.0
      %v4121 = vadd.f32 %v3759, 0.0
      %v4122 = vadd.f32 %v3762, 0.0
      %v4123 = vadd.f32 %v3765, 0.0
      %v4124 = vadd.f32 %v3768, 0.0
      %v4125 = vadd.f32 %v3771, 0.0
      %v4126 = vadd.f32 %v3774, 0.0
      %v4127 = vadd.f32 %v3777, 0.0
      %v4128 = vadd.f32 %v3780, 0.0
      %v4129 = vadd.f32 %v3783, 0.0
      %v4130 = vadd.f32 %v3786, 0.0
      %v4131 = vadd.f32 %v3789, 0.0
      %v4132 = vadd.f32 %v3792, 0.0
      %v4133 = vadd.f32 %v3795, 0.0
      %v4134 = vadd.f32 %v3798, 0.0
      %v4135 = vadd.f32 %v3801, 0.0
      %v4136 = vadd.f32 %v3804, 0.0
      %v4137 = vadd.f32 %v3807, 0.0
      %v4138 = vadd.f32 %v3810, 0.0
      %v4139 = vadd.f32 %v3813, 0.0
      %v4140 = vadd.f32 %v3816, 0.0
      %v4141 = vadd.f32 %v3819, 0.0
      %v4142 = vadd.f32 %v3822, 0.0
      %v4143 = vadd.f32 %v3825, 0.0
      %v4144 = vadd.f32 %v3828, 0.0
      %v4145 = vadd.f32 %v3831, 0.0
      %v4146 = vadd.f32 %v3834, 0.0
      %v4147 = vadd.f32 %v3837, 0.0
      %v4148 = vadd.f32 %v3840, 0.0
      %v4149 = vadd.f32 %v3843, 0.0
      %v4150 = vadd.f32 %v3846, 0.0
      %v4151 = vadd.f32 %v3849, 0.0
      %v4152 = vadd.f32 %v3852, 0.0
      %v4153 = vadd.f32 %v3855, 0.0
      %v4154 = vadd.f32 %v3858, 0.0
      %v4155 = vadd.f32 %v3861, 0.0
      %v4156 = vadd.f32 %v3864, 0.0
      %v4157 = vadd.f32 %v3867, 0.0
      %v4158 = vadd.f32 %v3870, 0.0
      %v4159 = vadd.f32 %v3873, 0.0
      %v4160 = vadd.f32 %v3876, 0.0
      %v4161 = vadd.f32 %v3879, 0.0
      %v4162 = vadd.f32 %v3882, 0.0
      %v4163 = vadd.f32 %v3885, 0.0
      %v4164 = vadd.f32 %v3888, 0.0
      %v4165 = vadd.f32 %v3891, 0.0
      %v4166 = vadd.f32 %v3894, 0.0
      %v4167 = vadd.f32 %v3897, 0.0
      %v4168 = vadd.f32 %v3900, 0.0
      %v4169 = vadd.f32 %v3903, 0.0
      %v4170 = vadd.f32 %v3906, 0.0
      %v4171 = vadd.f32 %v3909, 0.0
      %v4172 = vadd.f32 %v3912, 0.0
      %v4173 = vadd.f32 %v3915, 0.0
      %v4174 = vadd.f32 %v3918, 0.0
      %v4175 = vadd.f32 %v3921, 0.0
      %v4176 = vadd.f32 %v3924, 0.0
      %v4177 = vadd.f32 %v3927, 0.0
      %v4178 = vadd.f32 %v3930, 0.0
      %v4179 = vadd.f32 %v3933, 0.0
      %v4180 = vadd.f32 %v3936, 0.0
      %v4181 = vadd.f32 %v3939, 0.0
      %v4182 = vadd.f32 %v3942, 0.0
      %v4183 = vadd.f32 %v3945, 0.0
      %v4184 = vadd.f32 %v3948, 0.0
      %v4185 = vadd.f32 %v3951, 0.0
      %v4186 = vadd.f32 %v3954, 0.0
      %v4187 = vadd.f32 %v3957, 0.0
      %v4188 = vadd.f32 %v3960, 0.0
      %v4189 = vadd.f32 %v3963, 0.0
      %v4190 = vadd.f32 %v3966, 0.0
      %v4191 = vadd.f32 %v3969, 0.0
      %v4192 = vadd.f32 %v3972, 0.0
      %v4193 = vadd.f32 %v3975, 0.0
      %v4194 = vadd.f32 %v3978, 0.0
      %v4195 = vadd.f32 %v3981, 0.0
      %v4196 = vadd.f32 %v3984, 0.0
      %v4197 = vadd.f32 %v3987, 0.0
      %v4198 = vadd.f32 %v3990, 0.0
      %v4199 = vadd.f32 %v3993, 0.0
      %v4200 = vadd.f32 %v3996, 0.0
      %v4201 = vadd.f32 %v3999, 0.0
      %v4202 = vadd.f32 %v4002, 0.0
      %v4203 = vadd.f32 %v4005, 0.0
      %v4204 = vadd.f32 %v4008, 0.0
      %v4205 = vadd.f32 %v4011, 0.0
      %v4206 = vadd.f32 %v4014, 0.0
      %v4207 = vadd.f32 %v4017, 0.0
      %v4208 = vadd.f32 %v4020, 0.0
      %v4209 = vadd.f32 %v4023, 0.0
      %v4210 = vadd.f32 %v4026, 0.0
      %v4211 = vadd.f32 %v4029, 0.0
      %v4212 = vadd.f32 %v4032, 0.0
      %v4213 = vadd.f32 %v4035, 0.0
      %v4214 = vadd.f32 %v4038, 0.0
      %v4215 = vadd.f32 %v4041, 0.0
      %v4216 = vadd.f32 %v4044, 0.0
      %v4217 = vadd.f32 %v4047, 0.0
      %v4218 = vadd.f32 %v4050, 0.0
      %v4219 = vadd.f32 %v4053, 0.0
      %v4220 = vadd.f32 %v4056, 0.0
      %v4221 = vadd.f32 %v4059, 0.0
      %v4222 = vadd.f32 %v4062, 0.0
      %v4223 = vadd.f32 %v4065, 0.0
      %v4224 = vadd.f32 %v4068, 0.0
      %v4225 = vadd.f32 %v4071, 0.0
      %v4226 = vadd.f32 %v4074, 0.0
      %v4227 = vadd.f32 %v4077, 0.0
      %v4228 = vadd.f32 %v4080, 0.0
      %v4229 = vadd.f32 %v4083, 0.0
      %v4230 = vadd.f32 %v4086, 0.0
      %v4231 = vadd.f32 %v4089, 0.0
      %v4232 = vadd.f32 %v4092, 0.0
      %v4233 = vadd.f32 %v4095, 0.0
      %v4234 = vadd.f32 %v4098, 0.0
      %v4235 = vadd.f32 %v4101, 0.0
      %v4236 = vadd.f32 %v4104, 0.0
      %v4237 = vadd.f32 %v4107, 0.0
      %v4238 = vadd.f32 %v4110, 0.0
      %v4239 = vmul.f32 %v4111, 0.00390625
      %v4240 = vmul.f32 %v4112, 0.00390625
      %v4241 = vmul.f32 %v4113, 0.00390625
      %v4242 = vmul.f32 %v4114, 0.00390625
      %v4243 = vmul.f32 %v4115, 0.00390625
      %v4244 = vmul.f32 %v4116, 0.00390625
      %v4245 = vmul.f32 %v4117, 0.00390625
      %v4246 = vmul.f32 %v4118, 0.00390625
      %v4247 = vmul.f32 %v4119, 0.00390625
      %v4248 = vmul.f32 %v4120, 0.00390625
      %v4249 = vmul.f32 %v4121, 0.00390625
      %v4250 = vmul.f32 %v4122, 0.00390625
      %v4251 = vmul.f32 %v4123, 0.00390625
      %v4252 = vmul.f32 %v4124, 0.00390625
      %v4253 = vmul.f32 %v4125, 0.00390625
      %v4254 = vmul.f32 %v4126, 0.00390625
      %v4255 = vmul.f32 %v4127, 0.00390625
      %v4256 = vmul.f32 %v4128, 0.00390625
      %v4257 = vmul.f32 %v4129, 0.00390625
      %v4258 = vmul.f32 %v4130, 0.00390625
      %v4259 = vmul.f32 %v4131, 0.00390625
      %v4260 = vmul.f32 %v4132, 0.00390625
      %v4261 = vmul.f32 %v4133, 0.00390625
      %v4262 = vmul.f32 %v4134, 0.00390625
      %v4263 = vmul.f32 %v4135, 0.00390625
      %v4264 = vmul.f32 %v4136, 0.00390625
      %v4265 = vmul.f32 %v4137, 0.00390625
      %v4266 = vmul.f32 %v4138, 0.00390625
      %v4267 = vmul.f32 %v4139, 0.00390625
      %v4268 = vmul.f32 %v4140, 0.00390625
      %v4269 = vmul.f32 %v4141, 0.00390625
      %v4270 = vmul.f32 %v4142, 0.00390625
      %v4271 = vmul.f32 %v4143, 0.00390625
      %v4272 = vmul.f32 %v4144, 0.00390625
      %v4273 = vmul.f32 %v4145, 0.00390625
      %v4274 = vmul.f32 %v4146, 0.00390625
      %v4275 = vmul.f32 %v4147, 0.00390625
      %v4276 = vmul.f32 %v4148, 0.00390625
      %v4277 = vmul.f32 %v4149, 0.00390625
      %v4278 = vmul.f32 %v4150, 0.00390625
      %v4279 = vmul.f32 %v4151, 0.00390625
      %v4280 = vmul.f32 %v4152, 0.00390625
      %v4281 = vmul.f32 %v4153, 0.00390625
      %v4282 = vmul.f32 %v4154, 0.00390625
      %v4283 = vmul.f32 %v4155, 0.00390625
      %v4284 = vmul.f32 %v4156, 0.00390625
      %v4285 = vmul.f32 %v4157, 0.00390625
      %v4286 = vmul.f32 %v4158, 0.00390625
      %v4287 = vmul.f32 %v4159, 0.00390625
      %v4288 = vmul.f32 %v4160, 0.00390625
      %v4289 = vmul.f32 %v4161, 0.00390625
      %v4290 = vmul.f32 %v4162, 0.00390625
      %v4291 = vmul.f32 %v4163, 0.00390625
      %v4292 = vmul.f32 %v4164, 0.00390625
      %v4293 = vmul.f32 %v4165, 0.00390625
      %v4294 = vmul.f32 %v4166, 0.00390625
      %v4295 = vmul.f32 %v4167, 0.00390625
      %v4296 = vmul.f32 %v4168, 0.00390625
      %v4297 = vmul.f32 %v4169, 0.00390625
      %v4298 = vmul.f32 %v4170, 0.00390625
      %v4299 = vmul.f32 %v4171, 0.00390625
      %v4300 = vmul.f32 %v4172, 0.00390625
      %v4301 = vmul.f32 %v4173, 0.00390625
      %v4302 = vmul.f32 %v4174, 0.00390625
      %v4303 = vmul.f32 %v4175, 0.00390625
      %v4304 = vmul.f32 %v4176, 0.00390625
      %v4305 = vmul.f32 %v4177, 0.00390625
      %v4306 = vmul.f32 %v4178, 0.00390625
      %v4307 = vmul.f32 %v4179, 0.00390625
      %v4308 = vmul.f32 %v4180, 0.00390625
      %v4309 = vmul.f32 %v4181, 0.00390625
      %v4310 = vmul.f32 %v4182, 0.00390625
      %v4311 = vmul.f32 %v4183, 0.00390625
      %v4312 = vmul.f32 %v4184, 0.00390625
      %v4313 = vmul.f32 %v4185, 0.00390625
      %v4314 = vmul.f32 %v4186, 0.00390625
      %v4315 = vmul.f32 %v4187, 0.00390625
      %v4316 = vmul.f32 %v4188, 0.00390625
      %v4317 = vmul.f32 %v4189, 0.00390625
      %v4318 = vmul.f32 %v4190, 0.00390625
      %v4319 = vmul.f32 %v4191, 0.00390625
      %v4320 = vmul.f32 %v4192, 0.00390625
      %v4321 = vmul.f32 %v4193, 0.00390625
      %v4322 = vmul.f32 %v4194, 0.00390625
      %v4323 = vmul.f32 %v4195, 0.00390625
      %v4324 = vmul.f32 %v4196, 0.00390625
      %v4325 = vmul.f32 %v4197, 0.00390625
      %v4326 = vmul.f32 %v4198, 0.00390625
      %v4327 = vmul.f32 %v4199, 0.00390625
      %v4328 = vmul.f32 %v4200, 0.00390625
      %v4329 = vmul.f32 %v4201, 0.00390625
      %v4330 = vmul.f32 %v4202, 0.00390625
      %v4331 = vmul.f32 %v4203, 0.00390625
      %v4332 = vmul.f32 %v4204, 0.00390625
      %v4333 = vmul.f32 %v4205, 0.00390625
      %v4334 = vmul.f32 %v4206, 0.00390625
      %v4335 = vmul.f32 %v4207, 0.00390625
      %v4336 = vmul.f32 %v4208, 0.00390625
      %v4337 = vmul.f32 %v4209, 0.00390625
      %v4338 = vmul.f32 %v4210, 0.00390625
      %v4339 = vmul.f32 %v4211, 0.00390625
      %v4340 = vmul.f32 %v4212, 0.00390625
      %v4341 = vmul.f32 %v4213, 0.00390625
      %v4342 = vmul.f32 %v4214, 0.00390625
      %v4343 = vmul.f32 %v4215, 0.00390625
      %v4344 = vmul.f32 %v4216, 0.00390625
      %v4345 = vmul.f32 %v4217, 0.00390625
      %v4346 = vmul.f32 %v4218, 0.00390625
      %v4347 = vmul.f32 %v4219, 0.00390625
      %v4348 = vmul.f32 %v4220, 0.00390625
      %v4349 = vmul.f32 %v4221, 0.00390625
      %v4350 = vmul.f32 %v4222, 0.00390625
      %v4351 = vmul.f32 %v4223, 0.00390625
      %v4352 = vmul.f32 %v4224, 0.00390625
      %v4353 = vmul.f32 %v4225, 0.00390625
      %v4354 = vmul.f32 %v4226, 0.00390625
      %v4355 = vmul.f32 %v4227, 0.00390625
      %v4356 = vmul.f32 %v4228, 0.00390625
      %v4357 = vmul.f32 %v4229, 0.00390625
      %v4358 = vmul.f32 %v4230, 0.00390625
      %v4359 = vmul.f32 %v4231, 0.00390625
      %v4360 = vmul.f32 %v4232, 0.00390625
      %v4361 = vmul.f32 %v4233, 0.00390625
      %v4362 = vmul.f32 %v4234, 0.00390625
      %v4363 = vmul.f32 %v4235, 0.00390625
      %v4364 = vmul.f32 %v4236, 0.00390625
      %v4365 = vmul.f32 %v4237, 0.00390625
      %v4366 = vmul.f32 %v4238, 0.00390625
      %v4367 = vld [vmem:[%s3] sm:$0xff]
      %v4368 = vld [vmem:[%s3 + $0x8] sm:$0xff]
      %v4369 = vld [vmem:[%s3 + $0x10] sm:$0xff]
      %v4370 = vld [vmem:[%s3 + $0x18] sm:$0xff]
      %v4371 = vld [vmem:[%s4] sm:$0x1]
      %v4373 = vlaneseq
      %v4374 = vshrl.u32 %v4373, 7
      %v4375 = vsub.s32 0, %v4374
      %v4376 = vrot.slane %v4371, %v4375
      %v4506 = vlaneseq
      %v4507 = vand.u32 %v4506, 127
      %v4508 = vlaneseq
      %v4509 = vshrl.u32 %v4508, 7
      %v4510 = vsub.s32 %v4507, %v4509
      %v4511 = vrot.slane %v4239, %v4510
      %v4512 = vadd.s32 %v4507, 4294967288
      %v4513 = vlaneseq
      %v4514 = vshrl.u32 %v4513, 7
      %v4515 = vsub.s32 %v4512, %v4514
      %v4516 = vrot.slane %v4240, %v4515
      %vm4517 = vcmask 130112
      %v4518 = vsel %vm4517, %v4516, %v4511
      %v4519 = vadd.s32 %v4507, 4294967280
      %v4520 = vlaneseq
      %v4521 = vshrl.u32 %v4520, 7
      %v4522 = vsub.s32 %v4519, %v4521
      %v4523 = vrot.slane %v4241, %v4522
      %vm4524 = vcmask 195712
      %v4525 = vsel %vm4524, %v4523, %v4518
      %v4526 = vadd.s32 %v4507, 4294967272
      %v4527 = vlaneseq
      %v4528 = vshrl.u32 %v4527, 7
      %v4529 = vsub.s32 %v4526, %v4528
      %v4530 = vrot.slane %v4242, %v4529
      %vm4531 = vcmask 261312
      %v4532 = vsel %vm4531, %v4530, %v4525
      %v4533 = vlaneseq
      %v4534 = vshrl.u32 %v4533, 7
      %v4535 = vsub.s32 %v4507, %v4534
      %v4536 = vrot.slane %v4243, %v4535
      %v4537 = vlaneseq
      %v4538 = vshrl.u32 %v4537, 7
      %v4539 = vsub.s32 %v4512, %v4538
      %v4540 = vrot.slane %v4244, %v4539
      %v4541 = vsel %vm4517, %v4540, %v4536
      %v4542 = vlaneseq
      %v4543 = vshrl.u32 %v4542, 7
      %v4544 = vsub.s32 %v4519, %v4543
      %v4545 = vrot.slane %v4245, %v4544
      %v4546 = vsel %vm4524, %v4545, %v4541
      %v4547 = vlaneseq
      %v4548 = vshrl.u32 %v4547, 7
      %v4549 = vsub.s32 %v4526, %v4548
      %v4550 = vrot.slane %v4246, %v4549
      %v4551 = vsel %vm4531, %v4550, %v4546
      %v4552 = vlaneseq
      %v4553 = vshrl.u32 %v4552, 7
      %v4554 = vsub.s32 %v4507, %v4553
      %v4555 = vrot.slane %v4247, %v4554
      %v4556 = vlaneseq
      %v4557 = vshrl.u32 %v4556, 7
      %v4558 = vsub.s32 %v4512, %v4557
      %v4559 = vrot.slane %v4248, %v4558
      %v4560 = vsel %vm4517, %v4559, %v4555
      %v4561 = vlaneseq
      %v4562 = vshrl.u32 %v4561, 7
      %v4563 = vsub.s32 %v4519, %v4562
      %v4564 = vrot.slane %v4249, %v4563
      %v4565 = vsel %vm4524, %v4564, %v4560
      %v4566 = vlaneseq
      %v4567 = vshrl.u32 %v4566, 7
      %v4568 = vsub.s32 %v4526, %v4567
      %v4569 = vrot.slane %v4250, %v4568
      %v4570 = vsel %vm4531, %v4569, %v4565
      %v4571 = vlaneseq
      %v4572 = vshrl.u32 %v4571, 7
      %v4573 = vsub.s32 %v4507, %v4572
      %v4574 = vrot.slane %v4251, %v4573
      %v4575 = vlaneseq
      %v4576 = vshrl.u32 %v4575, 7
      %v4577 = vsub.s32 %v4512, %v4576
      %v4578 = vrot.slane %v4252, %v4577
      %v4579 = vsel %vm4517, %v4578, %v4574
      %v4580 = vlaneseq
      %v4581 = vshrl.u32 %v4580, 7
      %v4582 = vsub.s32 %v4519, %v4581
      %v4583 = vrot.slane %v4253, %v4582
      %v4584 = vsel %vm4524, %v4583, %v4579
      %v4585 = vlaneseq
      %v4586 = vshrl.u32 %v4585, 7
      %v4587 = vsub.s32 %v4526, %v4586
      %v4588 = vrot.slane %v4254, %v4587
      %v4589 = vsel %vm4531, %v4588, %v4584
      %v4590 = vlaneseq
      %v4591 = vshrl.u32 %v4590, 7
      %v4592 = vsub.s32 %v4507, %v4591
      %v4593 = vrot.slane %v4255, %v4592
      %v4594 = vlaneseq
      %v4595 = vshrl.u32 %v4594, 7
      %v4596 = vsub.s32 %v4512, %v4595
      %v4597 = vrot.slane %v4256, %v4596
      %v4598 = vsel %vm4517, %v4597, %v4593
      %v4599 = vlaneseq
      %v4600 = vshrl.u32 %v4599, 7
      %v4601 = vsub.s32 %v4519, %v4600
      %v4602 = vrot.slane %v4257, %v4601
      %v4603 = vsel %vm4524, %v4602, %v4598
      %v4604 = vlaneseq
      %v4605 = vshrl.u32 %v4604, 7
      %v4606 = vsub.s32 %v4526, %v4605
      %v4607 = vrot.slane %v4258, %v4606
      %v4608 = vsel %vm4531, %v4607, %v4603
      %v4609 = vlaneseq
      %v4610 = vshrl.u32 %v4609, 7
      %v4611 = vsub.s32 %v4507, %v4610
      %v4612 = vrot.slane %v4259, %v4611
      %v4613 = vlaneseq
      %v4614 = vshrl.u32 %v4613, 7
      %v4615 = vsub.s32 %v4512, %v4614
      %v4616 = vrot.slane %v4260, %v4615
      %v4617 = vsel %vm4517, %v4616, %v4612
      %v4618 = vlaneseq
      %v4619 = vshrl.u32 %v4618, 7
      %v4620 = vsub.s32 %v4519, %v4619
      %v4621 = vrot.slane %v4261, %v4620
      %v4622 = vsel %vm4524, %v4621, %v4617
      %v4623 = vlaneseq
      %v4624 = vshrl.u32 %v4623, 7
      %v4625 = vsub.s32 %v4526, %v4624
      %v4626 = vrot.slane %v4262, %v4625
      %v4627 = vsel %vm4531, %v4626, %v4622
      %v4628 = vlaneseq
      %v4629 = vshrl.u32 %v4628, 7
      %v4630 = vsub.s32 %v4507, %v4629
      %v4631 = vrot.slane %v4263, %v4630
      %v4632 = vlaneseq
      %v4633 = vshrl.u32 %v4632, 7
      %v4634 = vsub.s32 %v4512, %v4633
      %v4635 = vrot.slane %v4264, %v4634
      %v4636 = vsel %vm4517, %v4635, %v4631
      %v4637 = vlaneseq
      %v4638 = vshrl.u32 %v4637, 7
      %v4639 = vsub.s32 %v4519, %v4638
      %v4640 = vrot.slane %v4265, %v4639
      %v4641 = vsel %vm4524, %v4640, %v4636
      %v4642 = vlaneseq
      %v4643 = vshrl.u32 %v4642, 7
      %v4644 = vsub.s32 %v4526, %v4643
      %v4645 = vrot.slane %v4266, %v4644
      %v4646 = vsel %vm4531, %v4645, %v4641
      %v4647 = vlaneseq
      %v4648 = vshrl.u32 %v4647, 7
      %v4649 = vsub.s32 %v4507, %v4648
      %v4650 = vrot.slane %v4267, %v4649
      %v4651 = vlaneseq
      %v4652 = vshrl.u32 %v4651, 7
      %v4653 = vsub.s32 %v4512, %v4652
      %v4654 = vrot.slane %v4268, %v4653
      %v4655 = vsel %vm4517, %v4654, %v4650
      %v4656 = vlaneseq
      %v4657 = vshrl.u32 %v4656, 7
      %v4658 = vsub.s32 %v4519, %v4657
      %v4659 = vrot.slane %v4269, %v4658
      %v4660 = vsel %vm4524, %v4659, %v4655
      %v4661 = vlaneseq
      %v4662 = vshrl.u32 %v4661, 7
      %v4663 = vsub.s32 %v4526, %v4662
      %v4664 = vrot.slane %v4270, %v4663
      %v4665 = vsel %vm4531, %v4664, %v4660
      %v4666 = vlaneseq
      %v4667 = vshrl.u32 %v4666, 7
      %v4668 = vsub.s32 %v4507, %v4667
      %v4669 = vrot.slane %v4271, %v4668
      %v4670 = vlaneseq
      %v4671 = vshrl.u32 %v4670, 7
      %v4672 = vsub.s32 %v4512, %v4671
      %v4673 = vrot.slane %v4272, %v4672
      %v4674 = vsel %vm4517, %v4673, %v4669
      %v4675 = vlaneseq
      %v4676 = vshrl.u32 %v4675, 7
      %v4677 = vsub.s32 %v4519, %v4676
      %v4678 = vrot.slane %v4273, %v4677
      %v4679 = vsel %vm4524, %v4678, %v4674
      %v4680 = vlaneseq
      %v4681 = vshrl.u32 %v4680, 7
      %v4682 = vsub.s32 %v4526, %v4681
      %v4683 = vrot.slane %v4274, %v4682
      %v4684 = vsel %vm4531, %v4683, %v4679
      %v4685 = vlaneseq
      %v4686 = vshrl.u32 %v4685, 7
      %v4687 = vsub.s32 %v4507, %v4686
      %v4688 = vrot.slane %v4275, %v4687
      %v4689 = vlaneseq
      %v4690 = vshrl.u32 %v4689, 7
      %v4691 = vsub.s32 %v4512, %v4690
      %v4692 = vrot.slane %v4276, %v4691
      %v4693 = vsel %vm4517, %v4692, %v4688
      %v4694 = vlaneseq
      %v4695 = vshrl.u32 %v4694, 7
      %v4696 = vsub.s32 %v4519, %v4695
      %v4697 = vrot.slane %v4277, %v4696
      %v4698 = vsel %vm4524, %v4697, %v4693
      %v4699 = vlaneseq
      %v4700 = vshrl.u32 %v4699, 7
      %v4701 = vsub.s32 %v4526, %v4700
      %v4702 = vrot.slane %v4278, %v4701
      %v4703 = vsel %vm4531, %v4702, %v4698
      %v4704 = vlaneseq
      %v4705 = vshrl.u32 %v4704, 7
      %v4706 = vsub.s32 %v4507, %v4705
      %v4707 = vrot.slane %v4279, %v4706
      %v4708 = vlaneseq
      %v4709 = vshrl.u32 %v4708, 7
      %v4710 = vsub.s32 %v4512, %v4709
      %v4711 = vrot.slane %v4280, %v4710
      %v4712 = vsel %vm4517, %v4711, %v4707
      %v4713 = vlaneseq
      %v4714 = vshrl.u32 %v4713, 7
      %v4715 = vsub.s32 %v4519, %v4714
      %v4716 = vrot.slane %v4281, %v4715
      %v4717 = vsel %vm4524, %v4716, %v4712
      %v4718 = vlaneseq
      %v4719 = vshrl.u32 %v4718, 7
      %v4720 = vsub.s32 %v4526, %v4719
      %v4721 = vrot.slane %v4282, %v4720
      %v4722 = vsel %vm4531, %v4721, %v4717
      %v4723 = vlaneseq
      %v4724 = vshrl.u32 %v4723, 7
      %v4725 = vsub.s32 %v4507, %v4724
      %v4726 = vrot.slane %v4283, %v4725
      %v4727 = vlaneseq
      %v4728 = vshrl.u32 %v4727, 7
      %v4729 = vsub.s32 %v4512, %v4728
      %v4730 = vrot.slane %v4284, %v4729
      %v4731 = vsel %vm4517, %v4730, %v4726
      %v4732 = vlaneseq
      %v4733 = vshrl.u32 %v4732, 7
      %v4734 = vsub.s32 %v4519, %v4733
      %v4735 = vrot.slane %v4285, %v4734
      %v4736 = vsel %vm4524, %v4735, %v4731
      %v4737 = vlaneseq
      %v4738 = vshrl.u32 %v4737, 7
      %v4739 = vsub.s32 %v4526, %v4738
      %v4740 = vrot.slane %v4286, %v4739
      %v4741 = vsel %vm4531, %v4740, %v4736
      %v4742 = vlaneseq
      %v4743 = vshrl.u32 %v4742, 7
      %v4744 = vsub.s32 %v4507, %v4743
      %v4745 = vrot.slane %v4287, %v4744
      %v4746 = vlaneseq
      %v4747 = vshrl.u32 %v4746, 7
      %v4748 = vsub.s32 %v4512, %v4747
      %v4749 = vrot.slane %v4288, %v4748
      %v4750 = vsel %vm4517, %v4749, %v4745
      %v4751 = vlaneseq
      %v4752 = vshrl.u32 %v4751, 7
      %v4753 = vsub.s32 %v4519, %v4752
      %v4754 = vrot.slane %v4289, %v4753
      %v4755 = vsel %vm4524, %v4754, %v4750
      %v4756 = vlaneseq
      %v4757 = vshrl.u32 %v4756, 7
      %v4758 = vsub.s32 %v4526, %v4757
      %v4759 = vrot.slane %v4290, %v4758
      %v4760 = vsel %vm4531, %v4759, %v4755
      %v4761 = vlaneseq
      %v4762 = vshrl.u32 %v4761, 7
      %v4763 = vsub.s32 %v4507, %v4762
      %v4764 = vrot.slane %v4291, %v4763
      %v4765 = vlaneseq
      %v4766 = vshrl.u32 %v4765, 7
      %v4767 = vsub.s32 %v4512, %v4766
      %v4768 = vrot.slane %v4292, %v4767
      %v4769 = vsel %vm4517, %v4768, %v4764
      %v4770 = vlaneseq
      %v4771 = vshrl.u32 %v4770, 7
      %v4772 = vsub.s32 %v4519, %v4771
      %v4773 = vrot.slane %v4293, %v4772
      %v4774 = vsel %vm4524, %v4773, %v4769
      %v4775 = vlaneseq
      %v4776 = vshrl.u32 %v4775, 7
      %v4777 = vsub.s32 %v4526, %v4776
      %v4778 = vrot.slane %v4294, %v4777
      %v4779 = vsel %vm4531, %v4778, %v4774
      %v4780 = vlaneseq
      %v4781 = vshrl.u32 %v4780, 7
      %v4782 = vsub.s32 %v4507, %v4781
      %v4783 = vrot.slane %v4295, %v4782
      %v4784 = vlaneseq
      %v4785 = vshrl.u32 %v4784, 7
      %v4786 = vsub.s32 %v4512, %v4785
      %v4787 = vrot.slane %v4296, %v4786
      %v4788 = vsel %vm4517, %v4787, %v4783
      %v4789 = vlaneseq
      %v4790 = vshrl.u32 %v4789, 7
      %v4791 = vsub.s32 %v4519, %v4790
      %v4792 = vrot.slane %v4297, %v4791
      %v4793 = vsel %vm4524, %v4792, %v4788
      %v4794 = vlaneseq
      %v4795 = vshrl.u32 %v4794, 7
      %v4796 = vsub.s32 %v4526, %v4795
      %v4797 = vrot.slane %v4298, %v4796
      %v4798 = vsel %vm4531, %v4797, %v4793
      %v4799 = vlaneseq
      %v4800 = vshrl.u32 %v4799, 7
      %v4801 = vsub.s32 %v4507, %v4800
      %v4802 = vrot.slane %v4299, %v4801
      %v4803 = vlaneseq
      %v4804 = vshrl.u32 %v4803, 7
      %v4805 = vsub.s32 %v4512, %v4804
      %v4806 = vrot.slane %v4300, %v4805
      %v4807 = vsel %vm4517, %v4806, %v4802
      %v4808 = vlaneseq
      %v4809 = vshrl.u32 %v4808, 7
      %v4810 = vsub.s32 %v4519, %v4809
      %v4811 = vrot.slane %v4301, %v4810
      %v4812 = vsel %vm4524, %v4811, %v4807
      %v4813 = vlaneseq
      %v4814 = vshrl.u32 %v4813, 7
      %v4815 = vsub.s32 %v4526, %v4814
      %v4816 = vrot.slane %v4302, %v4815
      %v4817 = vsel %vm4531, %v4816, %v4812
      %v4818 = vlaneseq
      %v4819 = vshrl.u32 %v4818, 7
      %v4820 = vsub.s32 %v4507, %v4819
      %v4821 = vrot.slane %v4303, %v4820
      %v4822 = vlaneseq
      %v4823 = vshrl.u32 %v4822, 7
      %v4824 = vsub.s32 %v4512, %v4823
      %v4825 = vrot.slane %v4304, %v4824
      %v4826 = vsel %vm4517, %v4825, %v4821
      %v4827 = vlaneseq
      %v4828 = vshrl.u32 %v4827, 7
      %v4829 = vsub.s32 %v4519, %v4828
      %v4830 = vrot.slane %v4305, %v4829
      %v4831 = vsel %vm4524, %v4830, %v4826
      %v4832 = vlaneseq
      %v4833 = vshrl.u32 %v4832, 7
      %v4834 = vsub.s32 %v4526, %v4833
      %v4835 = vrot.slane %v4306, %v4834
      %v4836 = vsel %vm4531, %v4835, %v4831
      %v4837 = vlaneseq
      %v4838 = vshrl.u32 %v4837, 7
      %v4839 = vsub.s32 %v4507, %v4838
      %v4840 = vrot.slane %v4307, %v4839
      %v4841 = vlaneseq
      %v4842 = vshrl.u32 %v4841, 7
      %v4843 = vsub.s32 %v4512, %v4842
      %v4844 = vrot.slane %v4308, %v4843
      %v4845 = vsel %vm4517, %v4844, %v4840
      %v4846 = vlaneseq
      %v4847 = vshrl.u32 %v4846, 7
      %v4848 = vsub.s32 %v4519, %v4847
      %v4849 = vrot.slane %v4309, %v4848
      %v4850 = vsel %vm4524, %v4849, %v4845
      %v4851 = vlaneseq
      %v4852 = vshrl.u32 %v4851, 7
      %v4853 = vsub.s32 %v4526, %v4852
      %v4854 = vrot.slane %v4310, %v4853
      %v4855 = vsel %vm4531, %v4854, %v4850
      %v4856 = vlaneseq
      %v4857 = vshrl.u32 %v4856, 7
      %v4858 = vsub.s32 %v4507, %v4857
      %v4859 = vrot.slane %v4311, %v4858
      %v4860 = vlaneseq
      %v4861 = vshrl.u32 %v4860, 7
      %v4862 = vsub.s32 %v4512, %v4861
      %v4863 = vrot.slane %v4312, %v4862
      %v4864 = vsel %vm4517, %v4863, %v4859
      %v4865 = vlaneseq
      %v4866 = vshrl.u32 %v4865, 7
      %v4867 = vsub.s32 %v4519, %v4866
      %v4868 = vrot.slane %v4313, %v4867
      %v4869 = vsel %vm4524, %v4868, %v4864
      %v4870 = vlaneseq
      %v4871 = vshrl.u32 %v4870, 7
      %v4872 = vsub.s32 %v4526, %v4871
      %v4873 = vrot.slane %v4314, %v4872
      %v4874 = vsel %vm4531, %v4873, %v4869
      %v4875 = vlaneseq
      %v4876 = vshrl.u32 %v4875, 7
      %v4877 = vsub.s32 %v4507, %v4876
      %v4878 = vrot.slane %v4315, %v4877
      %v4879 = vlaneseq
      %v4880 = vshrl.u32 %v4879, 7
      %v4881 = vsub.s32 %v4512, %v4880
      %v4882 = vrot.slane %v4316, %v4881
      %v4883 = vsel %vm4517, %v4882, %v4878
      %v4884 = vlaneseq
      %v4885 = vshrl.u32 %v4884, 7
      %v4886 = vsub.s32 %v4519, %v4885
      %v4887 = vrot.slane %v4317, %v4886
      %v4888 = vsel %vm4524, %v4887, %v4883
      %v4889 = vlaneseq
      %v4890 = vshrl.u32 %v4889, 7
      %v4891 = vsub.s32 %v4526, %v4890
      %v4892 = vrot.slane %v4318, %v4891
      %v4893 = vsel %vm4531, %v4892, %v4888
      %v4894 = vlaneseq
      %v4895 = vshrl.u32 %v4894, 7
      %v4896 = vsub.s32 %v4507, %v4895
      %v4897 = vrot.slane %v4319, %v4896
      %v4898 = vlaneseq
      %v4899 = vshrl.u32 %v4898, 7
      %v4900 = vsub.s32 %v4512, %v4899
      %v4901 = vrot.slane %v4320, %v4900
      %v4902 = vsel %vm4517, %v4901, %v4897
      %v4903 = vlaneseq
      %v4904 = vshrl.u32 %v4903, 7
      %v4905 = vsub.s32 %v4519, %v4904
      %v4906 = vrot.slane %v4321, %v4905
      %v4907 = vsel %vm4524, %v4906, %v4902
      %v4908 = vlaneseq
      %v4909 = vshrl.u32 %v4908, 7
      %v4910 = vsub.s32 %v4526, %v4909
      %v4911 = vrot.slane %v4322, %v4910
      %v4912 = vsel %vm4531, %v4911, %v4907
      %v4913 = vlaneseq
      %v4914 = vshrl.u32 %v4913, 7
      %v4915 = vsub.s32 %v4507, %v4914
      %v4916 = vrot.slane %v4323, %v4915
      %v4917 = vlaneseq
      %v4918 = vshrl.u32 %v4917, 7
      %v4919 = vsub.s32 %v4512, %v4918
      %v4920 = vrot.slane %v4324, %v4919
      %v4921 = vsel %vm4517, %v4920, %v4916
      %v4922 = vlaneseq
      %v4923 = vshrl.u32 %v4922, 7
      %v4924 = vsub.s32 %v4519, %v4923
      %v4925 = vrot.slane %v4325, %v4924
      %v4926 = vsel %vm4524, %v4925, %v4921
      %v4927 = vlaneseq
      %v4928 = vshrl.u32 %v4927, 7
      %v4929 = vsub.s32 %v4526, %v4928
      %v4930 = vrot.slane %v4326, %v4929
      %v4931 = vsel %vm4531, %v4930, %v4926
      %v4932 = vlaneseq
      %v4933 = vshrl.u32 %v4932, 7
      %v4934 = vsub.s32 %v4507, %v4933
      %v4935 = vrot.slane %v4327, %v4934
      %v4936 = vlaneseq
      %v4937 = vshrl.u32 %v4936, 7
      %v4938 = vsub.s32 %v4512, %v4937
      %v4939 = vrot.slane %v4328, %v4938
      %v4940 = vsel %vm4517, %v4939, %v4935
      %v4941 = vlaneseq
      %v4942 = vshrl.u32 %v4941, 7
      %v4943 = vsub.s32 %v4519, %v4942
      %v4944 = vrot.slane %v4329, %v4943
      %v4945 = vsel %vm4524, %v4944, %v4940
      %v4946 = vlaneseq
      %v4947 = vshrl.u32 %v4946, 7
      %v4948 = vsub.s32 %v4526, %v4947
      %v4949 = vrot.slane %v4330, %v4948
      %v4950 = vsel %vm4531, %v4949, %v4945
      %v4951 = vlaneseq
      %v4952 = vshrl.u32 %v4951, 7
      %v4953 = vsub.s32 %v4507, %v4952
      %v4954 = vrot.slane %v4331, %v4953
      %v4955 = vlaneseq
      %v4956 = vshrl.u32 %v4955, 7
      %v4957 = vsub.s32 %v4512, %v4956
      %v4958 = vrot.slane %v4332, %v4957
      %v4959 = vsel %vm4517, %v4958, %v4954
      %v4960 = vlaneseq
      %v4961 = vshrl.u32 %v4960, 7
      %v4962 = vsub.s32 %v4519, %v4961
      %v4963 = vrot.slane %v4333, %v4962
      %v4964 = vsel %vm4524, %v4963, %v4959
      %v4965 = vlaneseq
      %v4966 = vshrl.u32 %v4965, 7
      %v4967 = vsub.s32 %v4526, %v4966
      %v4968 = vrot.slane %v4334, %v4967
      %v4969 = vsel %vm4531, %v4968, %v4964
      %v4970 = vlaneseq
      %v4971 = vshrl.u32 %v4970, 7
      %v4972 = vsub.s32 %v4507, %v4971
      %v4973 = vrot.slane %v4335, %v4972
      %v4974 = vlaneseq
      %v4975 = vshrl.u32 %v4974, 7
      %v4976 = vsub.s32 %v4512, %v4975
      %v4977 = vrot.slane %v4336, %v4976
      %v4978 = vsel %vm4517, %v4977, %v4973
      %v4979 = vlaneseq
      %v4980 = vshrl.u32 %v4979, 7
      %v4981 = vsub.s32 %v4519, %v4980
      %v4982 = vrot.slane %v4337, %v4981
      %v4983 = vsel %vm4524, %v4982, %v4978
      %v4984 = vlaneseq
      %v4985 = vshrl.u32 %v4984, 7
      %v4986 = vsub.s32 %v4526, %v4985
      %v4987 = vrot.slane %v4338, %v4986
      %v4988 = vsel %vm4531, %v4987, %v4983
      %v4989 = vlaneseq
      %v4990 = vshrl.u32 %v4989, 7
      %v4991 = vsub.s32 %v4507, %v4990
      %v4992 = vrot.slane %v4339, %v4991
      %v4993 = vlaneseq
      %v4994 = vshrl.u32 %v4993, 7
      %v4995 = vsub.s32 %v4512, %v4994
      %v4996 = vrot.slane %v4340, %v4995
      %v4997 = vsel %vm4517, %v4996, %v4992
      %v4998 = vlaneseq
      %v4999 = vshrl.u32 %v4998, 7
      %v5000 = vsub.s32 %v4519, %v4999
      %v5001 = vrot.slane %v4341, %v5000
      %v5002 = vsel %vm4524, %v5001, %v4997
      %v5003 = vlaneseq
      %v5004 = vshrl.u32 %v5003, 7
      %v5005 = vsub.s32 %v4526, %v5004
      %v5006 = vrot.slane %v4342, %v5005
      %v5007 = vsel %vm4531, %v5006, %v5002
      %v5008 = vlaneseq
      %v5009 = vshrl.u32 %v5008, 7
      %v5010 = vsub.s32 %v4507, %v5009
      %v5011 = vrot.slane %v4343, %v5010
      %v5012 = vlaneseq
      %v5013 = vshrl.u32 %v5012, 7
      %v5014 = vsub.s32 %v4512, %v5013
      %v5015 = vrot.slane %v4344, %v5014
      %v5016 = vsel %vm4517, %v5015, %v5011
      %v5017 = vlaneseq
      %v5018 = vshrl.u32 %v5017, 7
      %v5019 = vsub.s32 %v4519, %v5018
      %v5020 = vrot.slane %v4345, %v5019
      %v5021 = vsel %vm4524, %v5020, %v5016
      %v5022 = vlaneseq
      %v5023 = vshrl.u32 %v5022, 7
      %v5024 = vsub.s32 %v4526, %v5023
      %v5025 = vrot.slane %v4346, %v5024
      %v5026 = vsel %vm4531, %v5025, %v5021
      %v5027 = vlaneseq
      %v5028 = vshrl.u32 %v5027, 7
      %v5029 = vsub.s32 %v4507, %v5028
      %v5030 = vrot.slane %v4347, %v5029
      %v5031 = vlaneseq
      %v5032 = vshrl.u32 %v5031, 7
      %v5033 = vsub.s32 %v4512, %v5032
      %v5034 = vrot.slane %v4348, %v5033
      %v5035 = vsel %vm4517, %v5034, %v5030
      %v5036 = vlaneseq
      %v5037 = vshrl.u32 %v5036, 7
      %v5038 = vsub.s32 %v4519, %v5037
      %v5039 = vrot.slane %v4349, %v5038
      %v5040 = vsel %vm4524, %v5039, %v5035
      %v5041 = vlaneseq
      %v5042 = vshrl.u32 %v5041, 7
      %v5043 = vsub.s32 %v4526, %v5042
      %v5044 = vrot.slane %v4350, %v5043
      %v5045 = vsel %vm4531, %v5044, %v5040
      %v5046 = vlaneseq
      %v5047 = vshrl.u32 %v5046, 7
      %v5048 = vsub.s32 %v4507, %v5047
      %v5049 = vrot.slane %v4351, %v5048
      %v5050 = vlaneseq
      %v5051 = vshrl.u32 %v5050, 7
      %v5052 = vsub.s32 %v4512, %v5051
      %v5053 = vrot.slane %v4352, %v5052
      %v5054 = vsel %vm4517, %v5053, %v5049
      %v5055 = vlaneseq
      %v5056 = vshrl.u32 %v5055, 7
      %v5057 = vsub.s32 %v4519, %v5056
      %v5058 = vrot.slane %v4353, %v5057
      %v5059 = vsel %vm4524, %v5058, %v5054
      %v5060 = vlaneseq
      %v5061 = vshrl.u32 %v5060, 7
      %v5062 = vsub.s32 %v4526, %v5061
      %v5063 = vrot.slane %v4354, %v5062
      %v5064 = vsel %vm4531, %v5063, %v5059
      %v5065 = vlaneseq
      %v5066 = vshrl.u32 %v5065, 7
      %v5067 = vsub.s32 %v4507, %v5066
      %v5068 = vrot.slane %v4355, %v5067
      %v5069 = vlaneseq
      %v5070 = vshrl.u32 %v5069, 7
      %v5071 = vsub.s32 %v4512, %v5070
      %v5072 = vrot.slane %v4356, %v5071
      %v5073 = vsel %vm4517, %v5072, %v5068
      %v5074 = vlaneseq
      %v5075 = vshrl.u32 %v5074, 7
      %v5076 = vsub.s32 %v4519, %v5075
      %v5077 = vrot.slane %v4357, %v5076
      %v5078 = vsel %vm4524, %v5077, %v5073
      %v5079 = vlaneseq
      %v5080 = vshrl.u32 %v5079, 7
      %v5081 = vsub.s32 %v4526, %v5080
      %v5082 = vrot.slane %v4358, %v5081
      %v5083 = vsel %vm4531, %v5082, %v5078
      %v5084 = vlaneseq
      %v5085 = vshrl.u32 %v5084, 7
      %v5086 = vsub.s32 %v4507, %v5085
      %v5087 = vrot.slane %v4359, %v5086
      %v5088 = vlaneseq
      %v5089 = vshrl.u32 %v5088, 7
      %v5090 = vsub.s32 %v4512, %v5089
      %v5091 = vrot.slane %v4360, %v5090
      %v5092 = vsel %vm4517, %v5091, %v5087
      %v5093 = vlaneseq
      %v5094 = vshrl.u32 %v5093, 7
      %v5095 = vsub.s32 %v4519, %v5094
      %v5096 = vrot.slane %v4361, %v5095
      %v5097 = vsel %vm4524, %v5096, %v5092
      %v5098 = vlaneseq
      %v5099 = vshrl.u32 %v5098, 7
      %v5100 = vsub.s32 %v4526, %v5099
      %v5101 = vrot.slane %v4362, %v5100
      %v5102 = vsel %vm4531, %v5101, %v5097
      %v5103 = vlaneseq
      %v5104 = vshrl.u32 %v5103, 7
      %v5105 = vsub.s32 %v4507, %v5104
      %v5106 = vrot.slane %v4363, %v5105
      %v5107 = vlaneseq
      %v5108 = vshrl.u32 %v5107, 7
      %v5109 = vsub.s32 %v4512, %v5108
      %v5110 = vrot.slane %v4364, %v5109
      %v5111 = vsel %vm4517, %v5110, %v5106
      %v5112 = vlaneseq
      %v5113 = vshrl.u32 %v5112, 7
      %v5114 = vsub.s32 %v4519, %v5113
      %v5115 = vrot.slane %v4365, %v5114
      %v5116 = vsel %vm4524, %v5115, %v5111
      %v5117 = vlaneseq
      %v5118 = vshrl.u32 %v5117, 7
      %v5119 = vsub.s32 %v4526, %v5118
      %v5120 = vrot.slane %v4366, %v5119
      %v5121 = vsel %vm4531, %v5120, %v5116
      %vm5122 = vcmask 1041409
      %v5123 = vsel %vm5122, %v4551, %v4532
      %vm5124 = vcmask 1042434
      %v5125 = vsel %vm5124, %v4570, %v5123
      %vm5126 = vcmask 1043459
      %v5127 = vsel %vm5126, %v4589, %v5125
      %vm5128 = vcmask 1044484
      %v5129 = vsel %vm5128, %v4608, %v5127
      %vm5130 = vcmask 1045509
      %v5131 = vsel %vm5130, %v4627, %v5129
      %vm5132 = vcmask 1046534
      %v5133 = vsel %vm5132, %v4646, %v5131
      %vm5134 = vcmask 1047559
      %v5135 = vsel %vm5134, %v4665, %v5133
      %v5136 = vsel %vm5122, %v4703, %v4684
      %v5137 = vsel %vm5124, %v4722, %v5136
      %v5138 = vsel %vm5126, %v4741, %v5137
      %v5139 = vsel %vm5128, %v4760, %v5138
      %v5140 = vsel %vm5130, %v4779, %v5139
      %v5141 = vsel %vm5132, %v4798, %v5140
      %v5142 = vsel %vm5134, %v4817, %v5141
      %v5143 = vsel %vm5122, %v4855, %v4836
      %v5144 = vsel %vm5124, %v4874, %v5143
      %v5145 = vsel %vm5126, %v4893, %v5144
      %v5146 = vsel %vm5128, %v4912, %v5145
      %v5147 = vsel %vm5130, %v4931, %v5146
      %v5148 = vsel %vm5132, %v4950, %v5147
      %v5149 = vsel %vm5134, %v4969, %v5148
      %v5150 = vsel %vm5122, %v5007, %v4988
      %v5151 = vsel %vm5124, %v5026, %v5150
      %v5152 = vsel %vm5126, %v5045, %v5151
      %v5153 = vsel %vm5128, %v5064, %v5152
      %v5154 = vsel %vm5130, %v5083, %v5153
      %v5155 = vsel %vm5132, %v5102, %v5154
      %v5156 = vsel %vm5134, %v5121, %v5155
      %vm5157 = vcmask 261120
      %v5158 = vsel %vm5157, %v5135, 0
      %v5160 = vsel %vm5157, %v5142, 0
      %v5162 = vsel %vm5157, %v5149, 0
      %v5164 = vsel %vm5157, %v5156, 0
      %5166 = vmatprep.subr.mxu0 0.0
      %5167 = vmatpush1.msra.mxu0 0.0
      %5168 = vmatprep.subr.mxu0 0.0
      %5169 = vmatpush1.msra.mxu0 0.0
      %5170 = vmatprep.subr.mxu0 0.0
      %5171 = vmatpush1.msra.mxu0 0.0
      %5172 = vmatprep.subr.mxu0 0.0
      %5173 = vmatpush1.msra.mxu0 0.0
      %5174 = vmatprep.subr.mxu0 0.0
      %5175 = vmatpush1.msra.mxu0 0.0
      %5176 = vmatprep.subr.mxu0 0.0
      %5177 = vmatpush1.msra.mxu0 0.0
      %5178 = vmatprep.subr.mxu0 0.0
      %5179 = vmatpush1.msra.mxu0 0.0
      %5180 = vmatprep.subr.mxu0 0.0
      %5181 = vmatpush1.msra.mxu0 0.0
      %5182 = vmatprep.subr.mxu0 0.0
      %5183 = vmatpush1.msra.mxu0 0.0
      %5184 = vmatprep.subr.mxu0 0.0
      %5185 = vmatpush1.msra.mxu0 0.0
      %5186 = vmatprep.subr.mxu0 0.0
      %5187 = vmatpush1.msra.mxu0 0.0
      %5188 = vmatprep.subr.mxu0 0.0
      %5189 = vmatpush1.msra.mxu0 0.0
      %5190 = vmatprep.subr.mxu0 0.0
      %5191 = vmatpush1.msra.mxu0 %v4370
      %5192 = vmatprep.subr.mxu0 0.0
      %5193 = vmatpush1.msra.mxu0 %v4369
      %5194 = vmatprep.subr.mxu0 0.0
      %5195 = vmatpush1.msra.mxu0 %v4368
      %5196 = vmatprep.subr.mxu0 0.0
      %5197 = vmatpush1.msra.mxu0 %v4367
      %5198 = vmatprep.subr.mxu0 0.0
      %5199 = vmatpush2.msra.mxu0 0.0
      %5200 = vmatprep.subr.mxu0 0.0
      %5201 = vmatpush2.msra.mxu0 0.0
      %5202 = vmatprep.subr.mxu0 0.0
      %5203 = vmatpush2.msra.mxu0 0.0
      %5204 = vmatprep.subr.mxu0 0.0
      %5205 = vmatpush2.msra.mxu0 0.0
      %5206 = vmatprep.subr.mxu0 0.0
      %5207 = vmatpush2.msra.mxu0 0.0
      %5208 = vmatprep.subr.mxu0 0.0
      %5209 = vmatpush2.msra.mxu0 0.0
      %5210 = vmatprep.subr.mxu0 0.0
      %5211 = vmatpush2.msra.mxu0 0.0
      %5212 = vmatprep.subr.mxu0 0.0
      %5213 = vmatpush2.msra.mxu0 0.0
      %5214 = vmatprep.subr.mxu0 0.0
      %5215 = vmatpush2.msra.mxu0 0.0
      %5216 = vmatprep.subr.mxu0 0.0
      %5217 = vmatpush2.msra.mxu0 0.0
      %5218 = vmatprep.subr.mxu0 0.0
      %5219 = vmatpush2.msra.mxu0 0.0
      %5220 = vmatprep.subr.mxu0 0.0
      %5221 = vmatpush2.msra.mxu0 0.0
      %5222 = vmatprep.subr.mxu0 0.0
      %5223 = vmatpush2.msra.mxu0 0.0
      %5224 = vmatprep.subr.mxu0 0.0
      %5225 = vmatpush2.msra.mxu0 0.0
      %5226 = vmatprep.subr.mxu0 0.0
      %5227 = vmatpush2.msra.mxu0 0.0
      %5228 = vmatprep.subr.mxu0 0.0
      %5229 = vmatpush2.msra.mxu0 0.0
      %5230 = vmatprep.mubr.f32.mxu0 0.0
      %5231 = vmatmul.mubr.f32.gmra.mxu0 %v5158
      %v5232 = vpop.f32.mrf.mxu0
      %v5233 = vadd.f32 %v4376, %v5232
      %v5234 = vpop.f32.mrf.mxu0
      %5235 = vmatprep.mubr.f32.mxu0 0.0
      %5236 = vmatmul.mubr.f32.gmra.mxu0 %v5160
      %v5237 = vpop.f32.mrf.mxu0
      %v5238 = vadd.f32 %v4376, %v5237
      %v5239 = vpop.f32.mrf.mxu0
      %5240 = vmatprep.mubr.f32.mxu0 0.0
      %5241 = vmatmul.mubr.f32.gmra.mxu0 %v5162
      %v5242 = vpop.f32.mrf.mxu0
      %v5243 = vadd.f32 %v4376, %v5242
      %v5244 = vpop.f32.mrf.mxu0
      %5245 = vmatprep.mubr.f32.mxu0 0.0
      %5246 = vmatmul.mubr.f32.gmra.mxu0 %v5164
      %v5247 = vpop.f32.mrf.mxu0
      %v5248 = vadd.f32 %v4376, %v5247
      %v5249 = vpop.f32.mrf.mxu0
      %5250 = vdwg.mxu0
      %v5251 = vmul.f32 %v5233, %v5233
      %v5252 = vmul.f32 %v5238, %v5238
      %v5253 = vmul.f32 %v5243, %v5243
      %v5254 = vmul.f32 %v5248, %v5248
      %5255 = vadd.xlane.f32.xlu0 %v5251
      %v5256 = vpop.xlane.xlu0 %5255
      %5257 = vadd.xlane.f32.xlu0 %v5252
      %v5258 = vpop.xlane.xlu0 %5257
      %5259 = vadd.xlane.f32.xlu0 %v5253
      %v5260 = vpop.xlane.xlu0 %5259
      %5261 = vadd.xlane.f32.xlu0 %v5254
      %v5262 = vpop.xlane.xlu0 %5261
      %v5263 = vmax.f32 %v5256, 1e-24
      %v5264 = vmax.f32 %v5258, 1e-24
      %v5265 = vmax.f32 %v5260, 1e-24
      %v5266 = vmax.f32 %v5262, 1e-24
      %v5267 = vrsqrt.pop %v5263
      %v5268 = vrsqrt.pop %v5264
      %v5269 = vrsqrt.pop %v5265
      %v5270 = vrsqrt.pop %v5266
      %v5271 = vmul.f32 %v5233, %v5267
      %v5272 = vmul.f32 %v5238, %v5268
      %v5273 = vmul.f32 %v5243, %v5269
      %v5274 = vmul.f32 %v5248, %v5270
      %5275 = vst [vmem:[%s229] sm:$0xff] %v5271
      %5276 = vst [vmem:[%s229 + $0x8] sm:$0xff] %v5272
      %5277 = vst [vmem:[%s229 + $0x10] sm:$0xff] %v5273
      %5278 = vst [vmem:[%s229 + $0x18] sm:$0xff] %v5274
      %s5279 = smul.u32 4, %s16
      %p5280 = scmp.lt.s32.totalorder %s5279, 15
      %s5281 = scalar_select %p5280, %s5279, 15
      %s5282 = smul.addr %s5281, 8
      %s5283 = scalar_lea.vmem %s5, %s5282
      // Predicated region
      $region41: #{crw_forward.2} parent=39 // pred_check
        %p5284 = pneg %p144
      $region42: #{crw_forward.2} parent=39 // pred_check_branch
        %5286 = sbr.rel (%p5284) target = $region44
      $region43: #{crw_forward.2} parent=39 // pred_region
        %s5287 = smul.u32 4, %s16
      $region44: #{crw_forward.2} parent=39 // pred_fallthru
        _
    $region40: #{crw_forward.2} parent=5 // pred_fallthru
      _
    %p5288 = scmp.le.s32.totalorder 2, %s11
    // Predicated region
    $region45: #{crw_forward.2} parent=5 // pred_check
      %p5289 = pneg %p5288
    $region46: #{crw_forward.2} parent=5 // pred_check_branch
      %5291 = sbr.rel (%p5289) target = $region48
    $region47: #{crw_forward.2} parent=5 // pred_region
      %s5292 = ssub.s32 %s11, 2
      // Predicated region
      $region49: #{crw_forward.2} parent=47 // pred_check
        %p5293 = pneg %p150
      $region50: #{crw_forward.2} parent=47 // pred_check_branch
        %5295 = sbr.rel (%p5293) target = $region52
      $region51: #{crw_forward.2} parent=47 // pred_region
        %s5296 = smul.u32 4, %s17
        %p5297 = scmp.lt.s32.totalorder %s5296, 15
        %s5298 = scalar_select %p5297, %s5296, 15
        %s5299 = smul.addr %s5298, 8
        %s5300 = scalar_lea.vmem %s5, %s5299
      $region52: #{crw_forward.2} parent=47 // pred_fallthru
        _
    $region48: #{crw_forward.2} parent=5 // pred_fallthru
      _
  $region6: #{crw_forward.2} parent=0 // loop_footer
    %s15 = sadd.s32 1, %s11
  $region7: #{crw_forward.2} parent=0 // loop_footer_branch
    %10 = sbr.rel target = $region3
  $region8: #{crw_forward.2} parent=0 // loop_exit
    _

</llo_original>
